<compile_context>
chip_gen: v6e
topology: v6e:2x2x1
jax: 0.10.0
libtpu: 0.0.40
codegen_flags: <defaults>
</compile_context>

<pallas_src>
import functools

import jax
import jax.numpy as jnp
import numpy as np
from jax.experimental import pallas as pl
from jax.experimental.pallas import tpu as pltpu


# --------------------------------------------------------------------------
# Pooling branch: global avg pool -> 1x1 conv -> BN -> ReLU -> (project rows)
# Computed once per image (tiny), result is a per-image (1, Cout) bias that the
# main kernel broadcasts over all pixels.
# --------------------------------------------------------------------------
def _pool_kernel(H, W, Cin, x_ref, wp_ref, sp_ref, bp_ref, wpp_ref, out_ref):
    x = x_ref[0].reshape(H * W, Cin).astype(jnp.float32)        # (H*W, Cin)
    pooled = jnp.mean(x, axis=0, keepdims=True)                 # (1, Cin)
    y = jnp.dot(pooled, wp_ref[...], preferred_element_type=jnp.float32)
    y = jnp.maximum(y * sp_ref[...] + bp_ref[...], 0.0)         # (1, Cout)
    # bilinear upsample of a 1x1 map == constant broadcast; fold the projection
    # weight slice here so the main kernel only adds a per-image bias.
    out_ref[0] = jnp.dot(y, wpp_ref[...],
                         preferred_element_type=jnp.float32).astype(out_ref.dtype)


# --------------------------------------------------------------------------
# Main fused kernel: one (batch, row-tile) per grid step.
# --------------------------------------------------------------------------
def _aspp_main_kernel(rates, TH, W, Cin, Cout, rmax, nblk, *refs):
    nr = len(rates)
    i = 0
    xblks = refs[i:i + nblk]; i += nblk          # consecutive padded row blocks
    poolc_ref = refs[i]; i += 1                  # (1, 1, Cout) pool contribution
    w1_ref, s1_ref, b1_ref = refs[i:i + 3]; i += 3
    conv3 = []
    for _ in range(nr):
        conv3.append(refs[i:i + 3]); i += 3
    wproj_ref, sproj_ref, bproj_ref = refs[i:i + 3]; i += 3
    out_ref = refs[i]

    # Halo'd window of the r_max-padded input for this row tile:
    # (nblk*TH, W + 2*rmax, Cin); window row 0 == padded row t*TH, i.e. the
    # output row t*TH sits at window row rmax.
    win = jnp.concatenate([r[0] for r in xblks], axis=0)

    npix = TH * W

    def proj_w(b):  # rows of the projection 1x1 weight belonging to branch b
        return wproj_ref[b * Cout:(b + 1) * Cout, :]

    # Start the accumulator with the (projected) pooling-branch contribution.
    acc = jnp.broadcast_to(poolc_ref[0], (npix, Cout)).astype(jnp.float32)

    # --- branch 0: 1x1 conv -> BN -> ReLU -> project -----------------------
    xc = win[rmax:rmax + TH, rmax:rmax + W, :].reshape(npix, Cin)
    y = jnp.dot(xc, w1_ref[...], preferred_element_type=jnp.float32)
    y = jnp.maximum(y * s1_ref[...] + b1_ref[...], 0.0)
    acc = acc + jnp.dot(y.astype(jnp.bfloat16), proj_w(0),
                        preferred_element_type=jnp.float32)

    # --- dilated 3x3 branches: 9 taps fused into one long-K matmul ---------
    for r_idx, rate in enumerate(rates):
        w3_ref, s3_ref, b3_ref = conv3[r_idx]
        taps = []
        for dy in range(3):
            r0 = rmax + (dy - 1) * rate
            for dx in range(3):
                c0 = rmax + (dx - 1) * rate
                taps.append(win[r0:r0 + TH, c0:c0 + W, :].reshape(npix, Cin))
        xt = jnp.concatenate(taps, axis=-1)                      # (npix, 9*Cin)
        yb = jnp.dot(xt, w3_ref[...], preferred_element_type=jnp.float32)
        yb = jnp.maximum(yb * s3_ref[...] + b3_ref[...], 0.0)
        acc = acc + jnp.dot(yb.astype(jnp.bfloat16), proj_w(1 + r_idx),
                            preferred_element_type=jnp.float32)

    # --- project BN + ReLU (+ Dropout == identity in eval) -----------------
    out = jnp.maximum(acc * sproj_ref[...] + bproj_ref[...], 0.0)
    out_ref[0] = out.reshape(TH, W, Cout).astype(out_ref.dtype)


def _const_spec(a):
    """Whole-array BlockSpec with a constant block index (stays VMEM-resident)."""
    zeros = (0,) * a.ndim
    return pl.BlockSpec(a.shape, lambda *idx, _z=zeros: _z)


def _choose_row_tile(H, rmax):
    """Smallest divisor of H >= max(2*rmax, 8) so a halo'd window spans at most
    two consecutive row blocks and the matmul M dim stays reasonably large."""
    lo = max(2 * rmax, 8)
    for th in range(lo, H):
        if H % th == 0:
            return th
    return H


def aspp_forward(x_nchw, params, rates):
    N, Cin, H, W = x_nchw.shape
    Cout = params["w1"].shape[1]
    rates = tuple(int(r) for r in rates)
    nr = len(rates)
    nb = nr + 2
    rmax = max(rates)

    x = jnp.transpose(x_nchw, (0, 2, 3, 1)).astype(jnp.float32)        # NHWC f32

    # ---------------- pooling branch (once per image) ----------------------
    wproj_pool = params["wproj"][(nb - 1) * Cout:nb * Cout, :]
    pool_contrib = pl.pallas_call(
        functools.partial(_pool_kernel, H, W, Cin),
        out_shape=jax.ShapeDtypeStruct((N, 1, Cout), jnp.float32),
        grid=(N,),
        in_specs=[pl.BlockSpec((1, H, W, Cin), lambda n: (n, 0, 0, 0)),
                  _const_spec(params["wp"]),
                  _const_spec(params["sp"]),
                  _const_spec(params["bp"]),
                  _const_spec(wproj_pool)],
        out_specs=pl.BlockSpec((1, 1, Cout), lambda n: (n, 0, 0)),
        compiler_params=pltpu.CompilerParams(dimension_semantics=("parallel",)),
    )(x, params["wp"], params["sp"], params["bp"], wproj_pool)

    # ---------------- main kernel: row-tiled, single r_max padding ---------
    TH = _choose_row_tile(H, rmax)
    HT = H // TH
    nblk = 1 + -(-2 * rmax // TH)             # row blocks a halo'd window spans
    Hp_total = (HT + nblk - 1) * TH           # padded H, multiple of TH
    pad_top = rmax
    pad_bot = Hp_total - H - pad_top          # >= rmax by construction
    Wp = W + 2 * rmax
    xpad = jnp.pad(x.astype(jnp.bfloat16),
                   ((0, 0), (pad_top, pad_bot), (rmax, rmax), (0, 0)))

    w1_bf = params["w1"].astype(jnp.bfloat16)
    w3_bf = [params["w3"][r].reshape(9 * Cin, Cout).astype(jnp.bfloat16)
             for r in range(nr)]
    wproj_bf = params["wproj"].astype(jnp.bfloat16)

    inputs = [xpad] * nblk + [pool_contrib, w1_bf, params["s1"], params["b1"]]
    for r_idx in range(nr):
        inputs += [w3_bf[r_idx], params["s3"][r_idx], params["b3"][r_idx]]
    inputs += [wproj_bf, params["sproj"], params["bproj"]]

    in_specs = [pl.BlockSpec((1, TH, Wp, Cin), lambda n, t, j=j: (n, t + j, 0, 0))
                for j in range(nblk)]
    in_specs.append(pl.BlockSpec((1, 1, Cout), lambda n, t: (n, 0, 0)))
    in_specs += [_const_spec(a) for a in inputs[nblk + 1:]]

    kernel = functools.partial(_aspp_main_kernel, rates, TH, W, Cin, Cout,
                               rmax, nblk)
    out = pl.pallas_call(
        kernel,
        out_shape=jax.ShapeDtypeStruct((N, H, W, Cout), jnp.float32),
        grid=(N, HT),
        in_specs=in_specs,
        out_specs=pl.BlockSpec((1, TH, W, Cout), lambda n, t: (n, t, 0, 0)),
        compiler_params=pltpu.CompilerParams(
            dimension_semantics=("parallel", "parallel"),
            vmem_limit_bytes=32 * 1024 * 1024),
    )(*inputs)
    return jnp.transpose(out, (0, 3, 1, 2))                            # NCHW


def make_params(key, in_channels, rates, out_channels):
    """Deterministic synthetic parameters; BN (eval) folded into scale/bias."""
    eps = 1e-5
    nb = len(rates) + 2

    def bn_fold(k, c):
        k1, k2, k3, k4 = jax.random.split(k, 4)
        gamma = jax.random.uniform(k1, (1, c), minval=0.5, maxval=1.5)
        beta = 0.1 * jax.random.normal(k2, (1, c))
        mean = 0.1 * jax.random.normal(k3, (1, c))
        var = jax.random.uniform(k4, (1, c), minval=0.5, maxval=1.5)
        scale = gamma / jnp.sqrt(var + eps)
        bias = beta - mean * scale
        return scale.astype(jnp.float32), bias.astype(jnp.float32)

    keys = jax.random.split(key, 16)
    p = {}
    p["w1"] = (0.1 * jax.random.normal(keys[0], (in_channels, out_channels))).astype(jnp.float32)
    p["s1"], p["b1"] = bn_fold(keys[1], out_channels)
    p["w3"], p["s3"], p["b3"] = [], [], []
    for r_idx in range(len(rates)):
        w = 0.1 * jax.random.normal(keys[2 + r_idx], (3, 3, in_channels, out_channels))
        p["w3"].append(w.astype(jnp.float32))
        s, b = bn_fold(keys[6 + r_idx], out_channels)
        p["s3"].append(s); p["b3"].append(b)
    p["wp"] = (0.1 * jax.random.normal(keys[10], (in_channels, out_channels))).astype(jnp.float32)
    p["sp"], p["bp"] = bn_fold(keys[11], out_channels)
    p["wproj"] = (0.1 * jax.random.normal(keys[12], (nb * out_channels, out_channels))).astype(jnp.float32)
    p["sproj"], p["bproj"] = bn_fold(keys[13], out_channels)
    return p


def aspp_reference(x_nchw, params, rates):
    """Plain-JAX f32 reference (for a silent numerical check)."""
    x = jnp.transpose(x_nchw, (0, 2, 3, 1)).astype(jnp.float32)

    def conv1x1(inp, w):
        return jnp.einsum("nhwc,cd->nhwd", inp, w)

    outs = [jax.nn.relu(conv1x1(x, params["w1"]) * params["s1"] + params["b1"])]
    for r_idx, r in enumerate(rates):
        z = jax.lax.conv_general_dilated(
            x, params["w3"][r_idx], window_strides=(1, 1),
            padding=[(r, r), (r, r)], rhs_dilation=(r, r),
            dimension_numbers=("NHWC", "HWIO", "NHWC"))
        outs.append(jax.nn.relu(z * params["s3"][r_idx] + params["b3"][r_idx]))
    pooled = jnp.mean(x, axis=(1, 2), keepdims=True)
    yp = jax.nn.relu(conv1x1(pooled, params["wp"]) * params["sp"] + params["bp"])
    outs.append(jnp.broadcast_to(yp, outs[0].shape))
    cat = jnp.concatenate(outs, axis=-1)
    proj = jax.nn.relu(conv1x1(cat, params["wproj"]) * params["sproj"] + params["bproj"])
    return jnp.transpose(proj, (0, 3, 1, 2))


if __name__ == "__main__":
    N, Cin, H, W = 2, 4, 16, 16
    Cout = 32
    rates = (1, 2, 3)

    key = jax.random.PRNGKey(0)
    kx, kp = jax.random.split(key)
    x = jax.random.normal(kx, (N, Cin, H, W), dtype=jnp.float32)
    params = make_params(kp, Cin, rates, Cout)

    fwd = jax.jit(lambda xx, pp: aspp_forward(xx, pp, rates))
    out = jax.block_until_ready(fwd(x, params))

    ref = jax.block_until_ready(aspp_reference(x, params, rates))
    assert out.shape == (N, Cout, H, W), out.shape
    # Kernel runs bf16 x bf16 -> f32 accumulation; compare loosely vs f32 reference.
    assert np.allclose(np.asarray(out), np.asarray(ref), rtol=5e-2, atol=5e-2), (
        "mismatch vs reference")

    print("KERNEL_OK")
</pallas_src>

<mosaic_0001>
module attributes {stable_mosaic.version = 11 : i64} {
  func.func @_pool_kernel(%arg0: i32, %arg1: memref<1x16x16x4xf32, #tpu.memory_space<vmem>>, %arg2: memref<4x32xf32, #tpu.memory_space<vmem>>, %arg3: memref<1x32xf32, #tpu.memory_space<vmem>>, %arg4: memref<1x32xf32, #tpu.memory_space<vmem>>, %arg5: memref<32x32xf32, #tpu.memory_space<vmem>>, %arg6: memref<1x1x32xf32, #tpu.memory_space<vmem>>) attributes {dimension_semantics = [#tpu.dimension_semantics<parallel>], iteration_bounds = array<i64: 2>, scalar_prefetch = 0 : i64, scratch_operands = 0 : i64, tpu.core_type = #tpu.core_type<tc>, window_params = [{transform_indices = @transform_0, window_bounds = array<i64: 1, 16, 16, 4>}, {pipeline_mode = #tpu.pipeline_mode<synchronous>, transform_indices = @transform_1, window_bounds = array<i64: 4, 32>}, {pipeline_mode = #tpu.pipeline_mode<synchronous>, transform_indices = @transform_2, window_bounds = array<i64: 1, 32>}, {pipeline_mode = #tpu.pipeline_mode<synchronous>, transform_indices = @transform_3, window_bounds = array<i64: 1, 32>}, {pipeline_mode = #tpu.pipeline_mode<synchronous>, transform_indices = @transform_4, window_bounds = array<i64: 32, 32>}, {transform_indices = @transform_5, window_bounds = array<i64: 1, 1, 32>}]} {
    %c0 = arith.constant 0 : index
    %c0_0 = arith.constant 0 : index
    %c0_1 = arith.constant 0 : index
    %c0_2 = arith.constant 0 : index
    %0 = vector.load %arg1[%c0, %c0_0, %c0_1, %c0_2] : memref<1x16x16x4xf32, #tpu.memory_space<vmem>>, vector<1x16x16x4xf32>
    %1 = vector.shape_cast %0 : vector<1x16x16x4xf32> to vector<16x16x4xf32>
    %2 = vector.shape_cast %1 : vector<16x16x4xf32> to vector<256x4xf32>
    %cst = arith.constant dense<0.000000e+00> : vector<4xf32>
    %3 = vector.multi_reduction <add>, %2, %cst [0] : vector<256x4xf32> to vector<4xf32>
    %4 = vector.shape_cast %3 : vector<4xf32> to vector<1x4xf32>
    %cst_3 = arith.constant 2.560000e+02 : f32
    %5 = vector.broadcast %cst_3 : f32 to vector<1x4xf32>
    %6 = arith.divf %4, %5 : vector<1x4xf32>
    %c0_4 = arith.constant 0 : index
    %c0_5 = arith.constant 0 : index
    %7 = vector.load %arg2[%c0_4, %c0_5] : memref<4x32xf32, #tpu.memory_space<vmem>>, vector<4x32xf32>
    %cst_6 = arith.constant dense<0.000000e+00> : vector<1x32xf32>
    %8 = tpu.matmul %6, %7, %cst_6 {dimension_numbers = #tpu.dot_dimension_numbers<[1], [0], [0], [1], [0, 0, 1, 1], [], []>} : vector<1x4xf32>, vector<4x32xf32>, vector<1x32xf32> -> vector<1x32xf32>
    %c0_7 = arith.constant 0 : index
    %c0_8 = arith.constant 0 : index
    %9 = vector.load %arg3[%c0_7, %c0_8] : memref<1x32xf32, #tpu.memory_space<vmem>>, vector<1x32xf32>
    %10 = arith.mulf %8, %9 : vector<1x32xf32>
    %c0_9 = arith.constant 0 : index
    %c0_10 = arith.constant 0 : index
    %11 = vector.load %arg4[%c0_9, %c0_10] : memref<1x32xf32, #tpu.memory_space<vmem>>, vector<1x32xf32>
    %12 = arith.addf %10, %11 : vector<1x32xf32>
    %cst_11 = arith.constant 0.000000e+00 : f32
    %13 = vector.broadcast %cst_11 : f32 to vector<1x32xf32>
    %14 = arith.maximumf %12, %13 : vector<1x32xf32>
    %c0_12 = arith.constant 0 : index
    %c0_13 = arith.constant 0 : index
    %15 = vector.load %arg5[%c0_12, %c0_13] : memref<32x32xf32, #tpu.memory_space<vmem>>, vector<32x32xf32>
    %cst_14 = arith.constant dense<0.000000e+00> : vector<1x32xf32>
    %16 = tpu.matmul %14, %15, %cst_14 {dimension_numbers = #tpu.dot_dimension_numbers<[1], [0], [0], [1], [0, 0, 1, 1], [], []>} : vector<1x32xf32>, vector<32x32xf32>, vector<1x32xf32> -> vector<1x32xf32>
    %c0_15 = arith.constant 0 : index
    %c0_16 = arith.constant 0 : index
    %c0_17 = arith.constant 0 : index
    %17 = vector.load %arg6[%c0_15, %c0_16, %c0_17] : memref<1x1x32xf32, #tpu.memory_space<vmem>>, vector<1x1x32xf32>
    %18 = vector.shape_cast %17 : vector<1x1x32xf32> to vector<1x32xf32>
    %19 = vector.shape_cast %16 : vector<1x32xf32> to vector<1x1x32xf32>
    tpu.vector_store %arg6[%c0_15, %c0_16, %c0_17], %19 {strides = array<i32>} : memref<1x1x32xf32, #tpu.memory_space<vmem>>, vector<1x1x32xf32>,
    return
  }
  func.func @transform_0(%arg0: i32) -> (i32, i32, i32, i32) {
    %c0_i32 = arith.constant 0 : i32
    %c0_i32_0 = arith.constant 0 : i32
    %c0_i32_1 = arith.constant 0 : i32
    %c0_i32_2 = arith.constant 0 : i32
    return %arg0, %c0_i32, %c0_i32_0, %c0_i32_1 : i32, i32, i32, i32
  }
  func.func @transform_1(%arg0: i32) -> (i32, i32) {
    %c0_i32 = arith.constant 0 : i32
    %c0_i32_0 = arith.constant 0 : i32
    %c0_i32_1 = arith.constant 0 : i32
    return %c0_i32, %c0_i32_0 : i32, i32
  }
  func.func @transform_2(%arg0: i32) -> (i32, i32) {
    %c0_i32 = arith.constant 0 : i32
    %c0_i32_0 = arith.constant 0 : i32
    %c0_i32_1 = arith.constant 0 : i32
    return %c0_i32, %c0_i32_0 : i32, i32
  }
  func.func @transform_3(%arg0: i32) -> (i32, i32) {
    %c0_i32 = arith.constant 0 : i32
    %c0_i32_0 = arith.constant 0 : i32
    %c0_i32_1 = arith.constant 0 : i32
    return %c0_i32, %c0_i32_0 : i32, i32
  }
  func.func @transform_4(%arg0: i32) -> (i32, i32) {
    %c0_i32 = arith.constant 0 : i32
    %c0_i32_0 = arith.constant 0 : i32
    %c0_i32_1 = arith.constant 0 : i32
    return %c0_i32, %c0_i32_0 : i32, i32
  }
  func.func @transform_5(%arg0: i32) -> (i32, i32, i32) {
    %c0_i32 = arith.constant 0 : i32
    %c0_i32_0 = arith.constant 0 : i32
    %c0_i32_1 = arith.constant 0 : i32
    return %arg0, %c0_i32, %c0_i32_0 : i32, i32, i32
  }
}

module attributes {stable_mosaic.version = 11 : i64} {
  func.func @_aspp_main_kernel(%arg0: i32, %arg1: i32, %arg2: memref<1x8x22x4xbf16, #tpu.memory_space<vmem>>, %arg3: memref<1x8x22x4xbf16, #tpu.memory_space<vmem>>, %arg4: memref<1x1x32xf32, #tpu.memory_space<vmem>>, %arg5: memref<4x32xbf16, #tpu.memory_space<vmem>>, %arg6: memref<1x32xf32, #tpu.memory_space<vmem>>, %arg7: memref<1x32xf32, #tpu.memory_space<vmem>>, %arg8: memref<36x32xbf16, #tpu.memory_space<vmem>>, %arg9: memref<1x32xf32, #tpu.memory_space<vmem>>, %arg10: memref<1x32xf32, #tpu.memory_space<vmem>>, %arg11: memref<36x32xbf16, #tpu.memory_space<vmem>>, %arg12: memref<1x32xf32, #tpu.memory_space<vmem>>, %arg13: memref<1x32xf32, #tpu.memory_space<vmem>>, %arg14: memref<36x32xbf16, #tpu.memory_space<vmem>>, %arg15: memref<1x32xf32, #tpu.memory_space<vmem>>, %arg16: memref<1x32xf32, #tpu.memory_space<vmem>>, %arg17: memref<160x32xbf16, #tpu.memory_space<vmem>>, %arg18: memref<1x32xf32, #tpu.memory_space<vmem>>, %arg19: memref<1x32xf32, #tpu.memory_space<vmem>>, %arg20: memref<1x8x16x32xf32, #tpu.memory_space<vmem>>) attributes {dimension_semantics = [#tpu.dimension_semantics<parallel>, #tpu.dimension_semantics<parallel>], iteration_bounds = array<i64: 2, 2>, scalar_prefetch = 0 : i64, scratch_operands = 0 : i64, tpu.core_type = #tpu.core_type<tc>, window_params = [{transform_indices = @transform_0, window_bounds = array<i64: 1, 8, 22, 4>}, {transform_indices = @transform_1, window_bounds = array<i64: 1, 8, 22, 4>}, {transform_indices = @transform_2, window_bounds = array<i64: 1, 1, 32>}, {pipeline_mode = #tpu.pipeline_mode<synchronous>, transform_indices = @transform_3, window_bounds = array<i64: 4, 32>}, {pipeline_mode = #tpu.pipeline_mode<synchronous>, transform_indices = @transform_4, window_bounds = array<i64: 1, 32>}, {pipeline_mode = #tpu.pipeline_mode<synchronous>, transform_indices = @transform_5, window_bounds = array<i64: 1, 32>}, {pipeline_mode = #tpu.pipeline_mode<synchronous>, transform_indices = @transform_6, window_bounds = array<i64: 36, 32>}, {pipeline_mode = #tpu.pipeline_mode<synchronous>, transform_indices = @transform_7, window_bounds = array<i64: 1, 32>}, {pipeline_mode = #tpu.pipeline_mode<synchronous>, transform_indices = @transform_8, window_bounds = array<i64: 1, 32>}, {pipeline_mode = #tpu.pipeline_mode<synchronous>, transform_indices = @transform_9, window_bounds = array<i64: 36, 32>}, {pipeline_mode = #tpu.pipeline_mode<synchronous>, transform_indices = @transform_10, window_bounds = array<i64: 1, 32>}, {pipeline_mode = #tpu.pipeline_mode<synchronous>, transform_indices = @transform_11, window_bounds = array<i64: 1, 32>}, {pipeline_mode = #tpu.pipeline_mode<synchronous>, transform_indices = @transform_12, window_bounds = array<i64: 36, 32>}, {pipeline_mode = #tpu.pipeline_mode<synchronous>, transform_indices = @transform_13, window_bounds = array<i64: 1, 32>}, {pipeline_mode = #tpu.pipeline_mode<synchronous>, transform_indices = @transform_14, window_bounds = array<i64: 1, 32>}, {pipeline_mode = #tpu.pipeline_mode<synchronous>, transform_indices = @transform_15, window_bounds = array<i64: 160, 32>}, {pipeline_mode = #tpu.pipeline_mode<synchronous>, transform_indices = @transform_16, window_bounds = array<i64: 1, 32>}, {pipeline_mode = #tpu.pipeline_mode<synchronous>, transform_indices = @transform_17, window_bounds = array<i64: 1, 32>}, {transform_indices = @transform_18, window_bounds = array<i64: 1, 8, 16, 32>}]} {
    %c0 = arith.constant 0 : index
    %c0_0 = arith.constant 0 : index
    %c0_1 = arith.constant 0 : index
    %c0_2 = arith.constant 0 : index
    %0 = vector.load %arg2[%c0, %c0_0, %c0_1, %c0_2] : memref<1x8x22x4xbf16, #tpu.memory_space<vmem>>, vector<1x8x22x4xbf16>
    %1 = vector.shape_cast %0 : vector<1x8x22x4xbf16> to vector<8x22x4xbf16>
    %c0_3 = arith.constant 0 : index
    %c0_4 = arith.constant 0 : index
    %c0_5 = arith.constant 0 : index
    %c0_6 = arith.constant 0 : index
    %2 = vector.load %arg3[%c0_3, %c0_4, %c0_5, %c0_6] : memref<1x8x22x4xbf16, #tpu.memory_space<vmem>>, vector<1x8x22x4xbf16>
    %3 = vector.shape_cast %2 : vector<1x8x22x4xbf16> to vector<8x22x4xbf16>
    %4 = tpu.concatenate %1, %3 in 0 : vector<8x22x4xbf16>, vector<8x22x4xbf16> -> vector<16x22x4xbf16>
    %c0_7 = arith.constant 0 : index
    %c0_8 = arith.constant 0 : index
    %c0_9 = arith.constant 0 : index
    %5 = vector.load %arg4[%c0_7, %c0_8, %c0_9] : memref<1x1x32xf32, #tpu.memory_space<vmem>>, vector<1x1x32xf32>
    %6 = vector.shape_cast %5 : vector<1x1x32xf32> to vector<1x32xf32>
    %7 = vector.shape_cast %6 : vector<1x32xf32> to vector<1x32xf32>
    %8 = vector.broadcast %7 : vector<1x32xf32> to vector<128x32xf32>
    %9 = vector.extract_strided_slice %4 {offsets = [3, 3, 0], sizes = [8, 16, 4], strides = [1, 1, 1]} : vector<16x22x4xbf16> to vector<8x16x4xbf16>
    %10 = vector.shape_cast %9 : vector<8x16x4xbf16> to vector<128x4xbf16>
    %c0_10 = arith.constant 0 : index
    %c0_11 = arith.constant 0 : index
    %11 = vector.load %arg5[%c0_10, %c0_11] : memref<4x32xbf16, #tpu.memory_space<vmem>>, vector<4x32xbf16>
    %cst = arith.constant dense<0.000000e+00> : vector<128x32xf32>
    %12 = tpu.matmul %10, %11, %cst {dimension_numbers = #tpu.dot_dimension_numbers<[1], [0], [0], [1], [0, 0, 1, 1], [], []>} : vector<128x4xbf16>, vector<4x32xbf16>, vector<128x32xf32> -> vector<128x32xf32>
    %c0_12 = arith.constant 0 : index
    %c0_13 = arith.constant 0 : index
    %13 = vector.load %arg6[%c0_12, %c0_13] : memref<1x32xf32, #tpu.memory_space<vmem>>, vector<1x32xf32>
    %14 = vector.broadcast %13 : vector<1x32xf32> to vector<128x32xf32>
    %15 = arith.mulf %12, %14 : vector<128x32xf32>
    %c0_14 = arith.constant 0 : index
    %c0_15 = arith.constant 0 : index
    %16 = vector.load %arg7[%c0_14, %c0_15] : memref<1x32xf32, #tpu.memory_space<vmem>>, vector<1x32xf32>
    %17 = vector.broadcast %16 : vector<1x32xf32> to vector<128x32xf32>
    %18 = arith.addf %15, %17 : vector<128x32xf32>
    %cst_16 = arith.constant 0.000000e+00 : f32
    %19 = vector.broadcast %cst_16 : f32 to vector<128x32xf32>
    %20 = arith.maximumf %18, %19 : vector<128x32xf32>
    %21 = arith.truncf %20 : vector<128x32xf32> to vector<128x32xbf16>
    %c0_17 = arith.constant 0 : index
    %c0_18 = arith.constant 0 : index
    %22 = vector.load %arg17[%c0_17, %c0_18] : memref<160x32xbf16, #tpu.memory_space<vmem>>, vector<32x32xbf16>
    %cst_19 = arith.constant dense<0.000000e+00> : vector<128x32xf32>
    %23 = tpu.matmul %21, %22, %cst_19 {dimension_numbers = #tpu.dot_dimension_numbers<[1], [0], [0], [1], [0, 0, 1, 1], [], []>} : vector<128x32xbf16>, vector<32x32xbf16>, vector<128x32xf32> -> vector<128x32xf32>
    %24 = arith.addf %8, %23 : vector<128x32xf32>
    %25 = vector.extract_strided_slice %4 {offsets = [2, 2, 0], sizes = [8, 16, 4], strides = [1, 1, 1]} : vector<16x22x4xbf16> to vector<8x16x4xbf16>
    %26 = vector.shape_cast %25 : vector<8x16x4xbf16> to vector<128x4xbf16>
    %27 = vector.extract_strided_slice %4 {offsets = [2, 3, 0], sizes = [8, 16, 4], strides = [1, 1, 1]} : vector<16x22x4xbf16> to vector<8x16x4xbf16>
    %28 = vector.shape_cast %27 : vector<8x16x4xbf16> to vector<128x4xbf16>
    %29 = vector.extract_strided_slice %4 {offsets = [2, 4, 0], sizes = [8, 16, 4], strides = [1, 1, 1]} : vector<16x22x4xbf16> to vector<8x16x4xbf16>
    %30 = vector.shape_cast %29 : vector<8x16x4xbf16> to vector<128x4xbf16>
    %31 = vector.extract_strided_slice %4 {offsets = [3, 2, 0], sizes = [8, 16, 4], strides = [1, 1, 1]} : vector<16x22x4xbf16> to vector<8x16x4xbf16>
    %32 = vector.shape_cast %31 : vector<8x16x4xbf16> to vector<128x4xbf16>
    %33 = vector.extract_strided_slice %4 {offsets = [3, 3, 0], sizes = [8, 16, 4], strides = [1, 1, 1]} : vector<16x22x4xbf16> to vector<8x16x4xbf16>
    %34 = vector.shape_cast %33 : vector<8x16x4xbf16> to vector<128x4xbf16>
    %35 = vector.extract_strided_slice %4 {offsets = [3, 4, 0], sizes = [8, 16, 4], strides = [1, 1, 1]} : vector<16x22x4xbf16> to vector<8x16x4xbf16>
    %36 = vector.shape_cast %35 : vector<8x16x4xbf16> to vector<128x4xbf16>
    %37 = vector.extract_strided_slice %4 {offsets = [4, 2, 0], sizes = [8, 16, 4], strides = [1, 1, 1]} : vector<16x22x4xbf16> to vector<8x16x4xbf16>
    %38 = vector.shape_cast %37 : vector<8x16x4xbf16> to vector<128x4xbf16>
    %39 = vector.extract_strided_slice %4 {offsets = [4, 3, 0], sizes = [8, 16, 4], strides = [1, 1, 1]} : vector<16x22x4xbf16> to vector<8x16x4xbf16>
    %40 = vector.shape_cast %39 : vector<8x16x4xbf16> to vector<128x4xbf16>
    %41 = vector.extract_strided_slice %4 {offsets = [4, 4, 0], sizes = [8, 16, 4], strides = [1, 1, 1]} : vector<16x22x4xbf16> to vector<8x16x4xbf16>
    %42 = vector.shape_cast %41 : vector<8x16x4xbf16> to vector<128x4xbf16>
    %43 = tpu.concatenate %26, %28, %30, %32, %34, %36, %38, %40, %42 in 1 : vector<128x4xbf16>, vector<128x4xbf16>, vector<128x4xbf16>, vector<128x4xbf16>, vector<128x4xbf16>, vector<128x4xbf16>, vector<128x4xbf16>, vector<128x4xbf16>, vector<128x4xbf16> -> vector<128x36xbf16>
    %c0_20 = arith.constant 0 : index
    %c0_21 = arith.constant 0 : index
    %44 = vector.load %arg8[%c0_20, %c0_21] : memref<36x32xbf16, #tpu.memory_space<vmem>>, vector<36x32xbf16>
    %cst_22 = arith.constant dense<0.000000e+00> : vector<128x32xf32>
    %45 = tpu.matmul %43, %44, %cst_22 {dimension_numbers = #tpu.dot_dimension_numbers<[1], [0], [0], [1], [0, 0, 1, 1], [], []>} : vector<128x36xbf16>, vector<36x32xbf16>, vector<128x32xf32> -> vector<128x32xf32>
    %c0_23 = arith.constant 0 : index
    %c0_24 = arith.constant 0 : index
    %46 = vector.load %arg9[%c0_23, %c0_24] : memref<1x32xf32, #tpu.memory_space<vmem>>, vector<1x32xf32>
    %47 = vector.broadcast %46 : vector<1x32xf32> to vector<128x32xf32>
    %48 = arith.mulf %45, %47 : vector<128x32xf32>
    %c0_25 = arith.constant 0 : index
    %c0_26 = arith.constant 0 : index
    %49 = vector.load %arg10[%c0_25, %c0_26] : memref<1x32xf32, #tpu.memory_space<vmem>>, vector<1x32xf32>
    %50 = vector.broadcast %49 : vector<1x32xf32> to vector<128x32xf32>
    %51 = arith.addf %48, %50 : vector<128x32xf32>
    %cst_27 = arith.constant 0.000000e+00 : f32
    %52 = vector.broadcast %cst_27 : f32 to vector<128x32xf32>
    %53 = arith.maximumf %51, %52 : vector<128x32xf32>
    %54 = arith.truncf %53 : vector<128x32xf32> to vector<128x32xbf16>
    %c32 = arith.constant 32 : index
    %c0_28 = arith.constant 0 : index
    %55 = vector.load %arg17[%c32, %c0_28] : memref<160x32xbf16, #tpu.memory_space<vmem>>, vector<32x32xbf16>
    %cst_29 = arith.constant dense<0.000000e+00> : vector<128x32xf32>
    %56 = tpu.matmul %54, %55, %cst_29 {dimension_numbers = #tpu.dot_dimension_numbers<[1], [0], [0], [1], [0, 0, 1, 1], [], []>} : vector<128x32xbf16>, vector<32x32xbf16>, vector<128x32xf32> -> vector<128x32xf32>
    %57 = arith.addf %24, %56 : vector<128x32xf32>
    %58 = vector.extract_strided_slice %4 {offsets = [1, 1, 0], sizes = [8, 16, 4], strides = [1, 1, 1]} : vector<16x22x4xbf16> to vector<8x16x4xbf16>
    %59 = vector.shape_cast %58 : vector<8x16x4xbf16> to vector<128x4xbf16>
    %60 = vector.extract_strided_slice %4 {offsets = [1, 3, 0], sizes = [8, 16, 4], strides = [1, 1, 1]} : vector<16x22x4xbf16> to vector<8x16x4xbf16>
    %61 = vector.shape_cast %60 : vector<8x16x4xbf16> to vector<128x4xbf16>
    %62 = vector.extract_strided_slice %4 {offsets = [1, 5, 0], sizes = [8, 16, 4], strides = [1, 1, 1]} : vector<16x22x4xbf16> to vector<8x16x4xbf16>
    %63 = vector.shape_cast %62 : vector<8x16x4xbf16> to vector<128x4xbf16>
    %64 = vector.extract_strided_slice %4 {offsets = [3, 1, 0], sizes = [8, 16, 4], strides = [1, 1, 1]} : vector<16x22x4xbf16> to vector<8x16x4xbf16>
    %65 = vector.shape_cast %64 : vector<8x16x4xbf16> to vector<128x4xbf16>
    %66 = vector.extract_strided_slice %4 {offsets = [3, 3, 0], sizes = [8, 16, 4], strides = [1, 1, 1]} : vector<16x22x4xbf16> to vector<8x16x4xbf16>
    %67 = vector.shape_cast %66 : vector<8x16x4xbf16> to vector<128x4xbf16>
    %68 = vector.extract_strided_slice %4 {offsets = [3, 5, 0], sizes = [8, 16, 4], strides = [1, 1, 1]} : vector<16x22x4xbf16> to vector<8x16x4xbf16>
    %69 = vector.shape_cast %68 : vector<8x16x4xbf16> to vector<128x4xbf16>
    %70 = vector.extract_strided_slice %4 {offsets = [5, 1, 0], sizes = [8, 16, 4], strides = [1, 1, 1]} : vector<16x22x4xbf16> to vector<8x16x4xbf16>
    %71 = vector.shape_cast %70 : vector<8x16x4xbf16> to vector<128x4xbf16>
    %72 = vector.extract_strided_slice %4 {offsets = [5, 3, 0], sizes = [8, 16, 4], strides = [1, 1, 1]} : vector<16x22x4xbf16> to vector<8x16x4xbf16>
    %73 = vector.shape_cast %72 : vector<8x16x4xbf16> to vector<128x4xbf16>
    %74 = vector.extract_strided_slice %4 {offsets = [5, 5, 0], sizes = [8, 16, 4], strides = [1, 1, 1]} : vector<16x22x4xbf16> to vector<8x16x4xbf16>
    %75 = vector.shape_cast %74 : vector<8x16x4xbf16> to vector<128x4xbf16>
    %76 = tpu.concatenate %59, %61, %63, %65, %67, %69, %71, %73, %75 in 1 : vector<128x4xbf16>, vector<128x4xbf16>, vector<128x4xbf16>, vector<128x4xbf16>, vector<128x4xbf16>, vector<128x4xbf16>, vector<128x4xbf16>, vector<128x4xbf16>, vector<128x4xbf16> -> vector<128x36xbf16>
    %c0_30 = arith.constant 0 : index
    %c0_31 = arith.constant 0 : index
    %77 = vector.load %arg11[%c0_30, %c0_31] : memref<36x32xbf16, #tpu.memory_space<vmem>>, vector<36x32xbf16>
    %cst_32 = arith.constant dense<0.000000e+00> : vector<128x32xf32>
    %78 = tpu.matmul %76, %77, %cst_32 {dimension_numbers = #tpu.dot_dimension_numbers<[1], [0], [0], [1], [0, 0, 1, 1], [], []>} : vector<128x36xbf16>, vector<36x32xbf16>, vector<128x32xf32> -> vector<128x32xf32>
    %c0_33 = arith.constant 0 : index
    %c0_34 = arith.constant 0 : index
    %79 = vector.load %arg12[%c0_33, %c0_34] : memref<1x32xf32, #tpu.memory_space<vmem>>, vector<1x32xf32>
    %80 = vector.broadcast %79 : vector<1x32xf32> to vector<128x32xf32>
    %81 = arith.mulf %78, %80 : vector<128x32xf32>
    %c0_35 = arith.constant 0 : index
    %c0_36 = arith.constant 0 : index
    %82 = vector.load %arg13[%c0_35, %c0_36] : memref<1x32xf32, #tpu.memory_space<vmem>>, vector<1x32xf32>
    %83 = vector.broadcast %82 : vector<1x32xf32> to vector<128x32xf32>
    %84 = arith.addf %81, %83 : vector<128x32xf32>
    %cst_37 = arith.constant 0.000000e+00 : f32
    %85 = vector.broadcast %cst_37 : f32 to vector<128x32xf32>
    %86 = arith.maximumf %84, %85 : vector<128x32xf32>
    %87 = arith.truncf %86 : vector<128x32xf32> to vector<128x32xbf16>
    %c64 = arith.constant 64 : index
    %c0_38 = arith.constant 0 : index
    %88 = vector.load %arg17[%c64, %c0_38] : memref<160x32xbf16, #tpu.memory_space<vmem>>, vector<32x32xbf16>
    %cst_39 = arith.constant dense<0.000000e+00> : vector<128x32xf32>
    %89 = tpu.matmul %87, %88, %cst_39 {dimension_numbers = #tpu.dot_dimension_numbers<[1], [0], [0], [1], [0, 0, 1, 1], [], []>} : vector<128x32xbf16>, vector<32x32xbf16>, vector<128x32xf32> -> vector<128x32xf32>
    %90 = arith.addf %57, %89 : vector<128x32xf32>
    %91 = vector.extract_strided_slice %4 {offsets = [0, 0, 0], sizes = [8, 16, 4], strides = [1, 1, 1]} : vector<16x22x4xbf16> to vector<8x16x4xbf16>
    %92 = vector.shape_cast %91 : vector<8x16x4xbf16> to vector<128x4xbf16>
    %93 = vector.extract_strided_slice %4 {offsets = [0, 3, 0], sizes = [8, 16, 4], strides = [1, 1, 1]} : vector<16x22x4xbf16> to vector<8x16x4xbf16>
    %94 = vector.shape_cast %93 : vector<8x16x4xbf16> to vector<128x4xbf16>
    %95 = vector.extract_strided_slice %4 {offsets = [0, 6, 0], sizes = [8, 16, 4], strides = [1, 1, 1]} : vector<16x22x4xbf16> to vector<8x16x4xbf16>
    %96 = vector.shape_cast %95 : vector<8x16x4xbf16> to vector<128x4xbf16>
    %97 = vector.extract_strided_slice %4 {offsets = [3, 0, 0], sizes = [8, 16, 4], strides = [1, 1, 1]} : vector<16x22x4xbf16> to vector<8x16x4xbf16>
    %98 = vector.shape_cast %97 : vector<8x16x4xbf16> to vector<128x4xbf16>
    %99 = vector.extract_strided_slice %4 {offsets = [3, 3, 0], sizes = [8, 16, 4], strides = [1, 1, 1]} : vector<16x22x4xbf16> to vector<8x16x4xbf16>
    %100 = vector.shape_cast %99 : vector<8x16x4xbf16> to vector<128x4xbf16>
    %101 = vector.extract_strided_slice %4 {offsets = [3, 6, 0], sizes = [8, 16, 4], strides = [1, 1, 1]} : vector<16x22x4xbf16> to vector<8x16x4xbf16>
    %102 = vector.shape_cast %101 : vector<8x16x4xbf16> to vector<128x4xbf16>
    %103 = vector.extract_strided_slice %4 {offsets = [6, 0, 0], sizes = [8, 16, 4], strides = [1, 1, 1]} : vector<16x22x4xbf16> to vector<8x16x4xbf16>
    %104 = vector.shape_cast %103 : vector<8x16x4xbf16> to vector<128x4xbf16>
    %105 = vector.extract_strided_slice %4 {offsets = [6, 3, 0], sizes = [8, 16, 4], strides = [1, 1, 1]} : vector<16x22x4xbf16> to vector<8x16x4xbf16>
    %106 = vector.shape_cast %105 : vector<8x16x4xbf16> to vector<128x4xbf16>
    %107 = vector.extract_strided_slice %4 {offsets = [6, 6, 0], sizes = [8, 16, 4], strides = [1, 1, 1]} : vector<16x22x4xbf16> to vector<8x16x4xbf16>
    %108 = vector.shape_cast %107 : vector<8x16x4xbf16> to vector<128x4xbf16>
    %109 = tpu.concatenate %92, %94, %96, %98, %100, %102, %104, %106, %108 in 1 : vector<128x4xbf16>, vector<128x4xbf16>, vector<128x4xbf16>, vector<128x4xbf16>, vector<128x4xbf16>, vector<128x4xbf16>, vector<128x4xbf16>, vector<128x4xbf16>, vector<128x4xbf16> -> vector<128x36xbf16>
    %c0_40 = arith.constant 0 : index
    %c0_41 = arith.constant 0 : index
    %110 = vector.load %arg14[%c0_40, %c0_41] : memref<36x32xbf16, #tpu.memory_space<vmem>>, vector<36x32xbf16>
    %cst_42 = arith.constant dense<0.000000e+00> : vector<128x32xf32>
    %111 = tpu.matmul %109, %110, %cst_42 {dimension_numbers = #tpu.dot_dimension_numbers<[1], [0], [0], [1], [0, 0, 1, 1], [], []>} : vector<128x36xbf16>, vector<36x32xbf16>, vector<128x32xf32> -> vector<128x32xf32>
    %c0_43 = arith.constant 0 : index
    %c0_44 = arith.constant 0 : index
    %112 = vector.load %arg15[%c0_43, %c0_44] : memref<1x32xf32, #tpu.memory_space<vmem>>, vector<1x32xf32>
    %113 = vector.broadcast %112 : vector<1x32xf32> to vector<128x32xf32>
    %114 = arith.mulf %111, %113 : vector<128x32xf32>
    %c0_45 = arith.constant 0 : index
    %c0_46 = arith.constant 0 : index
    %115 = vector.load %arg16[%c0_45, %c0_46] : memref<1x32xf32, #tpu.memory_space<vmem>>, vector<1x32xf32>
    %116 = vector.broadcast %115 : vector<1x32xf32> to vector<128x32xf32>
    %117 = arith.addf %114, %116 : vector<128x32xf32>
    %cst_47 = arith.constant 0.000000e+00 : f32
    %118 = vector.broadcast %cst_47 : f32 to vector<128x32xf32>
    %119 = arith.maximumf %117, %118 : vector<128x32xf32>
    %120 = arith.truncf %119 : vector<128x32xf32> to vector<128x32xbf16>
    %c96 = arith.constant 96 : index
    %c0_48 = arith.constant 0 : index
    %121 = vector.load %arg17[%c96, %c0_48] : memref<160x32xbf16, #tpu.memory_space<vmem>>, vector<32x32xbf16>
    %cst_49 = arith.constant dense<0.000000e+00> : vector<128x32xf32>
    %122 = tpu.matmul %120, %121, %cst_49 {dimension_numbers = #tpu.dot_dimension_numbers<[1], [0], [0], [1], [0, 0, 1, 1], [], []>} : vector<128x32xbf16>, vector<32x32xbf16>, vector<128x32xf32> -> vector<128x32xf32>
    %123 = arith.addf %90, %122 : vector<128x32xf32>
    %c0_50 = arith.constant 0 : index
    %c0_51 = arith.constant 0 : index
    %124 = vector.load %arg18[%c0_50, %c0_51] : memref<1x32xf32, #tpu.memory_space<vmem>>, vector<1x32xf32>
    %125 = vector.broadcast %124 : vector<1x32xf32> to vector<128x32xf32>
    %126 = arith.mulf %123, %125 : vector<128x32xf32>
    %c0_52 = arith.constant 0 : index
    %c0_53 = arith.constant 0 : index
    %127 = vector.load %arg19[%c0_52, %c0_53] : memref<1x32xf32, #tpu.memory_space<vmem>>, vector<1x32xf32>
    %128 = vector.broadcast %127 : vector<1x32xf32> to vector<128x32xf32>
    %129 = arith.addf %126, %128 : vector<128x32xf32>
    %cst_54 = arith.constant 0.000000e+00 : f32
    %130 = vector.broadcast %cst_54 : f32 to vector<128x32xf32>
    %131 = arith.maximumf %129, %130 : vector<128x32xf32>
    %132 = vector.shape_cast %131 : vector<128x32xf32> to vector<8x16x32xf32>
    %c0_55 = arith.constant 0 : index
    %c0_56 = arith.constant 0 : index
    %c0_57 = arith.constant 0 : index
    %c0_58 = arith.constant 0 : index
    %133 = vector.load %arg20[%c0_55, %c0_56, %c0_57, %c0_58] : memref<1x8x16x32xf32, #tpu.memory_space<vmem>>, vector<1x8x16x32xf32>
    %134 = vector.shape_cast %133 : vector<1x8x16x32xf32> to vector<8x16x32xf32>
    %135 = vector.shape_cast %132 : vector<8x16x32xf32> to vector<1x8x16x32xf32>
    tpu.vector_store %arg20[%c0_55, %c0_56, %c0_57, %c0_58], %135 {strides = array<i32>} : memref<1x8x16x32xf32, #tpu.memory_space<vmem>>, vector<1x8x16x32xf32>,
    return
  }
  func.func @transform_0(%arg0: i32, %arg1: i32) -> (i32, i32, i32, i32) {
    %c0_i32 = arith.constant 0 : i32
    %0 = arith.addi %arg1, %c0_i32 : i32
    %c0_i32_0 = arith.constant 0 : i32
    %c0_i32_1 = arith.constant 0 : i32
    %c0_i32_2 = arith.constant 0 : i32
    return %arg0, %0, %c0_i32_0, %c0_i32_1 : i32, i32, i32, i32
  }
  func.func @transform_1(%arg0: i32, %arg1: i32) -> (i32, i32, i32, i32) {
    %c1_i32 = arith.constant 1 : i32
    %0 = arith.addi %arg1, %c1_i32 : i32
    %c0_i32 = arith.constant 0 : i32
    %c0_i32_0 = arith.constant 0 : i32
    %c0_i32_1 = arith.constant 0 : i32
    return %arg0, %0, %c0_i32, %c0_i32_0 : i32, i32, i32, i32
  }
  func.func @transform_2(%arg0: i32, %arg1: i32) -> (i32, i32, i32) {
    %c0_i32 = arith.constant 0 : i32
    %c0_i32_0 = arith.constant 0 : i32
    %c0_i32_1 = arith.constant 0 : i32
    return %arg0, %c0_i32, %c0_i32_0 : i32, i32, i32
  }
  func.func @transform_3(%arg0: i32, %arg1: i32) -> (i32, i32) {
    %c0_i32 = arith.constant 0 : i32
    %c0_i32_0 = arith.constant 0 : i32
    %c0_i32_1 = arith.constant 0 : i32
    return %c0_i32, %c0_i32_0 : i32, i32
  }
  func.func @transform_4(%arg0: i32, %arg1: i32) -> (i32, i32) {
    %c0_i32 = arith.constant 0 : i32
    %c0_i32_0 = arith.constant 0 : i32
    %c0_i32_1 = arith.constant 0 : i32
    return %c0_i32, %c0_i32_0 : i32, i32
  }
  func.func @transform_5(%arg0: i32, %arg1: i32) -> (i32, i32) {
    %c0_i32 = arith.constant 0 : i32
    %c0_i32_0 = arith.constant 0 : i32
    %c0_i32_1 = arith.constant 0 : i32
    return %c0_i32, %c0_i32_0 : i32, i32
  }
  func.func @transform_6(%arg0: i32, %arg1: i32) -> (i32, i32) {
    %c0_i32 = arith.constant 0 : i32
    %c0_i32_0 = arith.constant 0 : i32
    %c0_i32_1 = arith.constant 0 : i32
    return %c0_i32, %c0_i32_0 : i32, i32
  }
  func.func @transform_7(%arg0: i32, %arg1: i32) -> (i32, i32) {
    %c0_i32 = arith.constant 0 : i32
    %c0_i32_0 = arith.constant 0 : i32
    %c0_i32_1 = arith.constant 0 : i32
    return %c0_i32, %c0_i32_0 : i32, i32
  }
  func.func @transform_8(%arg0: i32, %arg1: i32) -> (i32, i32) {
    %c0_i32 = arith.constant 0 : i32
    %c0_i32_0 = arith.constant 0 : i32
    %c0_i32_1 = arith.constant 0 : i32
    return %c0_i32, %c0_i32_0 : i32, i32
  }
  func.func @transform_9(%arg0: i32, %arg1: i32) -> (i32, i32) {
    %c0_i32 = arith.constant 0 : i32
    %c0_i32_0 = arith.constant 0 : i32
    %c0_i32_1 = arith.constant 0 : i32
    return %c0_i32, %c0_i32_0 : i32, i32
  }
  func.func @transform_10(%arg0: i32, %arg1: i32) -> (i32, i32) {
    %c0_i32 = arith.constant 0 : i32
    %c0_i32_0 = arith.constant 0 : i32
    %c0_i32_1 = arith.constant 0 : i32
    return %c0_i32, %c0_i32_0 : i32, i32
  }
  func.func @transform_11(%arg0: i32, %arg1: i32) -> (i32, i32) {
    %c0_i32 = arith.constant 0 : i32
    %c0_i32_0 = arith.constant 0 : i32
    %c0_i32_1 = arith.constant 0 : i32
    return %c0_i32, %c0_i32_0 : i32, i32
  }
  func.func @transform_12(%arg0: i32, %arg1: i32) -> (i32, i32) {
    %c0_i32 = arith.constant 0 : i32
    %c0_i32_0 = arith.constant 0 : i32
    %c0_i32_1 = arith.constant 0 : i32
    return %c0_i32, %c0_i32_0 : i32, i32
  }
  func.func @transform_13(%arg0: i32, %arg1: i32) -> (i32, i32) {
    %c0_i32 = arith.constant 0 : i32
    %c0_i32_0 = arith.constant 0 : i32
    %c0_i32_1 = arith.constant 0 : i32
    return %c0_i32, %c0_i32_0 : i32, i32
  }
  func.func @transform_14(%arg0: i32, %arg1: i32) -> (i32, i32) {
    %c0_i32 = arith.constant 0 : i32
    %c0_i32_0 = arith.constant 0 : i32
    %c0_i32_1 = arith.constant 0 : i32
    return %c0_i32, %c0_i32_0 : i32, i32
  }
  func.func @transform_15(%arg0: i32, %arg1: i32) -> (i32, i32) {
    %c0_i32 = arith.constant 0 : i32
    %c0_i32_0 = arith.constant 0 : i32
    %c0_i32_1 = arith.constant 0 : i32
    return %c0_i32, %c0_i32_0 : i32, i32
  }
  func.func @transform_16(%arg0: i32, %arg1: i32) -> (i32, i32) {
    %c0_i32 = arith.constant 0 : i32
    %c0_i32_0 = arith.constant 0 : i32
    %c0_i32_1 = arith.constant 0 : i32
    return %c0_i32, %c0_i32_0 : i32, i32
  }
  func.func @transform_17(%arg0: i32, %arg1: i32) -> (i32, i32) {
    %c0_i32 = arith.constant 0 : i32
    %c0_i32_0 = arith.constant 0 : i32
    %c0_i32_1 = arith.constant 0 : i32
    return %c0_i32, %c0_i32_0 : i32, i32
  }
  func.func @transform_18(%arg0: i32, %arg1: i32) -> (i32, i32, i32, i32) {
    %c0_i32 = arith.constant 0 : i32
    %c0_i32_0 = arith.constant 0 : i32
    %c0_i32_1 = arith.constant 0 : i32
    return %arg0, %arg1, %c0_i32, %c0_i32_0 : i32, i32, i32, i32
  }
}

</mosaic_0001>

<llo_original>
// kernel: _lambda_.2
$region0: #{_lambda_.2}
  #allocation0 [shape = 'u32[]', space=smem, size = 0x4, offset = 0x4, fixed_abs, tag = 'smem constant byte address 0x4 - core index']
  #allocation1 [shape = 'u32[144,128]{1,0:T(1,128)}', space=vmem, size = 0x12000, scoped, tag = 'internal scratch']
  %s0 = inlined_call_operand.vmem [shape: f32[2,16,16,4], index: 0, kind: input, shape index: {}]
  %s1 = inlined_call_operand.vmem [shape: f32[4,32], index: 1, kind: input, shape index: {}]
  %s2 = inlined_call_operand.vmem [shape: f32[1,32], index: 2, kind: input, shape index: {}]
  %s3 = inlined_call_operand.vmem [shape: f32[1,32], index: 3, kind: input, shape index: {}]
  %s4 = inlined_call_operand.vmem [shape: f32[32,32], index: 4, kind: input, shape index: {}]
  %s5 = inlined_call_operand.vmem [shape: f32[2,1,32], index: 5, kind: output, shape index: {}]
  %s6 = sld [smem:[#allocation0]]
  $region53: #{_lambda_.2} parent=0
    _
  %s8 = ssub.s32 1, %s6
  %s9 = scalar_select 0, %s8, %s6
  loop: start=0, step=1, limit=4
  $region2: #{_lambda_.2} parent=0 // loop_pre_header
    _
  $region3: #{_lambda_.2} parent=0 // loop_header
    %s11 = sphi 0, %s15
    %p12 = scmp.ge.s32.totalorder %s11, 4
    %s21 = sphi 0, %s23
    %s24 = sphi 0, %s21
    %s25 = sphi 0, %s24
    %s41 = sphi 0, %s25
    %s45 = sphi 0, %s45
    %s47 = sphi 0, %s45
    %s48 = sphi 0, %s47
    %s62 = sphi 0, %s48
    %s66 = sphi 0, %s66
    %s68 = sphi 0, %s66
    %s69 = sphi 0, %s68
    %s83 = sphi 0, %s69
    %s87 = sphi 0, %s87
    %s89 = sphi 0, %s87
    %s90 = sphi 0, %s89
    %s104 = sphi 0, %s90
    %s108 = sphi 0, %s108
    %s110 = sphi 0, %s108
    %s111 = sphi 0, %s110
    %s125 = sphi 0, %s111
    %s131 = sphi 0, %s133
    %s134 = sphi 0, %s131
    %s135 = sphi 0, %s134
    %s151 = sphi 0, %s135
  $region4: #{_lambda_.2} parent=0 // loop_header_branch
    %14 = sbr.rel (%p12) target = $region8
  $region5: #{_lambda_.2} parent=0 // loop_body
    %s16 = ssub.s32 %s11, 1
    %s17 = ssub.s32 %s11, 2
    %s18 = sadd.s32 %s11, 1
    %s19 = ssub.s32 %s11, %s18
    %p20 = scmp.eq.s32.totalorder %s19, 0
    %s22 = sadd.s32 %s21, 1
    %s23 = scalar_select %p20, %s21, %s22
    %p26 = pneg %p20
    %p27 = scmp.eq.s32.totalorder %s11, 1
    %p28 = por %p26, %p27
    %p29 = scmp.ne.s32.totalorder %s21, %s24
    %p30 = scmp.eq.s32.totalorder %s11, 0
    %p31 = por %p29, %p30
    %p32 = scmp.ne.s32.totalorder %s21, %s24
    %p33 = scmp.eq.s32.totalorder %s16, 1
    %p34 = por %p32, %p33
    %p35 = scmp.ne.s32.totalorder %s24, %s25
    %p36 = scmp.eq.s32.totalorder %s16, 0
    %p37 = por %p35, %p36
    %p38 = scmp.ne.s32.totalorder %s24, %s25
    %p39 = scmp.eq.s32.totalorder %s17, 1
    %p40 = por %p38, %p39
    %p42 = scmp.ne.s32.totalorder %s25, %s41
    %p43 = scmp.eq.s32.totalorder %s17, 0
    %p44 = por %p42, %p43
    %s46 = sadd.s32 %s45, 1
    %p49 = scmp.eq.s32.totalorder %s11, 1
    %p50 = scmp.ne.s32.totalorder %s45, %s47
    %p51 = scmp.eq.s32.totalorder %s11, 0
    %p52 = por %p50, %p51
    %p53 = scmp.ne.s32.totalorder %s45, %s47
    %p54 = scmp.eq.s32.totalorder %s16, 1
    %p55 = por %p53, %p54
    %p56 = scmp.ne.s32.totalorder %s47, %s48
    %p57 = scmp.eq.s32.totalorder %s16, 0
    %p58 = por %p56, %p57
    %p59 = scmp.ne.s32.totalorder %s47, %s48
    %p60 = scmp.eq.s32.totalorder %s17, 1
    %p61 = por %p59, %p60
    %p63 = scmp.ne.s32.totalorder %s48, %s62
    %p64 = scmp.eq.s32.totalorder %s17, 0
    %p65 = por %p63, %p64
    %s67 = sadd.s32 %s66, 1
    %p70 = scmp.eq.s32.totalorder %s11, 1
    %p71 = scmp.ne.s32.totalorder %s66, %s68
    %p72 = scmp.eq.s32.totalorder %s11, 0
    %p73 = por %p71, %p72
    %p74 = scmp.ne.s32.totalorder %s66, %s68
    %p75 = scmp.eq.s32.totalorder %s16, 1
    %p76 = por %p74, %p75
    %p77 = scmp.ne.s32.totalorder %s68, %s69
    %p78 = scmp.eq.s32.totalorder %s16, 0
    %p79 = por %p77, %p78
    %p80 = scmp.ne.s32.totalorder %s68, %s69
    %p81 = scmp.eq.s32.totalorder %s17, 1
    %p82 = por %p80, %p81
    %p84 = scmp.ne.s32.totalorder %s69, %s83
    %p85 = scmp.eq.s32.totalorder %s17, 0
    %p86 = por %p84, %p85
    %s88 = sadd.s32 %s87, 1
    %p91 = scmp.eq.s32.totalorder %s11, 1
    %p92 = scmp.ne.s32.totalorder %s87, %s89
    %p93 = scmp.eq.s32.totalorder %s11, 0
    %p94 = por %p92, %p93
    %p95 = scmp.ne.s32.totalorder %s87, %s89
    %p96 = scmp.eq.s32.totalorder %s16, 1
    %p97 = por %p95, %p96
    %p98 = scmp.ne.s32.totalorder %s89, %s90
    %p99 = scmp.eq.s32.totalorder %s16, 0
    %p100 = por %p98, %p99
    %p101 = scmp.ne.s32.totalorder %s89, %s90
    %p102 = scmp.eq.s32.totalorder %s17, 1
    %p103 = por %p101, %p102
    %p105 = scmp.ne.s32.totalorder %s90, %s104
    %p106 = scmp.eq.s32.totalorder %s17, 0
    %p107 = por %p105, %p106
    %s109 = sadd.s32 %s108, 1
    %p112 = scmp.eq.s32.totalorder %s11, 1
    %p113 = scmp.ne.s32.totalorder %s108, %s110
    %p114 = scmp.eq.s32.totalorder %s11, 0
    %p115 = por %p113, %p114
    %p116 = scmp.ne.s32.totalorder %s108, %s110
    %p117 = scmp.eq.s32.totalorder %s16, 1
    %p118 = por %p116, %p117
    %p119 = scmp.ne.s32.totalorder %s110, %s111
    %p120 = scmp.eq.s32.totalorder %s16, 0
    %p121 = por %p119, %p120
    %p122 = scmp.ne.s32.totalorder %s110, %s111
    %p123 = scmp.eq.s32.totalorder %s17, 1
    %p124 = por %p122, %p123
    %p126 = scmp.ne.s32.totalorder %s111, %s125
    %p127 = scmp.eq.s32.totalorder %s17, 0
    %p128 = por %p126, %p127
    %s129 = ssub.s32 %s11, %s18
    %p130 = scmp.eq.s32.totalorder %s129, 0
    %s132 = sadd.s32 %s131, 1
    %s133 = scalar_select %p130, %s131, %s132
    %p136 = pneg %p130
    %p137 = scmp.eq.s32.totalorder %s11, 1
    %p138 = por %p136, %p137
    %p139 = scmp.ne.s32.totalorder %s131, %s134
    %p140 = scmp.eq.s32.totalorder %s11, 0
    %p141 = por %p139, %p140
    %p142 = scmp.ne.s32.totalorder %s131, %s134
    %p143 = scmp.eq.s32.totalorder %s16, 1
    %p144 = por %p142, %p143
    %p145 = scmp.ne.s32.totalorder %s134, %s135
    %p146 = scmp.eq.s32.totalorder %s16, 0
    %p147 = por %p145, %p146
    %p148 = scmp.ne.s32.totalorder %s134, %s135
    %p149 = scmp.eq.s32.totalorder %s17, 1
    %p150 = por %p148, %p149
    %p152 = scmp.ne.s32.totalorder %s135, %s151
    %p153 = scmp.eq.s32.totalorder %s17, 0
    %p154 = por %p152, %p153
    %p155 = scmp.le.s32.totalorder 1, %s11
    %p156 = scmp.lt.s32.totalorder %s11, 3
    %p157 = pnand %p155, %p156
    %p158 = pneg %p157
    // Predicated region
    $region9: #{_lambda_.2} parent=5 // pred_check
      _
    $region10: #{_lambda_.2} parent=5 // pred_check_branch
      %160 = sbr.rel (%p157) target = $region12
    $region11: #{_lambda_.2} parent=5 // pred_region
      %s161 = ssub.s32 %s11, 1
      // Predicated region
      $region13: #{_lambda_.2} parent=11 // pred_check
        %p162 = pneg %p58
      $region14: #{_lambda_.2} parent=11 // pred_check_branch
        %164 = sbr.rel (%p162) target = $region16
      $region15: #{_lambda_.2} parent=11 // pred_region
        _
      $region16: #{_lambda_.2} parent=11 // pred_fallthru
        _
      // Predicated region
      $region17: #{_lambda_.2} parent=11 // pred_check
        %p165 = pneg %p79
      $region18: #{_lambda_.2} parent=11 // pred_check_branch
        %167 = sbr.rel (%p165) target = $region20
      $region19: #{_lambda_.2} parent=11 // pred_region
        _
      $region20: #{_lambda_.2} parent=11 // pred_fallthru
        _
      // Predicated region
      $region21: #{_lambda_.2} parent=11 // pred_check
        %p168 = pneg %p100
      $region22: #{_lambda_.2} parent=11 // pred_check_branch
        %170 = sbr.rel (%p168) target = $region24
      $region23: #{_lambda_.2} parent=11 // pred_region
        _
      $region24: #{_lambda_.2} parent=11 // pred_fallthru
        _
      // Predicated region
      $region25: #{_lambda_.2} parent=11 // pred_check
        %p171 = pneg %p121
      $region26: #{_lambda_.2} parent=11 // pred_check_branch
        %173 = sbr.rel (%p171) target = $region28
      $region27: #{_lambda_.2} parent=11 // pred_region
        _
      $region28: #{_lambda_.2} parent=11 // pred_fallthru
        _
    $region12: #{_lambda_.2} parent=5 // pred_fallthru
      _
    %p174 = scmp.lt.s32.totalorder %s11, 2
    // Predicated region
    $region29: #{_lambda_.2} parent=5 // pred_check
      %p175 = pneg %p174
    $region30: #{_lambda_.2} parent=5 // pred_check_branch
      %177 = sbr.rel (%p175) target = $region32
    $region31: #{_lambda_.2} parent=5 // pred_region
      // Predicated region
      $region33: #{_lambda_.2} parent=31 // pred_check
        %p178 = pneg %p31
      $region34: #{_lambda_.2} parent=31 // pred_check_branch
        %180 = sbr.rel (%p178) target = $region36
      $region35: #{_lambda_.2} parent=31 // pred_region
        %p181 = scmp.lt.s32.totalorder %s11, 1
        %s182 = scalar_select %p181, %s11, 1
        %s183 = smul.addr %s182, 32
        %s184 = smul.addr %s183, 8
        %s185 = scalar_lea.vmem %s0, %s184
      $region36: #{_lambda_.2} parent=31 // pred_fallthru
        _
    $region32: #{_lambda_.2} parent=5 // pred_fallthru
      _
    %p186 = scmp.le.s32.totalorder 1, %s11
    %p187 = scmp.lt.s32.totalorder %s11, 3
    %p188 = pnand %p186, %p187
    %p189 = pneg %p188
    // Predicated region
    $region37: #{_lambda_.2} parent=5 // pred_check
      _
    $region38: #{_lambda_.2} parent=5 // pred_check_branch
      %191 = sbr.rel (%p188) target = $region40
    $region39: #{_lambda_.2} parent=5 // pred_region
      %s192 = ssub.s32 %s11, 1
      %p193 = scmp.lt.s32.totalorder %s16, 1
      %s194 = scalar_select %p193, %s16, 1
      %s195 = smul.addr %s194, 32
      %s196 = smul.addr %s195, 8
      %s197 = scalar_lea.vmem %s0, %s196
      %p198 = pneg %p37
      %p199 = pneg %p34
      %p200 = pneg %p58
      %p201 = pneg %p55
      %p202 = pneg %p79
      %p203 = pneg %p76
      %p204 = pneg %p100
      %p205 = pneg %p97
      %p206 = pneg %p121
      %p207 = pneg %p118
      %p208 = pneg %p147
      %p209 = pneg %p144
      %p210 = scmp.lt.s32.totalorder %s16, 1
      %s211 = scalar_select %p210, %s16, 1
      %s212 = scalar_lea.vmem %s5, %s211
      %p213 = scmp.lt.s32.totalorder %s16, 1
      %s214 = scalar_select %p213, %s16, 1
      %s215 = smul.addr %s214, 32
      %s216 = smul.addr %s215, 8
      %s217 = scalar_lea.vmem %s0, %s216
      %p218 = scmp.lt.s32.totalorder %s16, 1
      %s219 = scalar_select %p218, %s16, 1
      %s220 = scalar_lea.vmem %s5, %s219
      %v221 = vld [vmem:[%s217] sm:$0xff]
      %v222 = vld [vmem:[%s217 + $0x8] sm:$0xff]
      %v223 = vld [vmem:[%s217 + $0x10] sm:$0xff]
      %v224 = vld [vmem:[%s217 + $0x18] sm:$0xff]
      %v225 = vld [vmem:[%s217 + $0x20] sm:$0xff]
      %v226 = vld [vmem:[%s217 + $0x28] sm:$0xff]
      %v227 = vld [vmem:[%s217 + $0x30] sm:$0xff]
      %v228 = vld [vmem:[%s217 + $0x38] sm:$0xff]
      %v229 = vld [vmem:[%s217 + $0x40] sm:$0xff]
      %v230 = vld [vmem:[%s217 + $0x48] sm:$0xff]
      %v231 = vld [vmem:[%s217 + $0x50] sm:$0xff]
      %v232 = vld [vmem:[%s217 + $0x58] sm:$0xff]
      %v233 = vld [vmem:[%s217 + $0x60] sm:$0xff]
      %v234 = vld [vmem:[%s217 + $0x68] sm:$0xff]
      %v235 = vld [vmem:[%s217 + $0x70] sm:$0xff]
      %v236 = vld [vmem:[%s217 + $0x78] sm:$0xff]
      %v237 = vld [vmem:[%s217 + $0x80] sm:$0xff]
      %v238 = vld [vmem:[%s217 + $0x88] sm:$0xff]
      %v239 = vld [vmem:[%s217 + $0x90] sm:$0xff]
      %v240 = vld [vmem:[%s217 + $0x98] sm:$0xff]
      %v241 = vld [vmem:[%s217 + $0xa0] sm:$0xff]
      %v242 = vld [vmem:[%s217 + $0xa8] sm:$0xff]
      %v243 = vld [vmem:[%s217 + $0xb0] sm:$0xff]
      %v244 = vld [vmem:[%s217 + $0xb8] sm:$0xff]
      %v245 = vld [vmem:[%s217 + $0xc0] sm:$0xff]
      %v246 = vld [vmem:[%s217 + $0xc8] sm:$0xff]
      %v247 = vld [vmem:[%s217 + $0xd0] sm:$0xff]
      %v248 = vld [vmem:[%s217 + $0xd8] sm:$0xff]
      %v249 = vld [vmem:[%s217 + $0xe0] sm:$0xff]
      %v250 = vld [vmem:[%s217 + $0xe8] sm:$0xff]
      %v251 = vld [vmem:[%s217 + $0xf0] sm:$0xff]
      %v252 = vld [vmem:[%s217 + $0xf8] sm:$0xff]
      %vm253 = vcmask 31744
      %v254 = vsel %vm253, %v221, 0.0
      %v255 = vsel %vm253, %v222, 0.0
      %v256 = vadd.f32 %v254, %v255
      %v257 = vsel %vm253, %v223, 0.0
      %v258 = vadd.f32 %v256, %v257
      %v259 = vsel %vm253, %v224, 0.0
      %v260 = vadd.f32 %v258, %v259
      %v261 = vsel %vm253, %v225, 0.0
      %v262 = vadd.f32 %v260, %v261
      %v263 = vsel %vm253, %v226, 0.0
      %v264 = vadd.f32 %v262, %v263
      %v265 = vsel %vm253, %v227, 0.0
      %v266 = vadd.f32 %v264, %v265
      %v267 = vsel %vm253, %v228, 0.0
      %v268 = vadd.f32 %v266, %v267
      %v269 = vsel %vm253, %v229, 0.0
      %v270 = vadd.f32 %v268, %v269
      %v271 = vsel %vm253, %v230, 0.0
      %v272 = vadd.f32 %v270, %v271
      %v273 = vsel %vm253, %v231, 0.0
      %v274 = vadd.f32 %v272, %v273
      %v275 = vsel %vm253, %v232, 0.0
      %v276 = vadd.f32 %v274, %v275
      %v277 = vsel %vm253, %v233, 0.0
      %v278 = vadd.f32 %v276, %v277
      %v279 = vsel %vm253, %v234, 0.0
      %v280 = vadd.f32 %v278, %v279
      %v281 = vsel %vm253, %v235, 0.0
      %v282 = vadd.f32 %v280, %v281
      %v283 = vsel %vm253, %v236, 0.0
      %v284 = vadd.f32 %v282, %v283
      %v285 = vsel %vm253, %v237, 0.0
      %v286 = vadd.f32 %v284, %v285
      %v287 = vsel %vm253, %v238, 0.0
      %v288 = vadd.f32 %v286, %v287
      %v289 = vsel %vm253, %v239, 0.0
      %v290 = vadd.f32 %v288, %v289
      %v291 = vsel %vm253, %v240, 0.0
      %v292 = vadd.f32 %v290, %v291
      %v293 = vsel %vm253, %v241, 0.0
      %v294 = vadd.f32 %v292, %v293
      %v295 = vsel %vm253, %v242, 0.0
      %v296 = vadd.f32 %v294, %v295
      %v297 = vsel %vm253, %v243, 0.0
      %v298 = vadd.f32 %v296, %v297
      %v299 = vsel %vm253, %v244, 0.0
      %v300 = vadd.f32 %v298, %v299
      %v301 = vsel %vm253, %v245, 0.0
      %v302 = vadd.f32 %v300, %v301
      %v303 = vsel %vm253, %v246, 0.0
      %v304 = vadd.f32 %v302, %v303
      %v305 = vsel %vm253, %v247, 0.0
      %v306 = vadd.f32 %v304, %v305
      %v307 = vsel %vm253, %v248, 0.0
      %v308 = vadd.f32 %v306, %v307
      %v309 = vsel %vm253, %v249, 0.0
      %v310 = vadd.f32 %v308, %v309
      %v311 = vsel %vm253, %v250, 0.0
      %v312 = vadd.f32 %v310, %v311
      %v313 = vsel %vm253, %v251, 0.0
      %v314 = vadd.f32 %v312, %v313
      %v315 = vsel %vm253, %v252, 0.0
      %v316 = vadd.f32 %v314, %v315
      %v317 = vrot.slane %v316, 4
      %v318 = vadd.f32 %v316, %v317
      %v319 = vrot.slane %v318, 2
      %v320 = vadd.f32 %v318, %v319
      %v321 = vrot.slane %v320, 1
      %v322 = vadd.f32 %v320, %v321
      %v323 = vrcp.pop 256.0
      %v324 = vmul.f32 %v322, %v323
      %v325 = vld [vmem:[%s1] sm:$0xf]
      %v327 = vsel %vm253, %v324, 0
      %vm329 = vcmask 1043456
      %v331 = vsel %vm329, %v325, 0
      %333 = vmatprep.subr.mxu0 0.0
      %334 = vmatpush1.msra.mxu0 0.0
      %335 = vmatprep.subr.mxu0 0.0
      %336 = vmatpush1.msra.mxu0 0.0
      %337 = vmatprep.subr.mxu0 0.0
      %338 = vmatpush1.msra.mxu0 0.0
      %339 = vmatprep.subr.mxu0 0.0
      %340 = vmatpush1.msra.mxu0 0.0
      %341 = vmatprep.subr.mxu0 0.0
      %342 = vmatpush1.msra.mxu0 0.0
      %343 = vmatprep.subr.mxu0 0.0
      %344 = vmatpush1.msra.mxu0 0.0
      %345 = vmatprep.subr.mxu0 0.0
      %346 = vmatpush1.msra.mxu0 0.0
      %347 = vmatprep.subr.mxu0 0.0
      %348 = vmatpush1.msra.mxu0 0.0
      %349 = vmatprep.subr.mxu0 0.0
      %350 = vmatpush1.msra.mxu0 0.0
      %351 = vmatprep.subr.mxu0 0.0
      %352 = vmatpush1.msra.mxu0 0.0
      %353 = vmatprep.subr.mxu0 0.0
      %354 = vmatpush1.msra.mxu0 0.0
      %355 = vmatprep.subr.mxu0 0.0
      %356 = vmatpush1.msra.mxu0 0.0
      %357 = vmatprep.subr.mxu0 0.0
      %358 = vmatpush1.msra.mxu0 0.0
      %359 = vmatprep.subr.mxu0 0.0
      %360 = vmatpush1.msra.mxu0 0.0
      %361 = vmatprep.subr.mxu0 0.0
      %362 = vmatpush1.msra.mxu0 0.0
      %363 = vmatprep.subr.mxu0 0.0
      %364 = vmatpush1.msra.mxu0 %v331
      %365 = vmatprep.subr.mxu0 0.0
      %366 = vmatpush2.msra.mxu0 0.0
      %367 = vmatprep.subr.mxu0 0.0
      %368 = vmatpush2.msra.mxu0 0.0
      %369 = vmatprep.subr.mxu0 0.0
      %370 = vmatpush2.msra.mxu0 0.0
      %371 = vmatprep.subr.mxu0 0.0
      %372 = vmatpush2.msra.mxu0 0.0
      %373 = vmatprep.subr.mxu0 0.0
      %374 = vmatpush2.msra.mxu0 0.0
      %375 = vmatprep.subr.mxu0 0.0
      %376 = vmatpush2.msra.mxu0 0.0
      %377 = vmatprep.subr.mxu0 0.0
      %378 = vmatpush2.msra.mxu0 0.0
      %379 = vmatprep.subr.mxu0 0.0
      %380 = vmatpush2.msra.mxu0 0.0
      %381 = vmatprep.subr.mxu0 0.0
      %382 = vmatpush2.msra.mxu0 0.0
      %383 = vmatprep.subr.mxu0 0.0
      %384 = vmatpush2.msra.mxu0 0.0
      %385 = vmatprep.subr.mxu0 0.0
      %386 = vmatpush2.msra.mxu0 0.0
      %387 = vmatprep.subr.mxu0 0.0
      %388 = vmatpush2.msra.mxu0 0.0
      %389 = vmatprep.subr.mxu0 0.0
      %390 = vmatpush2.msra.mxu0 0.0
      %391 = vmatprep.subr.mxu0 0.0
      %392 = vmatpush2.msra.mxu0 0.0
      %393 = vmatprep.subr.mxu0 0.0
      %394 = vmatpush2.msra.mxu0 0.0
      %395 = vmatprep.subr.mxu0 0.0
      %396 = vmatpush2.msra.mxu0 0.0
      %397 = vmatprep.mubr.f32.mxu0 0.0
      %398 = vmatmul.mubr.f32.gmra.mxu0 %v327
      %v399 = vpop.f32.mrf.mxu0
      %v400 = vadd.f32 0.0, %v399
      %v401 = vpop.f32.mrf.mxu0
      %402 = vdwg.mxu0
      %v403 = vld [vmem:[%s2] sm:$0x1]
      %v404 = vmul.f32 %v400, %v403
      %v405 = vld [vmem:[%s3] sm:$0x1]
      %v406 = vadd.f32 %v404, %v405
      %v407 = vmax.f32 %v406, 0.0
      %v408 = vld [vmem:[%s4] sm:$0xff]
      %v409 = vld [vmem:[%s4 + $0x8] sm:$0xff]
      %v410 = vld [vmem:[%s4 + $0x10] sm:$0xff]
      %v411 = vld [vmem:[%s4 + $0x18] sm:$0xff]
      %vm412 = vcmask 261120
      %v414 = vsel %vm412, %v407, 0
      %416 = vmatprep.subr.mxu0 0.0
      %417 = vmatpush1.msra.mxu0 0.0
      %418 = vmatprep.subr.mxu0 0.0
      %419 = vmatpush1.msra.mxu0 0.0
      %420 = vmatprep.subr.mxu0 0.0
      %421 = vmatpush1.msra.mxu0 0.0
      %422 = vmatprep.subr.mxu0 0.0
      %423 = vmatpush1.msra.mxu0 0.0
      %424 = vmatprep.subr.mxu0 0.0
      %425 = vmatpush1.msra.mxu0 0.0
      %426 = vmatprep.subr.mxu0 0.0
      %427 = vmatpush1.msra.mxu0 0.0
      %428 = vmatprep.subr.mxu0 0.0
      %429 = vmatpush1.msra.mxu0 0.0
      %430 = vmatprep.subr.mxu0 0.0
      %431 = vmatpush1.msra.mxu0 0.0
      %432 = vmatprep.subr.mxu0 0.0
      %433 = vmatpush1.msra.mxu0 0.0
      %434 = vmatprep.subr.mxu0 0.0
      %435 = vmatpush1.msra.mxu0 0.0
      %436 = vmatprep.subr.mxu0 0.0
      %437 = vmatpush1.msra.mxu0 0.0
      %438 = vmatprep.subr.mxu0 0.0
      %439 = vmatpush1.msra.mxu0 0.0
      %440 = vmatprep.subr.mxu0 0.0
      %441 = vmatpush1.msra.mxu0 %v411
      %442 = vmatprep.subr.mxu0 0.0
      %443 = vmatpush1.msra.mxu0 %v410
      %444 = vmatprep.subr.mxu0 0.0
      %445 = vmatpush1.msra.mxu0 %v409
      %446 = vmatprep.subr.mxu0 0.0
      %447 = vmatpush1.msra.mxu0 %v408
      %448 = vmatprep.subr.mxu0 0.0
      %449 = vmatpush2.msra.mxu0 0.0
      %450 = vmatprep.subr.mxu0 0.0
      %451 = vmatpush2.msra.mxu0 0.0
      %452 = vmatprep.subr.mxu0 0.0
      %453 = vmatpush2.msra.mxu0 0.0
      %454 = vmatprep.subr.mxu0 0.0
      %455 = vmatpush2.msra.mxu0 0.0
      %456 = vmatprep.subr.mxu0 0.0
      %457 = vmatpush2.msra.mxu0 0.0
      %458 = vmatprep.subr.mxu0 0.0
      %459 = vmatpush2.msra.mxu0 0.0
      %460 = vmatprep.subr.mxu0 0.0
      %461 = vmatpush2.msra.mxu0 0.0
      %462 = vmatprep.subr.mxu0 0.0
      %463 = vmatpush2.msra.mxu0 0.0
      %464 = vmatprep.subr.mxu0 0.0
      %465 = vmatpush2.msra.mxu0 0.0
      %466 = vmatprep.subr.mxu0 0.0
      %467 = vmatpush2.msra.mxu0 0.0
      %468 = vmatprep.subr.mxu0 0.0
      %469 = vmatpush2.msra.mxu0 0.0
      %470 = vmatprep.subr.mxu0 0.0
      %471 = vmatpush2.msra.mxu0 0.0
      %472 = vmatprep.subr.mxu0 0.0
      %473 = vmatpush2.msra.mxu0 0.0
      %474 = vmatprep.subr.mxu0 0.0
      %475 = vmatpush2.msra.mxu0 0.0
      %476 = vmatprep.subr.mxu0 0.0
      %477 = vmatpush2.msra.mxu0 0.0
      %478 = vmatprep.subr.mxu0 0.0
      %479 = vmatpush2.msra.mxu0 0.0
      %480 = vmatprep.mubr.f32.mxu0 0.0
      %481 = vmatmul.mubr.f32.gmra.mxu0 %v414
      %v482 = vpop.f32.mrf.mxu0
      %v483 = vadd.f32 0.0, %v482
      %v484 = vpop.f32.mrf.mxu0
      %485 = vdwg.mxu0
      %vm486 = vcmask 253952
      %487 = vst.msk [vmem:[%s220] sm:$0x1] %vm486, %v483
      %p488 = scmp.lt.s32.totalorder %s16, 1
      %s489 = scalar_select %p488, %s16, 1
      %s490 = scalar_lea.vmem %s5, %s489
      // Predicated region
      $region41: #{_lambda_.2} parent=39 // pred_check
        %p491 = pneg %p144
      $region42: #{_lambda_.2} parent=39 // pred_check_branch
        %493 = sbr.rel (%p491) target = $region44
      $region43: #{_lambda_.2} parent=39 // pred_region
        _
      $region44: #{_lambda_.2} parent=39 // pred_fallthru
        _
    $region40: #{_lambda_.2} parent=5 // pred_fallthru
      _
    %p494 = scmp.le.s32.totalorder 2, %s11
    // Predicated region
    $region45: #{_lambda_.2} parent=5 // pred_check
      %p495 = pneg %p494
    $region46: #{_lambda_.2} parent=5 // pred_check_branch
      %497 = sbr.rel (%p495) target = $region48
    $region47: #{_lambda_.2} parent=5 // pred_region
      %s498 = ssub.s32 %s11, 2
      // Predicated region
      $region49: #{_lambda_.2} parent=47 // pred_check
        %p499 = pneg %p150
      $region50: #{_lambda_.2} parent=47 // pred_check_branch
        %501 = sbr.rel (%p499) target = $region52
      $region51: #{_lambda_.2} parent=47 // pred_region
        %p502 = scmp.lt.s32.totalorder %s17, 1
        %s503 = scalar_select %p502, %s17, 1
        %s504 = scalar_lea.vmem %s5, %s503
      $region52: #{_lambda_.2} parent=47 // pred_fallthru
        _
    $region48: #{_lambda_.2} parent=5 // pred_fallthru
      _
  $region6: #{_lambda_.2} parent=0 // loop_footer
    %s15 = sadd.s32 1, %s11
  $region7: #{_lambda_.2} parent=0 // loop_footer_branch
    %10 = sbr.rel target = $region3
  $region8: #{_lambda_.2} parent=0 // loop_exit
    _

// kernel: _lambda_.3
$region0: #{_lambda_.3}
  #allocation0 [shape = 'u32[]', space=smem, size = 0x4, offset = 0x4, fixed_abs, tag = 'smem constant byte address 0x4 - core index']
  #allocation1 [shape = 'u32[144,128]{1,0:T(1,128)}', space=vmem, size = 0x12000, scoped, tag = 'internal scratch']
  %s0 = inlined_call_operand.vmem [shape: bf16[2,24,22,4], index: 0, kind: input, shape index: {}, may-alias: {0,1}]
  %s1 = inlined_call_operand.vmem [shape: bf16[2,24,22,4], index: 1, kind: input, shape index: {}, may-alias: {0,1}]
  %s2 = inlined_call_operand.vmem [shape: f32[2,1,32], index: 2, kind: input, shape index: {}]
  %s3 = inlined_call_operand.vmem [shape: bf16[4,32], index: 3, kind: input, shape index: {}]
  %s4 = inlined_call_operand.vmem [shape: f32[1,32], index: 4, kind: input, shape index: {}]
  %s5 = inlined_call_operand.vmem [shape: f32[1,32], index: 5, kind: input, shape index: {}]
  %s6 = inlined_call_operand.vmem [shape: bf16[36,32], index: 6, kind: input, shape index: {}]
  %s7 = inlined_call_operand.vmem [shape: f32[1,32], index: 7, kind: input, shape index: {}]
  %s8 = inlined_call_operand.vmem [shape: f32[1,32], index: 8, kind: input, shape index: {}]
  %s9 = inlined_call_operand.vmem [shape: bf16[36,32], index: 9, kind: input, shape index: {}]
  %s10 = inlined_call_operand.vmem [shape: f32[1,32], index: 10, kind: input, shape index: {}]
  %s11 = inlined_call_operand.vmem [shape: f32[1,32], index: 11, kind: input, shape index: {}]
  %s12 = inlined_call_operand.vmem [shape: bf16[36,32], index: 12, kind: input, shape index: {}]
  %s13 = inlined_call_operand.vmem [shape: f32[1,32], index: 13, kind: input, shape index: {}]
  %s14 = inlined_call_operand.vmem [shape: f32[1,32], index: 14, kind: input, shape index: {}]
  %s15 = inlined_call_operand.vmem [shape: bf16[160,32], index: 15, kind: input, shape index: {}]
  %s16 = inlined_call_operand.vmem [shape: f32[1,32], index: 16, kind: input, shape index: {}]
  %s17 = inlined_call_operand.vmem [shape: f32[1,32], index: 17, kind: input, shape index: {}]
  %s18 = inlined_call_operand.hbm [shape: f32[2,16,16,32], index: 18, kind: output, shape index: {}]
  %s19 = sld [smem:[#allocation0]]
  $region105: #{_lambda_.3} parent=0
    _
  %s21 = ssub.s32 1, %s19
  %s22 = scalar_select 0, %s21, %s19
  $region1: #{_lambda_.3} parent=0
    #allocation2 [shape = 'u8[131072]{0}', space=vmem, size = 0x20000, scoped, tag = 'output window, operand 0']
    #allocation3 [shape = 's32[2]{0}', space=sflag, size = 0x8, scoped, tag = 'scoped memory for _lambda_.3']
    %23 = vsyncpa [#allocation3], 0
    %s24 = scalar_lea.sflag [#allocation3], 1
    %25 = vsyncpa %s24, 0
    loop: start=0, step=1, limit=6
    $region2: #{_lambda_.3} parent=1 // loop_pre_header
      _
    $region3: #{_lambda_.3} parent=1 // loop_header
      %s27 = sphi 0, %s31
      %p28 = scmp.ge.s32.totalorder %s27, 6
      %s34 = sphi 0, %s46
      %s35 = sphi 0, %s42
      %s36 = sphi 0, %s34
      %s37 = sphi 0, %s35
      %s38 = sphi 0, %s36
      %s39 = sphi 0, %s37
      %s51 = sphi 0, %s53
      %s54 = sphi 0, %s51
      %s55 = sphi 0, %s54
      %s71 = sphi 0, %s55
      %s81 = sphi 0, %s83
      %s84 = sphi 0, %s81
      %s85 = sphi 0, %s84
      %s101 = sphi 0, %s85
      %s107 = sphi 0, %s109
      %s110 = sphi 0, %s107
      %s111 = sphi 0, %s110
      %s127 = sphi 0, %s111
      %s131 = sphi 0, %s131
      %s133 = sphi 0, %s131
      %s134 = sphi 0, %s133
      %s148 = sphi 0, %s134
      %s152 = sphi 0, %s152
      %s154 = sphi 0, %s152
      %s155 = sphi 0, %s154
      %s169 = sphi 0, %s155
      %s173 = sphi 0, %s173
      %s175 = sphi 0, %s173
      %s176 = sphi 0, %s175
      %s190 = sphi 0, %s176
      %s194 = sphi 0, %s194
      %s196 = sphi 0, %s194
      %s197 = sphi 0, %s196
      %s211 = sphi 0, %s197
      %s215 = sphi 0, %s215
      %s217 = sphi 0, %s215
      %s218 = sphi 0, %s217
      %s232 = sphi 0, %s218
      %s236 = sphi 0, %s236
      %s238 = sphi 0, %s236
      %s239 = sphi 0, %s238
      %s253 = sphi 0, %s239
      %s257 = sphi 0, %s257
      %s259 = sphi 0, %s257
      %s260 = sphi 0, %s259
      %s274 = sphi 0, %s260
      %s278 = sphi 0, %s278
      %s280 = sphi 0, %s278
      %s281 = sphi 0, %s280
      %s295 = sphi 0, %s281
      %s299 = sphi 0, %s299
      %s301 = sphi 0, %s299
      %s302 = sphi 0, %s301
      %s316 = sphi 0, %s302
      %s320 = sphi 0, %s320
      %s322 = sphi 0, %s320
      %s323 = sphi 0, %s322
      %s337 = sphi 0, %s323
      %s341 = sphi 0, %s341
      %s343 = sphi 0, %s341
      %s344 = sphi 0, %s343
      %s358 = sphi 0, %s344
      %s362 = sphi 0, %s362
      %s364 = sphi 0, %s362
      %s365 = sphi 0, %s364
      %s379 = sphi 0, %s365
      %s383 = sphi 0, %s383
      %s385 = sphi 0, %s383
      %s386 = sphi 0, %s385
      %s400 = sphi 0, %s386
      %s404 = sphi 0, %s404
      %s406 = sphi 0, %s404
      %s407 = sphi 0, %s406
      %s421 = sphi 0, %s407
      %s425 = sphi 0, %s425
      %s427 = sphi 0, %s425
      %s428 = sphi 0, %s427
      %s442 = sphi 0, %s428
      %s450 = sphi 0, %s452
      %s453 = sphi 0, %s450
      %s454 = sphi 0, %s453
      %s470 = sphi 0, %s454
    $region4: #{_lambda_.3} parent=1 // loop_header_branch
      %30 = sbr.rel (%p28) target = $region8
    $region5: #{_lambda_.3} parent=1 // loop_body
      %s32 = ssub.s32 %s27, 1
      %s33 = ssub.s32 %s27, 2
      %s40 = sadd.s32 1, %s35
      %p41 = scmp.ge.s32.totalorder %s40, 2
      %s42 = scalar_select %p41, 0, %s40
      %s43 = sadd.s32 1, %s34
      %s44 = scalar_select %p41, %s43, %s34
      %p45 = scmp.ge.s32.totalorder %s44, 2
      %s46 = scalar_select %p45, 0, %s44
      %s47 = ssub.s32 %s34, %s46
      %s48 = ssub.s32 %s35, %s42
      %s49 = sor.u32 %s47, %s48
      %p50 = scmp.eq.s32.totalorder %s49, 0
      %s52 = sadd.s32 %s51, 1
      %s53 = scalar_select %p50, %s51, %s52
      %p56 = pneg %p50
      %p57 = scmp.eq.s32.totalorder %s27, 3
      %p58 = por %p56, %p57
      %p59 = scmp.ne.s32.totalorder %s51, %s54
      %p60 = scmp.eq.s32.totalorder %s27, 0
      %p61 = por %p59, %p60
      %p62 = scmp.ne.s32.totalorder %s51, %s54
      %p63 = scmp.eq.s32.totalorder %s32, 3
      %p64 = por %p62, %p63
      %p65 = scmp.ne.s32.totalorder %s54, %s55
      %p66 = scmp.eq.s32.totalorder %s32, 0
      %p67 = por %p65, %p66
      %p68 = scmp.ne.s32.totalorder %s54, %s55
      %p69 = scmp.eq.s32.totalorder %s33, 3
      %p70 = por %p68, %p69
      %p72 = scmp.ne.s32.totalorder %s55, %s71
      %p73 = scmp.eq.s32.totalorder %s33, 0
      %p74 = por %p72, %p73
      %s75 = sadd.s32 %s35, 1
      %s76 = sadd.s32 %s42, 1
      %s77 = ssub.s32 %s34, %s46
      %s78 = ssub.s32 %s75, %s76
      %s79 = sor.u32 %s77, %s78
      %p80 = scmp.eq.s32.totalorder %s79, 0
      %s82 = sadd.s32 %s81, 1
      %s83 = scalar_select %p80, %s81, %s82
      %p86 = pneg %p80
      %p87 = scmp.eq.s32.totalorder %s27, 3
      %p88 = por %p86, %p87
      %p89 = scmp.ne.s32.totalorder %s81, %s84
      %p90 = scmp.eq.s32.totalorder %s27, 0
      %p91 = por %p89, %p90
      %p92 = scmp.ne.s32.totalorder %s81, %s84
      %p93 = scmp.eq.s32.totalorder %s32, 3
      %p94 = por %p92, %p93
      %p95 = scmp.ne.s32.totalorder %s84, %s85
      %p96 = scmp.eq.s32.totalorder %s32, 0
      %p97 = por %p95, %p96
      %p98 = scmp.ne.s32.totalorder %s84, %s85
      %p99 = scmp.eq.s32.totalorder %s33, 3
      %p100 = por %p98, %p99
      %p102 = scmp.ne.s32.totalorder %s85, %s101
      %p103 = scmp.eq.s32.totalorder %s33, 0
      %p104 = por %p102, %p103
      %s105 = ssub.s32 %s34, %s46
      %p106 = scmp.eq.s32.totalorder %s105, 0
      %s108 = sadd.s32 %s107, 1
      %s109 = scalar_select %p106, %s107, %s108
      %p112 = pneg %p106
      %p113 = scmp.eq.s32.totalorder %s27, 3
      %p114 = por %p112, %p113
      %p115 = scmp.ne.s32.totalorder %s107, %s110
      %p116 = scmp.eq.s32.totalorder %s27, 0
      %p117 = por %p115, %p116
      %p118 = scmp.ne.s32.totalorder %s107, %s110
      %p119 = scmp.eq.s32.totalorder %s32, 3
      %p120 = por %p118, %p119
      %p121 = scmp.ne.s32.totalorder %s110, %s111
      %p122 = scmp.eq.s32.totalorder %s32, 0
      %p123 = por %p121, %p122
      %p124 = scmp.ne.s32.totalorder %s110, %s111
      %p125 = scmp.eq.s32.totalorder %s33, 3
      %p126 = por %p124, %p125
      %p128 = scmp.ne.s32.totalorder %s111, %s127
      %p129 = scmp.eq.s32.totalorder %s33, 0
      %p130 = por %p128, %p129
      %s132 = sadd.s32 %s131, 1
      %p135 = scmp.eq.s32.totalorder %s27, 3
      %p136 = scmp.ne.s32.totalorder %s131, %s133
      %p137 = scmp.eq.s32.totalorder %s27, 0
      %p138 = por %p136, %p137
      %p139 = scmp.ne.s32.totalorder %s131, %s133
      %p140 = scmp.eq.s32.totalorder %s32, 3
      %p141 = por %p139, %p140
      %p142 = scmp.ne.s32.totalorder %s133, %s134
      %p143 = scmp.eq.s32.totalorder %s32, 0
      %p144 = por %p142, %p143
      %p145 = scmp.ne.s32.totalorder %s133, %s134
      %p146 = scmp.eq.s32.totalorder %s33, 3
      %p147 = por %p145, %p146
      %p149 = scmp.ne.s32.totalorder %s134, %s148
      %p150 = scmp.eq.s32.totalorder %s33, 0
      %p151 = por %p149, %p150
      %s153 = sadd.s32 %s152, 1
      %p156 = scmp.eq.s32.totalorder %s27, 3
      %p157 = scmp.ne.s32.totalorder %s152, %s154
      %p158 = scmp.eq.s32.totalorder %s27, 0
      %p159 = por %p157, %p158
      %p160 = scmp.ne.s32.totalorder %s152, %s154
      %p161 = scmp.eq.s32.totalorder %s32, 3
      %p162 = por %p160, %p161
      %p163 = scmp.ne.s32.totalorder %s154, %s155
      %p164 = scmp.eq.s32.totalorder %s32, 0
      %p165 = por %p163, %p164
      %p166 = scmp.ne.s32.totalorder %s154, %s155
      %p167 = scmp.eq.s32.totalorder %s33, 3
      %p168 = por %p166, %p167
      %p170 = scmp.ne.s32.totalorder %s155, %s169
      %p171 = scmp.eq.s32.totalorder %s33, 0
      %p172 = por %p170, %p171
      %s174 = sadd.s32 %s173, 1
      %p177 = scmp.eq.s32.totalorder %s27, 3
      %p178 = scmp.ne.s32.totalorder %s173, %s175
      %p179 = scmp.eq.s32.totalorder %s27, 0
      %p180 = por %p178, %p179
      %p181 = scmp.ne.s32.totalorder %s173, %s175
      %p182 = scmp.eq.s32.totalorder %s32, 3
      %p183 = por %p181, %p182
      %p184 = scmp.ne.s32.totalorder %s175, %s176
      %p185 = scmp.eq.s32.totalorder %s32, 0
      %p186 = por %p184, %p185
      %p187 = scmp.ne.s32.totalorder %s175, %s176
      %p188 = scmp.eq.s32.totalorder %s33, 3
      %p189 = por %p187, %p188
      %p191 = scmp.ne.s32.totalorder %s176, %s190
      %p192 = scmp.eq.s32.totalorder %s33, 0
      %p193 = por %p191, %p192
      %s195 = sadd.s32 %s194, 1
      %p198 = scmp.eq.s32.totalorder %s27, 3
      %p199 = scmp.ne.s32.totalorder %s194, %s196
      %p200 = scmp.eq.s32.totalorder %s27, 0
      %p201 = por %p199, %p200
      %p202 = scmp.ne.s32.totalorder %s194, %s196
      %p203 = scmp.eq.s32.totalorder %s32, 3
      %p204 = por %p202, %p203
      %p205 = scmp.ne.s32.totalorder %s196, %s197
      %p206 = scmp.eq.s32.totalorder %s32, 0
      %p207 = por %p205, %p206
      %p208 = scmp.ne.s32.totalorder %s196, %s197
      %p209 = scmp.eq.s32.totalorder %s33, 3
      %p210 = por %p208, %p209
      %p212 = scmp.ne.s32.totalorder %s197, %s211
      %p213 = scmp.eq.s32.totalorder %s33, 0
      %p214 = por %p212, %p213
      %s216 = sadd.s32 %s215, 1
      %p219 = scmp.eq.s32.totalorder %s27, 3
      %p220 = scmp.ne.s32.totalorder %s215, %s217
      %p221 = scmp.eq.s32.totalorder %s27, 0
      %p222 = por %p220, %p221
      %p223 = scmp.ne.s32.totalorder %s215, %s217
      %p224 = scmp.eq.s32.totalorder %s32, 3
      %p225 = por %p223, %p224
      %p226 = scmp.ne.s32.totalorder %s217, %s218
      %p227 = scmp.eq.s32.totalorder %s32, 0
      %p228 = por %p226, %p227
      %p229 = scmp.ne.s32.totalorder %s217, %s218
      %p230 = scmp.eq.s32.totalorder %s33, 3
      %p231 = por %p229, %p230
      %p233 = scmp.ne.s32.totalorder %s218, %s232
      %p234 = scmp.eq.s32.totalorder %s33, 0
      %p235 = por %p233, %p234
      %s237 = sadd.s32 %s236, 1
      %p240 = scmp.eq.s32.totalorder %s27, 3
      %p241 = scmp.ne.s32.totalorder %s236, %s238
      %p242 = scmp.eq.s32.totalorder %s27, 0
      %p243 = por %p241, %p242
      %p244 = scmp.ne.s32.totalorder %s236, %s238
      %p245 = scmp.eq.s32.totalorder %s32, 3
      %p246 = por %p244, %p245
      %p247 = scmp.ne.s32.totalorder %s238, %s239
      %p248 = scmp.eq.s32.totalorder %s32, 0
      %p249 = por %p247, %p248
      %p250 = scmp.ne.s32.totalorder %s238, %s239
      %p251 = scmp.eq.s32.totalorder %s33, 3
      %p252 = por %p250, %p251
      %p254 = scmp.ne.s32.totalorder %s239, %s253
      %p255 = scmp.eq.s32.totalorder %s33, 0
      %p256 = por %p254, %p255
      %s258 = sadd.s32 %s257, 1
      %p261 = scmp.eq.s32.totalorder %s27, 3
      %p262 = scmp.ne.s32.totalorder %s257, %s259
      %p263 = scmp.eq.s32.totalorder %s27, 0
      %p264 = por %p262, %p263
      %p265 = scmp.ne.s32.totalorder %s257, %s259
      %p266 = scmp.eq.s32.totalorder %s32, 3
      %p267 = por %p265, %p266
      %p268 = scmp.ne.s32.totalorder %s259, %s260
      %p269 = scmp.eq.s32.totalorder %s32, 0
      %p270 = por %p268, %p269
      %p271 = scmp.ne.s32.totalorder %s259, %s260
      %p272 = scmp.eq.s32.totalorder %s33, 3
      %p273 = por %p271, %p272
      %p275 = scmp.ne.s32.totalorder %s260, %s274
      %p276 = scmp.eq.s32.totalorder %s33, 0
      %p277 = por %p275, %p276
      %s279 = sadd.s32 %s278, 1
      %p282 = scmp.eq.s32.totalorder %s27, 3
      %p283 = scmp.ne.s32.totalorder %s278, %s280
      %p284 = scmp.eq.s32.totalorder %s27, 0
      %p285 = por %p283, %p284
      %p286 = scmp.ne.s32.totalorder %s278, %s280
      %p287 = scmp.eq.s32.totalorder %s32, 3
      %p288 = por %p286, %p287
      %p289 = scmp.ne.s32.totalorder %s280, %s281
      %p290 = scmp.eq.s32.totalorder %s32, 0
      %p291 = por %p289, %p290
      %p292 = scmp.ne.s32.totalorder %s280, %s281
      %p293 = scmp.eq.s32.totalorder %s33, 3
      %p294 = por %p292, %p293
      %p296 = scmp.ne.s32.totalorder %s281, %s295
      %p297 = scmp.eq.s32.totalorder %s33, 0
      %p298 = por %p296, %p297
      %s300 = sadd.s32 %s299, 1
      %p303 = scmp.eq.s32.totalorder %s27, 3
      %p304 = scmp.ne.s32.totalorder %s299, %s301
      %p305 = scmp.eq.s32.totalorder %s27, 0
      %p306 = por %p304, %p305
      %p307 = scmp.ne.s32.totalorder %s299, %s301
      %p308 = scmp.eq.s32.totalorder %s32, 3
      %p309 = por %p307, %p308
      %p310 = scmp.ne.s32.totalorder %s301, %s302
      %p311 = scmp.eq.s32.totalorder %s32, 0
      %p312 = por %p310, %p311
      %p313 = scmp.ne.s32.totalorder %s301, %s302
      %p314 = scmp.eq.s32.totalorder %s33, 3
      %p315 = por %p313, %p314
      %p317 = scmp.ne.s32.totalorder %s302, %s316
      %p318 = scmp.eq.s32.totalorder %s33, 0
      %p319 = por %p317, %p318
      %s321 = sadd.s32 %s320, 1
      %p324 = scmp.eq.s32.totalorder %s27, 3
      %p325 = scmp.ne.s32.totalorder %s320, %s322
      %p326 = scmp.eq.s32.totalorder %s27, 0
      %p327 = por %p325, %p326
      %p328 = scmp.ne.s32.totalorder %s320, %s322
      %p329 = scmp.eq.s32.totalorder %s32, 3
      %p330 = por %p328, %p329
      %p331 = scmp.ne.s32.totalorder %s322, %s323
      %p332 = scmp.eq.s32.totalorder %s32, 0
      %p333 = por %p331, %p332
      %p334 = scmp.ne.s32.totalorder %s322, %s323
      %p335 = scmp.eq.s32.totalorder %s33, 3
      %p336 = por %p334, %p335
      %p338 = scmp.ne.s32.totalorder %s323, %s337
      %p339 = scmp.eq.s32.totalorder %s33, 0
      %p340 = por %p338, %p339
      %s342 = sadd.s32 %s341, 1
      %p345 = scmp.eq.s32.totalorder %s27, 3
      %p346 = scmp.ne.s32.totalorder %s341, %s343
      %p347 = scmp.eq.s32.totalorder %s27, 0
      %p348 = por %p346, %p347
      %p349 = scmp.ne.s32.totalorder %s341, %s343
      %p350 = scmp.eq.s32.totalorder %s32, 3
      %p351 = por %p349, %p350
      %p352 = scmp.ne.s32.totalorder %s343, %s344
      %p353 = scmp.eq.s32.totalorder %s32, 0
      %p354 = por %p352, %p353
      %p355 = scmp.ne.s32.totalorder %s343, %s344
      %p356 = scmp.eq.s32.totalorder %s33, 3
      %p357 = por %p355, %p356
      %p359 = scmp.ne.s32.totalorder %s344, %s358
      %p360 = scmp.eq.s32.totalorder %s33, 0
      %p361 = por %p359, %p360
      %s363 = sadd.s32 %s362, 1
      %p366 = scmp.eq.s32.totalorder %s27, 3
      %p367 = scmp.ne.s32.totalorder %s362, %s364
      %p368 = scmp.eq.s32.totalorder %s27, 0
      %p369 = por %p367, %p368
      %p370 = scmp.ne.s32.totalorder %s362, %s364
      %p371 = scmp.eq.s32.totalorder %s32, 3
      %p372 = por %p370, %p371
      %p373 = scmp.ne.s32.totalorder %s364, %s365
      %p374 = scmp.eq.s32.totalorder %s32, 0
      %p375 = por %p373, %p374
      %p376 = scmp.ne.s32.totalorder %s364, %s365
      %p377 = scmp.eq.s32.totalorder %s33, 3
      %p378 = por %p376, %p377
      %p380 = scmp.ne.s32.totalorder %s365, %s379
      %p381 = scmp.eq.s32.totalorder %s33, 0
      %p382 = por %p380, %p381
      %s384 = sadd.s32 %s383, 1
      %p387 = scmp.eq.s32.totalorder %s27, 3
      %p388 = scmp.ne.s32.totalorder %s383, %s385
      %p389 = scmp.eq.s32.totalorder %s27, 0
      %p390 = por %p388, %p389
      %p391 = scmp.ne.s32.totalorder %s383, %s385
      %p392 = scmp.eq.s32.totalorder %s32, 3
      %p393 = por %p391, %p392
      %p394 = scmp.ne.s32.totalorder %s385, %s386
      %p395 = scmp.eq.s32.totalorder %s32, 0
      %p396 = por %p394, %p395
      %p397 = scmp.ne.s32.totalorder %s385, %s386
      %p398 = scmp.eq.s32.totalorder %s33, 3
      %p399 = por %p397, %p398
      %p401 = scmp.ne.s32.totalorder %s386, %s400
      %p402 = scmp.eq.s32.totalorder %s33, 0
      %p403 = por %p401, %p402
      %s405 = sadd.s32 %s404, 1
      %p408 = scmp.eq.s32.totalorder %s27, 3
      %p409 = scmp.ne.s32.totalorder %s404, %s406
      %p410 = scmp.eq.s32.totalorder %s27, 0
      %p411 = por %p409, %p410
      %p412 = scmp.ne.s32.totalorder %s404, %s406
      %p413 = scmp.eq.s32.totalorder %s32, 3
      %p414 = por %p412, %p413
      %p415 = scmp.ne.s32.totalorder %s406, %s407
      %p416 = scmp.eq.s32.totalorder %s32, 0
      %p417 = por %p415, %p416
      %p418 = scmp.ne.s32.totalorder %s406, %s407
      %p419 = scmp.eq.s32.totalorder %s33, 3
      %p420 = por %p418, %p419
      %p422 = scmp.ne.s32.totalorder %s407, %s421
      %p423 = scmp.eq.s32.totalorder %s33, 0
      %p424 = por %p422, %p423
      %s426 = sadd.s32 %s425, 1
      %p429 = scmp.eq.s32.totalorder %s27, 3
      %p430 = scmp.ne.s32.totalorder %s425, %s427
      %p431 = scmp.eq.s32.totalorder %s27, 0
      %p432 = por %p430, %p431
      %p433 = scmp.ne.s32.totalorder %s425, %s427
      %p434 = scmp.eq.s32.totalorder %s32, 3
      %p435 = por %p433, %p434
      %p436 = scmp.ne.s32.totalorder %s427, %s428
      %p437 = scmp.eq.s32.totalorder %s32, 0
      %p438 = por %p436, %p437
      %p439 = scmp.ne.s32.totalorder %s427, %s428
      %p440 = scmp.eq.s32.totalorder %s33, 3
      %p441 = por %p439, %p440
      %p443 = scmp.ne.s32.totalorder %s428, %s442
      %p444 = scmp.eq.s32.totalorder %s33, 0
      %p445 = por %p443, %p444
      %s446 = ssub.s32 %s34, %s46
      %s447 = ssub.s32 %s35, %s42
      %s448 = sor.u32 %s446, %s447
      %p449 = scmp.eq.s32.totalorder %s448, 0
      %s451 = sadd.s32 %s450, 1
      %s452 = scalar_select %p449, %s450, %s451
      %p455 = pneg %p449
      %p456 = scmp.eq.s32.totalorder %s27, 3
      %p457 = por %p455, %p456
      %p458 = scmp.ne.s32.totalorder %s450, %s453
      %p459 = scmp.eq.s32.totalorder %s27, 0
      %p460 = por %p458, %p459
      %p461 = scmp.ne.s32.totalorder %s450, %s453
      %p462 = scmp.eq.s32.totalorder %s32, 3
      %p463 = por %p461, %p462
      %p464 = scmp.ne.s32.totalorder %s453, %s454
      %p465 = scmp.eq.s32.totalorder %s32, 0
      %p466 = por %p464, %p465
      %p467 = scmp.ne.s32.totalorder %s453, %s454
      %p468 = scmp.eq.s32.totalorder %s33, 3
      %p469 = por %p467, %p468
      %p471 = scmp.ne.s32.totalorder %s454, %s470
      %p472 = scmp.eq.s32.totalorder %s33, 0
      %p473 = por %p471, %p472
      %p474 = scmp.le.s32.totalorder 1, %s27
      %p475 = scmp.lt.s32.totalorder %s27, 5
      %p476 = pnand %p474, %p475
      %p477 = pneg %p476
      // Predicated region
      $region9: #{_lambda_.3} parent=5 // pred_check
        _
      $region10: #{_lambda_.3} parent=5 // pred_check_branch
        %479 = sbr.rel (%p476) target = $region12
      $region11: #{_lambda_.3} parent=5 // pred_region
        %s480 = ssub.s32 %s27, 1
        // Predicated region
        $region13: #{_lambda_.3} parent=11 // pred_check
          %p481 = pneg %p144
        $region14: #{_lambda_.3} parent=11 // pred_check_branch
          %483 = sbr.rel (%p481) target = $region16
        $region15: #{_lambda_.3} parent=11 // pred_region
          _
        $region16: #{_lambda_.3} parent=11 // pred_fallthru
          _
        // Predicated region
        $region17: #{_lambda_.3} parent=11 // pred_check
          %p484 = pneg %p165
        $region18: #{_lambda_.3} parent=11 // pred_check_branch
          %486 = sbr.rel (%p484) target = $region20
        $region19: #{_lambda_.3} parent=11 // pred_region
          _
        $region20: #{_lambda_.3} parent=11 // pred_fallthru
          _
        // Predicated region
        $region21: #{_lambda_.3} parent=11 // pred_check
          %p487 = pneg %p186
        $region22: #{_lambda_.3} parent=11 // pred_check_branch
          %489 = sbr.rel (%p487) target = $region24
        $region23: #{_lambda_.3} parent=11 // pred_region
          _
        $region24: #{_lambda_.3} parent=11 // pred_fallthru
          _
        // Predicated region
        $region25: #{_lambda_.3} parent=11 // pred_check
          %p490 = pneg %p207
        $region26: #{_lambda_.3} parent=11 // pred_check_branch
          %492 = sbr.rel (%p490) target = $region28
        $region27: #{_lambda_.3} parent=11 // pred_region
          _
        $region28: #{_lambda_.3} parent=11 // pred_fallthru
          _
        // Predicated region
        $region29: #{_lambda_.3} parent=11 // pred_check
          %p493 = pneg %p228
        $region30: #{_lambda_.3} parent=11 // pred_check_branch
          %495 = sbr.rel (%p493) target = $region32
        $region31: #{_lambda_.3} parent=11 // pred_region
          _
        $region32: #{_lambda_.3} parent=11 // pred_fallthru
          _
        // Predicated region
        $region33: #{_lambda_.3} parent=11 // pred_check
          %p496 = pneg %p249
        $region34: #{_lambda_.3} parent=11 // pred_check_branch
          %498 = sbr.rel (%p496) target = $region36
        $region35: #{_lambda_.3} parent=11 // pred_region
          _
        $region36: #{_lambda_.3} parent=11 // pred_fallthru
          _
        // Predicated region
        $region37: #{_lambda_.3} parent=11 // pred_check
          %p499 = pneg %p270
        $region38: #{_lambda_.3} parent=11 // pred_check_branch
          %501 = sbr.rel (%p499) target = $region40
        $region39: #{_lambda_.3} parent=11 // pred_region
          _
        $region40: #{_lambda_.3} parent=11 // pred_fallthru
          _
        // Predicated region
        $region41: #{_lambda_.3} parent=11 // pred_check
          %p502 = pneg %p291
        $region42: #{_lambda_.3} parent=11 // pred_check_branch
          %504 = sbr.rel (%p502) target = $region44
        $region43: #{_lambda_.3} parent=11 // pred_region
          _
        $region44: #{_lambda_.3} parent=11 // pred_fallthru
          _
        // Predicated region
        $region45: #{_lambda_.3} parent=11 // pred_check
          %p505 = pneg %p312
        $region46: #{_lambda_.3} parent=11 // pred_check_branch
          %507 = sbr.rel (%p505) target = $region48
        $region47: #{_lambda_.3} parent=11 // pred_region
          _
        $region48: #{_lambda_.3} parent=11 // pred_fallthru
          _
        // Predicated region
        $region49: #{_lambda_.3} parent=11 // pred_check
          %p508 = pneg %p333
        $region50: #{_lambda_.3} parent=11 // pred_check_branch
          %510 = sbr.rel (%p508) target = $region52
        $region51: #{_lambda_.3} parent=11 // pred_region
          _
        $region52: #{_lambda_.3} parent=11 // pred_fallthru
          _
        // Predicated region
        $region53: #{_lambda_.3} parent=11 // pred_check
          %p511 = pneg %p354
        $region54: #{_lambda_.3} parent=11 // pred_check_branch
          %513 = sbr.rel (%p511) target = $region56
        $region55: #{_lambda_.3} parent=11 // pred_region
          _
        $region56: #{_lambda_.3} parent=11 // pred_fallthru
          _
        // Predicated region
        $region57: #{_lambda_.3} parent=11 // pred_check
          %p514 = pneg %p375
        $region58: #{_lambda_.3} parent=11 // pred_check_branch
          %516 = sbr.rel (%p514) target = $region60
        $region59: #{_lambda_.3} parent=11 // pred_region
          _
        $region60: #{_lambda_.3} parent=11 // pred_fallthru
          _
        // Predicated region
        $region61: #{_lambda_.3} parent=11 // pred_check
          %p517 = pneg %p396
        $region62: #{_lambda_.3} parent=11 // pred_check_branch
          %519 = sbr.rel (%p517) target = $region64
        $region63: #{_lambda_.3} parent=11 // pred_region
          _
        $region64: #{_lambda_.3} parent=11 // pred_fallthru
          _
        // Predicated region
        $region65: #{_lambda_.3} parent=11 // pred_check
          %p520 = pneg %p417
        $region66: #{_lambda_.3} parent=11 // pred_check_branch
          %522 = sbr.rel (%p520) target = $region68
        $region67: #{_lambda_.3} parent=11 // pred_region
          _
        $region68: #{_lambda_.3} parent=11 // pred_fallthru
          _
        // Predicated region
        $region69: #{_lambda_.3} parent=11 // pred_check
          %p523 = pneg %p438
        $region70: #{_lambda_.3} parent=11 // pred_check_branch
          %525 = sbr.rel (%p523) target = $region72
        $region71: #{_lambda_.3} parent=11 // pred_region
          _
        $region72: #{_lambda_.3} parent=11 // pred_fallthru
          _
      $region12: #{_lambda_.3} parent=5 // pred_fallthru
        _
      %p526 = scmp.lt.s32.totalorder %s27, 4
      // Predicated region
      $region73: #{_lambda_.3} parent=5 // pred_check
        %p527 = pneg %p526
      $region74: #{_lambda_.3} parent=5 // pred_check_branch
        %529 = sbr.rel (%p527) target = $region76
      $region75: #{_lambda_.3} parent=5 // pred_region
        // Predicated region
        $region77: #{_lambda_.3} parent=75 // pred_check
          %p530 = pneg %p61
        $region78: #{_lambda_.3} parent=75 // pred_check_branch
          %532 = sbr.rel (%p530) target = $region80
        $region79: #{_lambda_.3} parent=75 // pred_region
          %s533 = smul.u32 8, %s35
          %p534 = scmp.lt.s32.totalorder %s34, 1
          %s535 = scalar_select %p534, %s34, 1
          %p536 = scmp.lt.s32.totalorder %s533, 23
          %s537 = scalar_select %p536, %s533, 23
          %s538 = smul.addr %s537, 3
          %s539 = smul.addr %s535, 72
          %s540 = sadd.s32 %s538, %s539
          %s541 = smul.addr %s540, 4
          %s542 = scalar_lea.vmem %s0, %s541
          %s543 = smul.u32 8, %s35
        $region80: #{_lambda_.3} parent=75 // pred_fallthru
          _
        // Predicated region
        $region81: #{_lambda_.3} parent=75 // pred_check
          %p544 = pneg %p91
        $region82: #{_lambda_.3} parent=75 // pred_check_branch
          %546 = sbr.rel (%p544) target = $region84
        $region83: #{_lambda_.3} parent=75 // pred_region
          %s547 = sadd.s32 %s35, 1
          %s548 = smul.u32 8, %s547
          %p549 = scmp.lt.s32.totalorder %s34, 1
          %s550 = scalar_select %p549, %s34, 1
          %p551 = scmp.lt.s32.totalorder %s548, 23
          %s552 = scalar_select %p551, %s548, 23
          %s553 = smul.addr %s552, 3
          %s554 = smul.addr %s550, 72
          %s555 = sadd.s32 %s553, %s554
          %s556 = smul.addr %s555, 4
          %s557 = scalar_lea.vmem %s1, %s556
          %s558 = sadd.s32 %s35, 1
          %s559 = smul.u32 8, %s558
        $region84: #{_lambda_.3} parent=75 // pred_fallthru
          _
        // Predicated region
        $region85: #{_lambda_.3} parent=75 // pred_check
          %p560 = pneg %p117
        $region86: #{_lambda_.3} parent=75 // pred_check_branch
          %562 = sbr.rel (%p560) target = $region88
        $region87: #{_lambda_.3} parent=75 // pred_region
          %p563 = scmp.lt.s32.totalorder %s34, 1
          %s564 = scalar_select %p563, %s34, 1
          %s565 = scalar_lea.vmem %s2, %s564
        $region88: #{_lambda_.3} parent=75 // pred_fallthru
          _
      $region76: #{_lambda_.3} parent=5 // pred_fallthru
        _
      %p566 = scmp.le.s32.totalorder 1, %s27
      %p567 = scmp.lt.s32.totalorder %s27, 5
      %p568 = pnand %p566, %p567
      %p569 = pneg %p568
      // Predicated region
      $region89: #{_lambda_.3} parent=5 // pred_check
        _
      $region90: #{_lambda_.3} parent=5 // pred_check_branch
        %571 = sbr.rel (%p568) target = $region92
      $region91: #{_lambda_.3} parent=5 // pred_region
        %s572 = ssub.s32 %s27, 1
        %s573 = smul.u32 8, %s37
        %p574 = scmp.lt.s32.totalorder %s36, 1
        %s575 = scalar_select %p574, %s36, 1
        %p576 = scmp.lt.s32.totalorder %s573, 23
        %s577 = scalar_select %p576, %s573, 23
        %s578 = smul.addr %s577, 3
        %s579 = smul.addr %s575, 72
        %s580 = sadd.s32 %s578, %s579
        %s581 = smul.addr %s580, 4
        %s582 = scalar_lea.vmem %s0, %s581
        %p583 = pneg %p67
        %p584 = pneg %p64
        %s585 = sadd.s32 %s37, 1
        %s586 = smul.u32 8, %s585
        %p587 = scmp.lt.s32.totalorder %s36, 1
        %s588 = scalar_select %p587, %s36, 1
        %p589 = scmp.lt.s32.totalorder %s586, 23
        %s590 = scalar_select %p589, %s586, 23
        %s591 = smul.addr %s590, 3
        %s592 = smul.addr %s588, 72
        %s593 = sadd.s32 %s591, %s592
        %s594 = smul.addr %s593, 4
        %s595 = scalar_lea.vmem %s1, %s594
        %p596 = pneg %p97
        %p597 = pneg %p94
        %p598 = scmp.lt.s32.totalorder %s36, 1
        %s599 = scalar_select %p598, %s36, 1
        %s600 = scalar_lea.vmem %s2, %s599
        %p601 = pneg %p123
        %p602 = pneg %p120
        %p603 = pneg %p144
        %p604 = pneg %p141
        %p605 = pneg %p165
        %p606 = pneg %p162
        %p607 = pneg %p186
        %p608 = pneg %p183
        %p609 = pneg %p207
        %p610 = pneg %p204
        %p611 = pneg %p228
        %p612 = pneg %p225
        %p613 = pneg %p249
        %p614 = pneg %p246
        %p615 = pneg %p270
        %p616 = pneg %p267
        %p617 = pneg %p291
        %p618 = pneg %p288
        %p619 = pneg %p312
        %p620 = pneg %p309
        %p621 = pneg %p333
        %p622 = pneg %p330
        %p623 = pneg %p354
        %p624 = pneg %p351
        %p625 = pneg %p375
        %p626 = pneg %p372
        %p627 = pneg %p396
        %p628 = pneg %p393
        %p629 = pneg %p417
        %p630 = pneg %p414
        %p631 = pneg %p438
        %p632 = pneg %p435
        %p633 = pneg %p466
        %p634 = pneg %p463
        %s635 = sand.u32 %s453, 1
        %s636 = scalar_lea.sflag [#allocation3], %s635
        %s637 = sand.u32 %s453, 1
        %s638 = smul.addr %s637, 128
        %s639 = scalar_lea.vmem [#allocation2], %s638
        %s640 = smul.u32 8, %s37
        %p641 = scmp.lt.s32.totalorder %s36, 1
        %s642 = scalar_select %p641, %s36, 1
        %p643 = scmp.lt.s32.totalorder %s640, 23
        %s644 = scalar_select %p643, %s640, 23
        %s645 = smul.addr %s644, 3
        %s646 = smul.addr %s642, 72
        %s647 = sadd.s32 %s645, %s646
        %s648 = smul.addr %s647, 4
        %s649 = scalar_lea.vmem %s0, %s648
        %s650 = smul.u32 8, %s37
        %s651 = sadd.s32 %s37, 1
        %s652 = smul.u32 8, %s651
        %p653 = scmp.lt.s32.totalorder %s36, 1
        %s654 = scalar_select %p653, %s36, 1
        %p655 = scmp.lt.s32.totalorder %s652, 23
        %s656 = scalar_select %p655, %s652, 23
        %s657 = smul.addr %s656, 3
        %s658 = smul.addr %s654, 72
        %s659 = sadd.s32 %s657, %s658
        %s660 = smul.addr %s659, 4
        %s661 = scalar_lea.vmem %s1, %s660
        %s662 = sadd.s32 %s37, 1
        %s663 = smul.u32 8, %s662
        %p664 = scmp.lt.s32.totalorder %s36, 1
        %s665 = scalar_select %p664, %s36, 1
        %s666 = scalar_lea.vmem %s2, %s665
        %s667 = smul.u32 8, %s37
        %v669 = vld [vmem:[%s649] sm:$0xf]
        %v670 = vld [vmem:[%s649 + $0x4] sm:$0xf]
        %v671 = vld [vmem:[%s649 + $0x8] sm:$0x7]
        %v672 = vld [vmem:[%s649 + $0xc] sm:$0xf]
        %v673 = vld [vmem:[%s649 + $0x10] sm:$0xf]
        %v674 = vld [vmem:[%s649 + $0x14] sm:$0x7]
        %v675 = vld [vmem:[%s649 + $0x18] sm:$0xf]
        %v676 = vld [vmem:[%s649 + $0x1c] sm:$0xf]
        %v677 = vld [vmem:[%s649 + $0x20] sm:$0x7]
        %v678 = vld [vmem:[%s649 + $0x24] sm:$0xf]
        %v679 = vld [vmem:[%s649 + $0x28] sm:$0xf]
        %v680 = vld [vmem:[%s649 + $0x2c] sm:$0x7]
        %v681 = vld [vmem:[%s649 + $0x30] sm:$0xf]
        %v682 = vld [vmem:[%s649 + $0x34] sm:$0xf]
        %v683 = vld [vmem:[%s649 + $0x38] sm:$0x7]
        %v684 = vld [vmem:[%s649 + $0x3c] sm:$0xf]
        %v685 = vld [vmem:[%s649 + $0x40] sm:$0xf]
        %v686 = vld [vmem:[%s649 + $0x44] sm:$0x7]
        %v687 = vld [vmem:[%s649 + $0x48] sm:$0xf]
        %v688 = vld [vmem:[%s649 + $0x4c] sm:$0xf]
        %v689 = vld [vmem:[%s649 + $0x50] sm:$0x7]
        %v690 = vld [vmem:[%s649 + $0x54] sm:$0xf]
        %v691 = vld [vmem:[%s649 + $0x58] sm:$0xf]
        %v692 = vld [vmem:[%s649 + $0x5c] sm:$0x7]
        %v693 = vld [vmem:[%s661] sm:$0xf]
        %v694 = vld [vmem:[%s661 + $0x4] sm:$0xf]
        %v695 = vld [vmem:[%s661 + $0x8] sm:$0x7]
        %v696 = vld [vmem:[%s661 + $0xc] sm:$0xf]
        %v697 = vld [vmem:[%s661 + $0x10] sm:$0xf]
        %v698 = vld [vmem:[%s661 + $0x14] sm:$0x7]
        %v699 = vld [vmem:[%s661 + $0x18] sm:$0xf]
        %v700 = vld [vmem:[%s661 + $0x1c] sm:$0xf]
        %v701 = vld [vmem:[%s661 + $0x20] sm:$0x7]
        %v702 = vld [vmem:[%s661 + $0x24] sm:$0xf]
        %v703 = vld [vmem:[%s661 + $0x28] sm:$0xf]
        %v704 = vld [vmem:[%s661 + $0x2c] sm:$0x7]
        %v705 = vld [vmem:[%s661 + $0x30] sm:$0xf]
        %v706 = vld [vmem:[%s661 + $0x34] sm:$0xf]
        %v707 = vld [vmem:[%s661 + $0x38] sm:$0x7]
        %v708 = vld [vmem:[%s661 + $0x3c] sm:$0xf]
        %v709 = vld [vmem:[%s661 + $0x40] sm:$0xf]
        %v710 = vld [vmem:[%s661 + $0x44] sm:$0x7]
        %v711 = vld [vmem:[%s666] sm:$0x1]
        %v713 = vlaneseq
        %v714 = vshrl.u32 %v713, 7
        %v715 = vsub.s32 0, %v714
        %v716 = vrot.slane %v711, %v715
        %vm718 = vsmask.f32 2304
        %vm719 = vsmask.f32 6416
        %vm720 = vmor %vm718, %vm719
        %v722 = vshrl.u32 %v678, 16
        %v724 = vrot.slane %v722, 5
        %v725 = vshll.u32 %v678, 16
        %v727 = vrot.slane %v725, 6
        %v728 = vor.u32 %v724, %v727
        %v729 = vrot.slane %v728, 4
        %v731 = vshrl.u32 %v679, 16
        %v733 = vrot.slane %v731, 5
        %v734 = vshll.u32 %v679, 16
        %v736 = vrot.slane %v734, 6
        %v737 = vor.u32 %v733, %v736
        %v738 = vsel %vm720, %v729, %v737
        %v739 = vrot.slane %v737, 4
        %v741 = vshrl.u32 %v680, 16
        %v743 = vrot.slane %v741, 5
        %v744 = vshll.u32 %v680, 16
        %v746 = vrot.slane %v744, 6
        %v747 = vor.u32 %v743, %v746
        %v748 = vsel %vm720, %v739, %v747
        %v750 = vshrl.u32 %v681, 16
        %v752 = vrot.slane %v750, 5
        %v753 = vshll.u32 %v681, 16
        %v755 = vrot.slane %v753, 6
        %v756 = vor.u32 %v752, %v755
        %v757 = vrot.slane %v756, 4
        %v759 = vshrl.u32 %v682, 16
        %v761 = vrot.slane %v759, 5
        %v762 = vshll.u32 %v682, 16
        %v764 = vrot.slane %v762, 6
        %v765 = vor.u32 %v761, %v764
        %v766 = vsel %vm720, %v757, %v765
        %v767 = vrot.slane %v765, 4
        %v769 = vshrl.u32 %v683, 16
        %v771 = vrot.slane %v769, 5
        %v772 = vshll.u32 %v683, 16
        %v774 = vrot.slane %v772, 6
        %v775 = vor.u32 %v771, %v774
        %v776 = vsel %vm720, %v767, %v775
        %v778 = vshrl.u32 %v684, 16
        %v780 = vrot.slane %v778, 5
        %v781 = vshll.u32 %v684, 16
        %v783 = vrot.slane %v781, 6
        %v784 = vor.u32 %v780, %v783
        %v785 = vrot.slane %v784, 4
        %v787 = vshrl.u32 %v685, 16
        %v789 = vrot.slane %v787, 5
        %v790 = vshll.u32 %v685, 16
        %v792 = vrot.slane %v790, 6
        %v793 = vor.u32 %v789, %v792
        %v794 = vsel %vm720, %v785, %v793
        %v795 = vrot.slane %v793, 4
        %v797 = vshrl.u32 %v686, 16
        %v799 = vrot.slane %v797, 5
        %v800 = vshll.u32 %v686, 16
        %v802 = vrot.slane %v800, 6
        %v803 = vor.u32 %v799, %v802
        %v804 = vsel %vm720, %v795, %v803
        %v806 = vshrl.u32 %v687, 16
        %v808 = vrot.slane %v806, 5
        %v809 = vshll.u32 %v687, 16
        %v811 = vrot.slane %v809, 6
        %v812 = vor.u32 %v808, %v811
        %v813 = vrot.slane %v812, 4
        %v815 = vshrl.u32 %v688, 16
        %v817 = vrot.slane %v815, 5
        %v818 = vshll.u32 %v688, 16
        %v820 = vrot.slane %v818, 6
        %v821 = vor.u32 %v817, %v820
        %v822 = vsel %vm720, %v813, %v821
        %v823 = vrot.slane %v821, 4
        %v825 = vshrl.u32 %v689, 16
        %v827 = vrot.slane %v825, 5
        %v828 = vshll.u32 %v689, 16
        %v830 = vrot.slane %v828, 6
        %v831 = vor.u32 %v827, %v830
        %v832 = vsel %vm720, %v823, %v831
        %v834 = vshrl.u32 %v690, 16
        %v836 = vrot.slane %v834, 5
        %v837 = vshll.u32 %v690, 16
        %v839 = vrot.slane %v837, 6
        %v840 = vor.u32 %v836, %v839
        %v841 = vrot.slane %v840, 4
        %v843 = vshrl.u32 %v691, 16
        %v845 = vrot.slane %v843, 5
        %v846 = vshll.u32 %v691, 16
        %v848 = vrot.slane %v846, 6
        %v849 = vor.u32 %v845, %v848
        %v850 = vsel %vm720, %v841, %v849
        %v851 = vrot.slane %v849, 4
        %v853 = vshrl.u32 %v692, 16
        %v855 = vrot.slane %v853, 5
        %v856 = vshll.u32 %v692, 16
        %v858 = vrot.slane %v856, 6
        %v859 = vor.u32 %v855, %v858
        %v860 = vsel %vm720, %v851, %v859
        %v862 = vshrl.u32 %v693, 16
        %v864 = vrot.slane %v862, 5
        %v865 = vshll.u32 %v693, 16
        %v867 = vrot.slane %v865, 6
        %v868 = vor.u32 %v864, %v867
        %v869 = vrot.slane %v868, 4
        %v871 = vshrl.u32 %v694, 16
        %v873 = vrot.slane %v871, 5
        %v874 = vshll.u32 %v694, 16
        %v876 = vrot.slane %v874, 6
        %v877 = vor.u32 %v873, %v876
        %v878 = vsel %vm720, %v869, %v877
        %v879 = vrot.slane %v877, 4
        %v881 = vshrl.u32 %v695, 16
        %v883 = vrot.slane %v881, 5
        %v884 = vshll.u32 %v695, 16
        %v886 = vrot.slane %v884, 6
        %v887 = vor.u32 %v883, %v886
        %v888 = vsel %vm720, %v879, %v887
        %v890 = vshrl.u32 %v696, 16
        %v892 = vrot.slane %v890, 5
        %v893 = vshll.u32 %v696, 16
        %v895 = vrot.slane %v893, 6
        %v896 = vor.u32 %v892, %v895
        %v897 = vrot.slane %v896, 4
        %v899 = vshrl.u32 %v697, 16
        %v901 = vrot.slane %v899, 5
        %v902 = vshll.u32 %v697, 16
        %v904 = vrot.slane %v902, 6
        %v905 = vor.u32 %v901, %v904
        %v906 = vsel %vm720, %v897, %v905
        %v907 = vrot.slane %v905, 4
        %v909 = vshrl.u32 %v698, 16
        %v911 = vrot.slane %v909, 5
        %v912 = vshll.u32 %v698, 16
        %v914 = vrot.slane %v912, 6
        %v915 = vor.u32 %v911, %v914
        %v916 = vsel %vm720, %v907, %v915
        %v918 = vshrl.u32 %v699, 16
        %v920 = vrot.slane %v918, 5
        %v921 = vshll.u32 %v699, 16
        %v923 = vrot.slane %v921, 6
        %v924 = vor.u32 %v920, %v923
        %v925 = vrot.slane %v924, 4
        %v927 = vshrl.u32 %v700, 16
        %v929 = vrot.slane %v927, 5
        %v930 = vshll.u32 %v700, 16
        %v932 = vrot.slane %v930, 6
        %v933 = vor.u32 %v929, %v932
        %v934 = vsel %vm720, %v925, %v933
        %v935 = vrot.slane %v933, 4
        %v937 = vshrl.u32 %v701, 16
        %v939 = vrot.slane %v937, 5
        %v940 = vshll.u32 %v701, 16
        %v942 = vrot.slane %v940, 6
        %v943 = vor.u32 %v939, %v942
        %v944 = vsel %vm720, %v935, %v943
        %v945 = vld [vmem:[%s3] sm:$0x3]
        %v946 = vunpack.c.l.b16 %v738
        %v947 = vunpack.c.l.b16 %v748
        %v948 = vunpack.c.l.b16 %v766
        %v949 = vunpack.c.l.b16 %v776
        %v950 = vunpack.c.l.b16 %v794
        %v951 = vunpack.c.l.b16 %v804
        %v952 = vunpack.c.l.b16 %v822
        %v953 = vunpack.c.l.b16 %v832
        %v954 = vunpack.c.l.b16 %v850
        %v955 = vunpack.c.l.b16 %v860
        %v956 = vunpack.c.l.b16 %v878
        %v957 = vunpack.c.l.b16 %v888
        %v958 = vunpack.c.l.b16 %v906
        %v959 = vunpack.c.l.b16 %v916
        %v960 = vunpack.c.l.b16 %v934
        %v961 = vunpack.c.l.b16 %v944
        %v962 = vpack.c.b16 %v947, %v946
        %v963 = vpack.c.b16 %v949, %v948
        %v964 = vpack.c.b16 %v951, %v950
        %v965 = vpack.c.b16 %v953, %v952
        %v966 = vpack.c.b16 %v955, %v954
        %v967 = vpack.c.b16 %v957, %v956
        %v968 = vpack.c.b16 %v959, %v958
        %v969 = vpack.c.b16 %v961, %v960
        %vm970 = vcmask 31744
        %v972 = vsel %vm970, %v962, 0
        %v975 = vsel %vm970, %v963, 0
        %v978 = vsel %vm970, %v964, 0
        %v981 = vsel %vm970, %v965, 0
        %v984 = vsel %vm970, %v966, 0
        %v987 = vsel %vm970, %v967, 0
        %v990 = vsel %vm970, %v968, 0
        %v993 = vsel %vm970, %v969, 0
        %vm995 = vcmask 1041408
        %v997 = vsel %vm995, %v945, 0
        %999 = vmatprep.subr.bf16.mxu0 0
        %1000 = vmatpush1.bf16.msra.mxu0 0
        %1001 = vmatprep.subr.bf16.mxu0 0
        %1002 = vmatpush1.bf16.msra.mxu0 0
        %1003 = vmatprep.subr.bf16.mxu0 0
        %1004 = vmatpush1.bf16.msra.mxu0 0
        %1005 = vmatprep.subr.bf16.mxu0 0
        %1006 = vmatpush1.bf16.msra.mxu0 0
        %1007 = vmatprep.subr.bf16.mxu0 0
        %1008 = vmatpush1.bf16.msra.mxu0 0
        %1009 = vmatprep.subr.bf16.mxu0 0
        %1010 = vmatpush1.bf16.msra.mxu0 0
        %1011 = vmatprep.subr.bf16.mxu0 0
        %1012 = vmatpush1.bf16.msra.mxu0 0
        %1013 = vmatprep.subr.bf16.mxu0 0
        %1014 = vmatpush1.bf16.msra.mxu0 %v997
        %1015 = vmatprep.subr.bf16.mxu0 0
        %1016 = vmatpush2.bf16.msra.mxu0 0
        %1017 = vmatprep.subr.bf16.mxu0 0
        %1018 = vmatpush2.bf16.msra.mxu0 0
        %1019 = vmatprep.subr.bf16.mxu0 0
        %1020 = vmatpush2.bf16.msra.mxu0 0
        %1021 = vmatprep.subr.bf16.mxu0 0
        %1022 = vmatpush2.bf16.msra.mxu0 0
        %1023 = vmatprep.subr.bf16.mxu0 0
        %1024 = vmatpush2.bf16.msra.mxu0 0
        %1025 = vmatprep.subr.bf16.mxu0 0
        %1026 = vmatpush2.bf16.msra.mxu0 0
        %1027 = vmatprep.subr.bf16.mxu0 0
        %1028 = vmatpush2.bf16.msra.mxu0 0
        %1029 = vmatprep.subr.bf16.mxu0 0
        %1030 = vmatpush2.bf16.msra.mxu0 0
        %1031 = vmatprep.mubr.bf16.mxu0 0
        %1032 = vmatmul.mubr.bf16.gmra.mxu0 %v972
        %v1033 = vpop.f32.mrf.mxu0
        %v1034 = vadd.f32 0.0, %v1033
        %v1035 = vpop.f32.mrf.mxu0
        %v1036 = vpop.f32.mrf.mxu0
        %v1037 = vadd.f32 0.0, %v1036
        %v1038 = vpop.f32.mrf.mxu0
        %1039 = vmatprep.mubr.bf16.mxu0 0
        %1040 = vmatmul.mubr.bf16.gmra.mxu0 %v975
        %v1041 = vpop.f32.mrf.mxu0
        %v1042 = vadd.f32 0.0, %v1041
        %v1043 = vpop.f32.mrf.mxu0
        %v1044 = vpop.f32.mrf.mxu0
        %v1045 = vadd.f32 0.0, %v1044
        %v1046 = vpop.f32.mrf.mxu0
        %1047 = vmatprep.mubr.bf16.mxu0 0
        %1048 = vmatmul.mubr.bf16.gmra.mxu0 %v978
        %v1049 = vpop.f32.mrf.mxu0
        %v1050 = vadd.f32 0.0, %v1049
        %v1051 = vpop.f32.mrf.mxu0
        %v1052 = vpop.f32.mrf.mxu0
        %v1053 = vadd.f32 0.0, %v1052
        %v1054 = vpop.f32.mrf.mxu0
        %1055 = vmatprep.mubr.bf16.mxu0 0
        %1056 = vmatmul.mubr.bf16.gmra.mxu0 %v981
        %v1057 = vpop.f32.mrf.mxu0
        %v1058 = vadd.f32 0.0, %v1057
        %v1059 = vpop.f32.mrf.mxu0
        %v1060 = vpop.f32.mrf.mxu0
        %v1061 = vadd.f32 0.0, %v1060
        %v1062 = vpop.f32.mrf.mxu0
        %1063 = vmatprep.mubr.bf16.mxu0 0
        %1064 = vmatmul.mubr.bf16.gmra.mxu0 %v984
        %v1065 = vpop.f32.mrf.mxu0
        %v1066 = vadd.f32 0.0, %v1065
        %v1067 = vpop.f32.mrf.mxu0
        %v1068 = vpop.f32.mrf.mxu0
        %v1069 = vadd.f32 0.0, %v1068
        %v1070 = vpop.f32.mrf.mxu0
        %1071 = vmatprep.mubr.bf16.mxu0 0
        %1072 = vmatmul.mubr.bf16.gmra.mxu0 %v987
        %v1073 = vpop.f32.mrf.mxu0
        %v1074 = vadd.f32 0.0, %v1073
        %v1075 = vpop.f32.mrf.mxu0
        %v1076 = vpop.f32.mrf.mxu0
        %v1077 = vadd.f32 0.0, %v1076
        %v1078 = vpop.f32.mrf.mxu0
        %1079 = vmatprep.mubr.bf16.mxu0 0
        %1080 = vmatmul.mubr.bf16.gmra.mxu0 %v990
        %v1081 = vpop.f32.mrf.mxu0
        %v1082 = vadd.f32 0.0, %v1081
        %v1083 = vpop.f32.mrf.mxu0
        %v1084 = vpop.f32.mrf.mxu0
        %v1085 = vadd.f32 0.0, %v1084
        %v1086 = vpop.f32.mrf.mxu0
        %1087 = vmatprep.mubr.bf16.mxu0 0
        %1088 = vmatmul.mubr.bf16.gmra.mxu0 %v993
        %v1089 = vpop.f32.mrf.mxu0
        %v1090 = vadd.f32 0.0, %v1089
        %v1091 = vpop.f32.mrf.mxu0
        %v1092 = vpop.f32.mrf.mxu0
        %v1093 = vadd.f32 0.0, %v1092
        %v1094 = vpop.f32.mrf.mxu0
        %1095 = vdwg.mxu0
        %v1096 = vld [vmem:[%s4] sm:$0x1]
        %v1098 = vlaneseq
        %v1099 = vshrl.u32 %v1098, 7
        %v1100 = vsub.s32 0, %v1099
        %v1101 = vrot.slane %v1096, %v1100
        %v1103 = vmul.f32 %v1034, %v1101
        %v1104 = vmul.f32 %v1037, %v1101
        %v1105 = vmul.f32 %v1042, %v1101
        %v1106 = vmul.f32 %v1045, %v1101
        %v1107 = vmul.f32 %v1050, %v1101
        %v1108 = vmul.f32 %v1053, %v1101
        %v1109 = vmul.f32 %v1058, %v1101
        %v1110 = vmul.f32 %v1061, %v1101
        %v1111 = vmul.f32 %v1066, %v1101
        %v1112 = vmul.f32 %v1069, %v1101
        %v1113 = vmul.f32 %v1074, %v1101
        %v1114 = vmul.f32 %v1077, %v1101
        %v1115 = vmul.f32 %v1082, %v1101
        %v1116 = vmul.f32 %v1085, %v1101
        %v1117 = vmul.f32 %v1090, %v1101
        %v1118 = vmul.f32 %v1093, %v1101
        %v1119 = vld [vmem:[%s5] sm:$0x1]
        %v1121 = vlaneseq
        %v1122 = vshrl.u32 %v1121, 7
        %v1123 = vsub.s32 0, %v1122
        %v1124 = vrot.slane %v1119, %v1123
        %v1126 = vadd.f32 %v1103, %v1124
        %v1127 = vadd.f32 %v1104, %v1124
        %v1128 = vadd.f32 %v1105, %v1124
        %v1129 = vadd.f32 %v1106, %v1124
        %v1130 = vadd.f32 %v1107, %v1124
        %v1131 = vadd.f32 %v1108, %v1124
        %v1132 = vadd.f32 %v1109, %v1124
        %v1133 = vadd.f32 %v1110, %v1124
        %v1134 = vadd.f32 %v1111, %v1124
        %v1135 = vadd.f32 %v1112, %v1124
        %v1136 = vadd.f32 %v1113, %v1124
        %v1137 = vadd.f32 %v1114, %v1124
        %v1138 = vadd.f32 %v1115, %v1124
        %v1139 = vadd.f32 %v1116, %v1124
        %v1140 = vadd.f32 %v1117, %v1124
        %v1141 = vadd.f32 %v1118, %v1124
        %v1142 = vmax.f32 %v1126, 0.0
        %v1143 = vmax.f32 %v1127, 0.0
        %v1144 = vmax.f32 %v1128, 0.0
        %v1145 = vmax.f32 %v1129, 0.0
        %v1146 = vmax.f32 %v1130, 0.0
        %v1147 = vmax.f32 %v1131, 0.0
        %v1148 = vmax.f32 %v1132, 0.0
        %v1149 = vmax.f32 %v1133, 0.0
        %v1150 = vmax.f32 %v1134, 0.0
        %v1151 = vmax.f32 %v1135, 0.0
        %v1152 = vmax.f32 %v1136, 0.0
        %v1153 = vmax.f32 %v1137, 0.0
        %v1154 = vmax.f32 %v1138, 0.0
        %v1155 = vmax.f32 %v1139, 0.0
        %v1156 = vmax.f32 %v1140, 0.0
        %v1157 = vmax.f32 %v1141, 0.0
        %v1158 = vpack.c.bf16 %v1143, %v1142
        %v1159 = vpack.c.bf16 %v1145, %v1144
        %v1160 = vpack.c.bf16 %v1147, %v1146
        %v1161 = vpack.c.bf16 %v1149, %v1148
        %v1162 = vpack.c.bf16 %v1151, %v1150
        %v1163 = vpack.c.bf16 %v1153, %v1152
        %v1164 = vpack.c.bf16 %v1155, %v1154
        %v1165 = vpack.c.bf16 %v1157, %v1156
        %v1166 = vld [vmem:[%s15] sm:$0xf]
        %v1167 = vld [vmem:[%s15 + $0x4] sm:$0xf]
        %v1168 = vld [vmem:[%s15 + $0x8] sm:$0xf]
        %v1169 = vld [vmem:[%s15 + $0xc] sm:$0xf]
        %v1174 = vunpack.c.l.b16 %v1166
        %v1175 = vunpack.c.l.b16 %v1167
        %v1176 = vunpack.c.l.b16 %v1168
        %v1177 = vunpack.c.l.b16 %v1169
        %v1178 = vpack.c.b16 %v1175, %v1174
        %v1179 = vpack.c.b16 %v1177, %v1176
        %vm1182 = vcmask 261120
        %v1184 = vsel %vm1182, %v1158, 0
        %v1187 = vsel %vm1182, %v1159, 0
        %v1190 = vsel %vm1182, %v1160, 0
        %v1193 = vsel %vm1182, %v1161, 0
        %v1196 = vsel %vm1182, %v1162, 0
        %v1199 = vsel %vm1182, %v1163, 0
        %v1202 = vsel %vm1182, %v1164, 0
        %v1205 = vsel %vm1182, %v1165, 0
        %1207 = vmatprep.subr.bf16.mxu0 0
        %1208 = vmatpush1.bf16.msra.mxu0 0
        %1209 = vmatprep.subr.bf16.mxu0 0
        %1210 = vmatpush1.bf16.msra.mxu0 0
        %1211 = vmatprep.subr.bf16.mxu0 0
        %1212 = vmatpush1.bf16.msra.mxu0 0
        %1213 = vmatprep.subr.bf16.mxu0 0
        %1214 = vmatpush1.bf16.msra.mxu0 0
        %1215 = vmatprep.subr.bf16.mxu0 0
        %1216 = vmatpush1.bf16.msra.mxu0 0
        %1217 = vmatprep.subr.bf16.mxu0 0
        %1218 = vmatpush1.bf16.msra.mxu0 0
        %1219 = vmatprep.subr.bf16.mxu0 0
        %1220 = vmatpush1.bf16.msra.mxu0 %v1179
        %1221 = vmatprep.subr.bf16.mxu0 0
        %1222 = vmatpush1.bf16.msra.mxu0 %v1178
        %1223 = vmatprep.subr.bf16.mxu0 0
        %1224 = vmatpush2.bf16.msra.mxu0 0
        %1225 = vmatprep.subr.bf16.mxu0 0
        %1226 = vmatpush2.bf16.msra.mxu0 0
        %1227 = vmatprep.subr.bf16.mxu0 0
        %1228 = vmatpush2.bf16.msra.mxu0 0
        %1229 = vmatprep.subr.bf16.mxu0 0
        %1230 = vmatpush2.bf16.msra.mxu0 0
        %1231 = vmatprep.subr.bf16.mxu0 0
        %1232 = vmatpush2.bf16.msra.mxu0 0
        %1233 = vmatprep.subr.bf16.mxu0 0
        %1234 = vmatpush2.bf16.msra.mxu0 0
        %1235 = vmatprep.subr.bf16.mxu0 0
        %1236 = vmatpush2.bf16.msra.mxu0 0
        %1237 = vmatprep.subr.bf16.mxu0 0
        %1238 = vmatpush2.bf16.msra.mxu0 0
        %1239 = vmatprep.mubr.bf16.mxu0 0
        %1240 = vmatmul.mubr.bf16.gmra.mxu0 %v1184
        %v1241 = vpop.f32.mrf.mxu0
        %v1242 = vadd.f32 0.0, %v1241
        %v1243 = vpop.f32.mrf.mxu0
        %v1244 = vpop.f32.mrf.mxu0
        %v1245 = vadd.f32 0.0, %v1244
        %v1246 = vpop.f32.mrf.mxu0
        %1247 = vmatprep.mubr.bf16.mxu0 0
        %1248 = vmatmul.mubr.bf16.gmra.mxu0 %v1187
        %v1249 = vpop.f32.mrf.mxu0
        %v1250 = vadd.f32 0.0, %v1249
        %v1251 = vpop.f32.mrf.mxu0
        %v1252 = vpop.f32.mrf.mxu0
        %v1253 = vadd.f32 0.0, %v1252
        %v1254 = vpop.f32.mrf.mxu0
        %1255 = vmatprep.mubr.bf16.mxu0 0
        %1256 = vmatmul.mubr.bf16.gmra.mxu0 %v1190
        %v1257 = vpop.f32.mrf.mxu0
        %v1258 = vadd.f32 0.0, %v1257
        %v1259 = vpop.f32.mrf.mxu0
        %v1260 = vpop.f32.mrf.mxu0
        %v1261 = vadd.f32 0.0, %v1260
        %v1262 = vpop.f32.mrf.mxu0
        %1263 = vmatprep.mubr.bf16.mxu0 0
        %1264 = vmatmul.mubr.bf16.gmra.mxu0 %v1193
        %v1265 = vpop.f32.mrf.mxu0
        %v1266 = vadd.f32 0.0, %v1265
        %v1267 = vpop.f32.mrf.mxu0
        %v1268 = vpop.f32.mrf.mxu0
        %v1269 = vadd.f32 0.0, %v1268
        %v1270 = vpop.f32.mrf.mxu0
        %1271 = vmatprep.mubr.bf16.mxu0 0
        %1272 = vmatmul.mubr.bf16.gmra.mxu0 %v1196
        %v1273 = vpop.f32.mrf.mxu0
        %v1274 = vadd.f32 0.0, %v1273
        %v1275 = vpop.f32.mrf.mxu0
        %v1276 = vpop.f32.mrf.mxu0
        %v1277 = vadd.f32 0.0, %v1276
        %v1278 = vpop.f32.mrf.mxu0
        %1279 = vmatprep.mubr.bf16.mxu0 0
        %1280 = vmatmul.mubr.bf16.gmra.mxu0 %v1199
        %v1281 = vpop.f32.mrf.mxu0
        %v1282 = vadd.f32 0.0, %v1281
        %v1283 = vpop.f32.mrf.mxu0
        %v1284 = vpop.f32.mrf.mxu0
        %v1285 = vadd.f32 0.0, %v1284
        %v1286 = vpop.f32.mrf.mxu0
        %1287 = vmatprep.mubr.bf16.mxu0 0
        %1288 = vmatmul.mubr.bf16.gmra.mxu0 %v1202
        %v1289 = vpop.f32.mrf.mxu0
        %v1290 = vadd.f32 0.0, %v1289
        %v1291 = vpop.f32.mrf.mxu0
        %v1292 = vpop.f32.mrf.mxu0
        %v1293 = vadd.f32 0.0, %v1292
        %v1294 = vpop.f32.mrf.mxu0
        %1295 = vmatprep.mubr.bf16.mxu0 0
        %1296 = vmatmul.mubr.bf16.gmra.mxu0 %v1205
        %v1297 = vpop.f32.mrf.mxu0
        %v1298 = vadd.f32 0.0, %v1297
        %v1299 = vpop.f32.mrf.mxu0
        %v1300 = vpop.f32.mrf.mxu0
        %v1301 = vadd.f32 0.0, %v1300
        %v1302 = vpop.f32.mrf.mxu0
        %1303 = vdwg.mxu0
        %v1304 = vadd.f32 %v716, %v1242
        %v1305 = vadd.f32 %v716, %v1245
        %v1306 = vadd.f32 %v716, %v1250
        %v1307 = vadd.f32 %v716, %v1253
        %v1308 = vadd.f32 %v716, %v1258
        %v1309 = vadd.f32 %v716, %v1261
        %v1310 = vadd.f32 %v716, %v1266
        %v1311 = vadd.f32 %v716, %v1269
        %v1312 = vadd.f32 %v716, %v1274
        %v1313 = vadd.f32 %v716, %v1277
        %v1314 = vadd.f32 %v716, %v1282
        %v1315 = vadd.f32 %v716, %v1285
        %v1316 = vadd.f32 %v716, %v1290
        %v1317 = vadd.f32 %v716, %v1293
        %v1318 = vadd.f32 %v716, %v1298
        %v1319 = vadd.f32 %v716, %v1301
        %vm1344 = vcmask 1042432
        %vm1345 = vcmask 1046532
        %vm1346 = vmor %vm1344, %vm1345
        %v1347 = vrot.slane %v675, 5
        %v1348 = vrot.slane %v1347, 4
        %v1349 = vrot.slane %v676, 5
        %v1350 = vsel %vm1346, %v1348, %v1349
        %v1351 = vrot.slane %v1349, 4
        %v1352 = vrot.slane %v677, 5
        %v1353 = vsel %vm1346, %v1351, %v1352
        %v1354 = vrot.slane %v678, 5
        %v1355 = vrot.slane %v1354, 4
        %v1356 = vrot.slane %v679, 5
        %v1357 = vsel %vm1346, %v1355, %v1356
        %v1358 = vrot.slane %v1356, 4
        %v1359 = vrot.slane %v680, 5
        %v1360 = vsel %vm1346, %v1358, %v1359
        %v1361 = vrot.slane %v681, 5
        %v1362 = vrot.slane %v1361, 4
        %v1363 = vrot.slane %v682, 5
        %v1364 = vsel %vm1346, %v1362, %v1363
        %v1365 = vrot.slane %v1363, 4
        %v1366 = vrot.slane %v683, 5
        %v1367 = vsel %vm1346, %v1365, %v1366
        %v1368 = vrot.slane %v684, 5
        %v1369 = vrot.slane %v1368, 4
        %v1370 = vrot.slane %v685, 5
        %v1371 = vsel %vm1346, %v1369, %v1370
        %v1372 = vrot.slane %v1370, 4
        %v1373 = vrot.slane %v686, 5
        %v1374 = vsel %vm1346, %v1372, %v1373
        %v1375 = vrot.slane %v687, 5
        %v1376 = vrot.slane %v1375, 4
        %v1377 = vrot.slane %v688, 5
        %v1378 = vsel %vm1346, %v1376, %v1377
        %v1379 = vrot.slane %v1377, 4
        %v1380 = vrot.slane %v689, 5
        %v1381 = vsel %vm1346, %v1379, %v1380
        %v1382 = vrot.slane %v690, 5
        %v1383 = vrot.slane %v1382, 4
        %v1384 = vrot.slane %v691, 5
        %v1385 = vsel %vm1346, %v1383, %v1384
        %v1386 = vrot.slane %v1384, 4
        %v1387 = vrot.slane %v692, 5
        %v1388 = vsel %vm1346, %v1386, %v1387
        %v1389 = vrot.slane %v693, 5
        %v1390 = vrot.slane %v1389, 4
        %v1391 = vrot.slane %v694, 5
        %v1392 = vsel %vm1346, %v1390, %v1391
        %v1393 = vrot.slane %v1391, 4
        %v1394 = vrot.slane %v695, 5
        %v1395 = vsel %vm1346, %v1393, %v1394
        %v1396 = vrot.slane %v696, 5
        %v1397 = vrot.slane %v1396, 4
        %v1398 = vrot.slane %v697, 5
        %v1399 = vsel %vm1346, %v1397, %v1398
        %v1400 = vrot.slane %v1398, 4
        %v1401 = vrot.slane %v698, 5
        %v1402 = vsel %vm1346, %v1400, %v1401
        %v1404 = vshrl.u32 %v675, 16
        %v1406 = vrot.slane %v1404, 5
        %v1407 = vshll.u32 %v675, 16
        %v1409 = vrot.slane %v1407, 6
        %v1410 = vor.u32 %v1406, %v1409
        %v1411 = vrot.slane %v1410, 4
        %v1413 = vshrl.u32 %v676, 16
        %v1415 = vrot.slane %v1413, 5
        %v1416 = vshll.u32 %v676, 16
        %v1418 = vrot.slane %v1416, 6
        %v1419 = vor.u32 %v1415, %v1418
        %v1420 = vsel %vm720, %v1411, %v1419
        %v1421 = vrot.slane %v1419, 4
        %v1423 = vshrl.u32 %v677, 16
        %v1425 = vrot.slane %v1423, 5
        %v1426 = vshll.u32 %v677, 16
        %v1428 = vrot.slane %v1426, 6
        %v1429 = vor.u32 %v1425, %v1428
        %v1430 = vsel %vm720, %v1421, %v1429
        %vm1431 = vcmask 1041408
        %vm1432 = vcmask 1045508
        %vm1433 = vmor %vm1431, %vm1432
        %v1434 = vrot.slane %v675, 6
        %v1435 = vrot.slane %v1434, 4
        %v1436 = vrot.slane %v676, 6
        %v1437 = vsel %vm1433, %v1435, %v1436
        %v1438 = vrot.slane %v1436, 4
        %v1439 = vrot.slane %v677, 6
        %v1440 = vsel %vm1433, %v1438, %v1439
        %v1441 = vrot.slane %v678, 6
        %v1442 = vrot.slane %v1441, 4
        %v1443 = vrot.slane %v679, 6
        %v1444 = vsel %vm1433, %v1442, %v1443
        %v1445 = vrot.slane %v1443, 4
        %v1446 = vrot.slane %v680, 6
        %v1447 = vsel %vm1433, %v1445, %v1446
        %v1448 = vrot.slane %v681, 6
        %v1449 = vrot.slane %v1448, 4
        %v1450 = vrot.slane %v682, 6
        %v1451 = vsel %vm1433, %v1449, %v1450
        %v1452 = vrot.slane %v1450, 4
        %v1453 = vrot.slane %v683, 6
        %v1454 = vsel %vm1433, %v1452, %v1453
        %v1455 = vrot.slane %v684, 6
        %v1456 = vrot.slane %v1455, 4
        %v1457 = vrot.slane %v685, 6
        %v1458 = vsel %vm1433, %v1456, %v1457
        %v1459 = vrot.slane %v1457, 4
        %v1460 = vrot.slane %v686, 6
        %v1461 = vsel %vm1433, %v1459, %v1460
        %v1462 = vrot.slane %v687, 6
        %v1463 = vrot.slane %v1462, 4
        %v1464 = vrot.slane %v688, 6
        %v1465 = vsel %vm1433, %v1463, %v1464
        %v1466 = vrot.slane %v1464, 4
        %v1467 = vrot.slane %v689, 6
        %v1468 = vsel %vm1433, %v1466, %v1467
        %v1469 = vrot.slane %v690, 6
        %v1470 = vrot.slane %v1469, 4
        %v1471 = vrot.slane %v691, 6
        %v1472 = vsel %vm1433, %v1470, %v1471
        %v1473 = vrot.slane %v1471, 4
        %v1474 = vrot.slane %v692, 6
        %v1475 = vsel %vm1433, %v1473, %v1474
        %v1476 = vrot.slane %v693, 6
        %v1477 = vrot.slane %v1476, 4
        %v1478 = vrot.slane %v694, 6
        %v1479 = vsel %vm1433, %v1477, %v1478
        %v1480 = vrot.slane %v1478, 4
        %v1481 = vrot.slane %v695, 6
        %v1482 = vsel %vm1433, %v1480, %v1481
        %v1483 = vrot.slane %v696, 6
        %v1484 = vrot.slane %v1483, 4
        %v1485 = vrot.slane %v697, 6
        %v1486 = vsel %vm1433, %v1484, %v1485
        %v1487 = vrot.slane %v1485, 4
        %v1488 = vrot.slane %v698, 6
        %v1489 = vsel %vm1433, %v1487, %v1488
        %v1493 = vrot.slane %v699, 5
        %v1494 = vrot.slane %v1493, 4
        %v1495 = vrot.slane %v700, 5
        %v1496 = vsel %vm1346, %v1494, %v1495
        %v1497 = vrot.slane %v1495, 4
        %v1498 = vrot.slane %v701, 5
        %v1499 = vsel %vm1346, %v1497, %v1498
        %v1500 = vrot.slane %v699, 6
        %v1501 = vrot.slane %v1500, 4
        %v1502 = vrot.slane %v700, 6
        %v1503 = vsel %vm1433, %v1501, %v1502
        %v1504 = vrot.slane %v1502, 4
        %v1505 = vrot.slane %v701, 6
        %v1506 = vsel %vm1433, %v1504, %v1505
        %v1510 = vrot.slane %v702, 5
        %v1511 = vrot.slane %v1510, 4
        %v1512 = vrot.slane %v703, 5
        %v1513 = vsel %vm1346, %v1511, %v1512
        %v1514 = vrot.slane %v1512, 4
        %v1515 = vrot.slane %v704, 5
        %v1516 = vsel %vm1346, %v1514, %v1515
        %v1518 = vshrl.u32 %v702, 16
        %v1520 = vrot.slane %v1518, 5
        %v1521 = vshll.u32 %v702, 16
        %v1523 = vrot.slane %v1521, 6
        %v1524 = vor.u32 %v1520, %v1523
        %v1525 = vrot.slane %v1524, 4
        %v1527 = vshrl.u32 %v703, 16
        %v1529 = vrot.slane %v1527, 5
        %v1530 = vshll.u32 %v703, 16
        %v1532 = vrot.slane %v1530, 6
        %v1533 = vor.u32 %v1529, %v1532
        %v1534 = vsel %vm720, %v1525, %v1533
        %v1535 = vrot.slane %v1533, 4
        %v1537 = vshrl.u32 %v704, 16
        %v1539 = vrot.slane %v1537, 5
        %v1540 = vshll.u32 %v704, 16
        %v1542 = vrot.slane %v1540, 6
        %v1543 = vor.u32 %v1539, %v1542
        %v1544 = vsel %vm720, %v1535, %v1543
        %v1545 = vrot.slane %v702, 6
        %v1546 = vrot.slane %v1545, 4
        %v1547 = vrot.slane %v703, 6
        %v1548 = vsel %vm1433, %v1546, %v1547
        %v1549 = vrot.slane %v1547, 4
        %v1550 = vrot.slane %v704, 6
        %v1551 = vsel %vm1433, %v1549, %v1550
        %v1552 = vunpack.c.l.b16 %v1350
        %v1553 = vunpack.c.l.b16 %v1353
        %v1554 = vunpack.c.l.b16 %v1357
        %v1555 = vunpack.c.l.b16 %v1360
        %v1556 = vunpack.c.l.b16 %v1364
        %v1557 = vunpack.c.l.b16 %v1367
        %v1558 = vunpack.c.l.b16 %v1371
        %v1559 = vunpack.c.l.b16 %v1374
        %v1560 = vunpack.c.l.b16 %v1378
        %v1561 = vunpack.c.l.b16 %v1381
        %v1562 = vunpack.c.l.b16 %v1385
        %v1563 = vunpack.c.l.b16 %v1388
        %v1564 = vunpack.c.l.b16 %v1392
        %v1565 = vunpack.c.l.b16 %v1395
        %v1566 = vunpack.c.l.b16 %v1399
        %v1567 = vunpack.c.l.b16 %v1402
        %v1568 = vpack.c.b16 %v1553, %v1552
        %v1569 = vpack.c.b16 %v1555, %v1554
        %v1570 = vpack.c.b16 %v1557, %v1556
        %v1571 = vpack.c.b16 %v1559, %v1558
        %v1572 = vpack.c.b16 %v1561, %v1560
        %v1573 = vpack.c.b16 %v1563, %v1562
        %v1574 = vpack.c.b16 %v1565, %v1564
        %v1575 = vpack.c.b16 %v1567, %v1566
        %v1576 = vunpack.c.l.b16 %v1420
        %v1577 = vunpack.c.l.b16 %v1430
        %v1578 = vpack.c.b16 %v1577, %v1576
        %1579 = vrot.lane.b32.xlu0 %v1578, 4
        %v1580 = vpop.permute.xlu0 %1579
        %1581 = vrot.lane.b32.xlu0 %v962, 4
        %v1582 = vpop.permute.xlu0 %1581
        %1583 = vrot.lane.b32.xlu0 %v963, 4
        %v1584 = vpop.permute.xlu0 %1583
        %1585 = vrot.lane.b32.xlu0 %v964, 4
        %v1586 = vpop.permute.xlu0 %1585
        %1587 = vrot.lane.b32.xlu0 %v965, 4
        %v1588 = vpop.permute.xlu0 %1587
        %1589 = vrot.lane.b32.xlu0 %v966, 4
        %v1590 = vpop.permute.xlu0 %1589
        %1591 = vrot.lane.b32.xlu0 %v967, 4
        %v1592 = vpop.permute.xlu0 %1591
        %1593 = vrot.lane.b32.xlu0 %v968, 4
        %v1594 = vpop.permute.xlu0 %1593
        %v1595 = vunpack.c.l.b16 %v1437
        %v1596 = vunpack.c.l.b16 %v1440
        %v1597 = vunpack.c.l.b16 %v1444
        %v1598 = vunpack.c.l.b16 %v1447
        %v1599 = vunpack.c.l.b16 %v1451
        %v1600 = vunpack.c.l.b16 %v1454
        %v1601 = vunpack.c.l.b16 %v1458
        %v1602 = vunpack.c.l.b16 %v1461
        %v1603 = vunpack.c.l.b16 %v1465
        %v1604 = vunpack.c.l.b16 %v1468
        %v1605 = vunpack.c.l.b16 %v1472
        %v1606 = vunpack.c.l.b16 %v1475
        %v1607 = vunpack.c.l.b16 %v1479
        %v1608 = vunpack.c.l.b16 %v1482
        %v1609 = vunpack.c.l.b16 %v1486
        %v1610 = vunpack.c.l.b16 %v1489
        %v1611 = vpack.c.b16 %v1596, %v1595
        %v1612 = vpack.c.b16 %v1598, %v1597
        %v1613 = vpack.c.b16 %v1600, %v1599
        %v1614 = vpack.c.b16 %v1602, %v1601
        %v1615 = vpack.c.b16 %v1604, %v1603
        %v1616 = vpack.c.b16 %v1606, %v1605
        %v1617 = vpack.c.b16 %v1608, %v1607
        %v1618 = vpack.c.b16 %v1610, %v1609
        %1619 = vrot.lane.b32.xlu0 %v1611, 8
        %v1620 = vpop.permute.xlu0 %1619
        %1621 = vrot.lane.b32.xlu0 %v1612, 8
        %v1622 = vpop.permute.xlu0 %1621
        %1623 = vrot.lane.b32.xlu0 %v1613, 8
        %v1624 = vpop.permute.xlu0 %1623
        %1625 = vrot.lane.b32.xlu0 %v1614, 8
        %v1626 = vpop.permute.xlu0 %1625
        %1627 = vrot.lane.b32.xlu0 %v1615, 8
        %v1628 = vpop.permute.xlu0 %1627
        %1629 = vrot.lane.b32.xlu0 %v1616, 8
        %v1630 = vpop.permute.xlu0 %1629
        %1631 = vrot.lane.b32.xlu0 %v1617, 8
        %v1632 = vpop.permute.xlu0 %1631
        %1633 = vrot.lane.b32.xlu0 %v1618, 8
        %v1634 = vpop.permute.xlu0 %1633
        %v1635 = vunpack.c.l.b16 %v1496
        %v1636 = vunpack.c.l.b16 %v1499
        %v1637 = vpack.c.b16 %v1636, %v1635
        %1638 = vrot.lane.b32.xlu0 %v1569, 12
        %v1639 = vpop.permute.xlu0 %1638
        %1640 = vrot.lane.b32.xlu0 %v1570, 12
        %v1641 = vpop.permute.xlu0 %1640
        %1642 = vrot.lane.b32.xlu0 %v1571, 12
        %v1643 = vpop.permute.xlu0 %1642
        %1644 = vrot.lane.b32.xlu0 %v1572, 12
        %v1645 = vpop.permute.xlu0 %1644
        %1646 = vrot.lane.b32.xlu0 %v1573, 12
        %v1647 = vpop.permute.xlu0 %1646
        %1648 = vrot.lane.b32.xlu0 %v1574, 12
        %v1649 = vpop.permute.xlu0 %1648
        %1650 = vrot.lane.b32.xlu0 %v1575, 12
        %v1651 = vpop.permute.xlu0 %1650
        %1652 = vrot.lane.b32.xlu0 %v1637, 12
        %v1653 = vpop.permute.xlu0 %1652
        %1654 = vrot.lane.b32.xlu0 %v962, 16
        %v1655 = vpop.permute.xlu0 %1654
        %1656 = vrot.lane.b32.xlu0 %v963, 16
        %v1657 = vpop.permute.xlu0 %1656
        %1658 = vrot.lane.b32.xlu0 %v964, 16
        %v1659 = vpop.permute.xlu0 %1658
        %1660 = vrot.lane.b32.xlu0 %v965, 16
        %v1661 = vpop.permute.xlu0 %1660
        %1662 = vrot.lane.b32.xlu0 %v966, 16
        %v1663 = vpop.permute.xlu0 %1662
        %1664 = vrot.lane.b32.xlu0 %v967, 16
        %v1665 = vpop.permute.xlu0 %1664
        %1666 = vrot.lane.b32.xlu0 %v968, 16
        %v1667 = vpop.permute.xlu0 %1666
        %1668 = vrot.lane.b32.xlu0 %v969, 16
        %v1669 = vpop.permute.xlu0 %1668
        %v1670 = vunpack.c.l.b16 %v1503
        %v1671 = vunpack.c.l.b16 %v1506
        %v1672 = vpack.c.b16 %v1671, %v1670
        %1673 = vrot.lane.b32.xlu0 %v1612, 20
        %v1674 = vpop.permute.xlu0 %1673
        %1675 = vrot.lane.b32.xlu0 %v1613, 20
        %v1676 = vpop.permute.xlu0 %1675
        %1677 = vrot.lane.b32.xlu0 %v1614, 20
        %v1678 = vpop.permute.xlu0 %1677
        %1679 = vrot.lane.b32.xlu0 %v1615, 20
        %v1680 = vpop.permute.xlu0 %1679
        %1681 = vrot.lane.b32.xlu0 %v1616, 20
        %v1682 = vpop.permute.xlu0 %1681
        %1683 = vrot.lane.b32.xlu0 %v1617, 20
        %v1684 = vpop.permute.xlu0 %1683
        %1685 = vrot.lane.b32.xlu0 %v1618, 20
        %v1686 = vpop.permute.xlu0 %1685
        %1687 = vrot.lane.b32.xlu0 %v1672, 20
        %v1688 = vpop.permute.xlu0 %1687
        %v1689 = vunpack.c.l.b16 %v1513
        %v1690 = vunpack.c.l.b16 %v1516
        %v1691 = vpack.c.b16 %v1690, %v1689
        %1692 = vrot.lane.b32.xlu0 %v1570, 24
        %v1693 = vpop.permute.xlu0 %1692
        %1694 = vrot.lane.b32.xlu0 %v1571, 24
        %v1695 = vpop.permute.xlu0 %1694
        %1696 = vrot.lane.b32.xlu0 %v1572, 24
        %v1697 = vpop.permute.xlu0 %1696
        %1698 = vrot.lane.b32.xlu0 %v1573, 24
        %v1699 = vpop.permute.xlu0 %1698
        %1700 = vrot.lane.b32.xlu0 %v1574, 24
        %v1701 = vpop.permute.xlu0 %1700
        %1702 = vrot.lane.b32.xlu0 %v1575, 24
        %v1703 = vpop.permute.xlu0 %1702
        %1704 = vrot.lane.b32.xlu0 %v1637, 24
        %v1705 = vpop.permute.xlu0 %1704
        %1706 = vrot.lane.b32.xlu0 %v1691, 24
        %v1707 = vpop.permute.xlu0 %1706
        %v1708 = vunpack.c.l.b16 %v1534
        %v1709 = vunpack.c.l.b16 %v1544
        %v1710 = vpack.c.b16 %v1709, %v1708
        %1711 = vrot.lane.b32.xlu0 %v963, 28
        %v1712 = vpop.permute.xlu0 %1711
        %1713 = vrot.lane.b32.xlu0 %v964, 28
        %v1714 = vpop.permute.xlu0 %1713
        %1715 = vrot.lane.b32.xlu0 %v965, 28
        %v1716 = vpop.permute.xlu0 %1715
        %1717 = vrot.lane.b32.xlu0 %v966, 28
        %v1718 = vpop.permute.xlu0 %1717
        %1719 = vrot.lane.b32.xlu0 %v967, 28
        %v1720 = vpop.permute.xlu0 %1719
        %1721 = vrot.lane.b32.xlu0 %v968, 28
        %v1722 = vpop.permute.xlu0 %1721
        %1723 = vrot.lane.b32.xlu0 %v969, 28
        %v1724 = vpop.permute.xlu0 %1723
        %1725 = vrot.lane.b32.xlu0 %v1710, 28
        %v1726 = vpop.permute.xlu0 %1725
        %v1727 = vunpack.c.l.b16 %v1548
        %v1728 = vunpack.c.l.b16 %v1551
        %v1729 = vpack.c.b16 %v1728, %v1727
        %1730 = vrot.lane.b32.xlu0 %v1613, 32
        %v1731 = vpop.permute.xlu0 %1730
        %1732 = vrot.lane.b32.xlu0 %v1614, 32
        %v1733 = vpop.permute.xlu0 %1732
        %1734 = vrot.lane.b32.xlu0 %v1615, 32
        %v1735 = vpop.permute.xlu0 %1734
        %1736 = vrot.lane.b32.xlu0 %v1616, 32
        %v1737 = vpop.permute.xlu0 %1736
        %1738 = vrot.lane.b32.xlu0 %v1617, 32
        %v1739 = vpop.permute.xlu0 %1738
        %1740 = vrot.lane.b32.xlu0 %v1618, 32
        %v1741 = vpop.permute.xlu0 %1740
        %1742 = vrot.lane.b32.xlu0 %v1672, 32
        %v1743 = vpop.permute.xlu0 %1742
        %1744 = vrot.lane.b32.xlu0 %v1729, 32
        %v1745 = vpop.permute.xlu0 %1744
        %v1748 = vsel %vm970, %v1568, %v1580
        %v1751 = vsel %vm970, %v1569, %v1582
        %v1754 = vsel %vm970, %v1570, %v1584
        %v1757 = vsel %vm970, %v1571, %v1586
        %v1760 = vsel %vm970, %v1572, %v1588
        %v1763 = vsel %vm970, %v1573, %v1590
        %v1766 = vsel %vm970, %v1574, %v1592
        %v1769 = vsel %vm970, %v1575, %v1594
        %vm1770 = vcmask 64512
        %v1772 = vsel %vm1770, %v1748, %v1620
        %v1774 = vsel %vm1770, %v1751, %v1622
        %v1776 = vsel %vm1770, %v1754, %v1624
        %v1778 = vsel %vm1770, %v1757, %v1626
        %v1780 = vsel %vm1770, %v1760, %v1628
        %v1782 = vsel %vm1770, %v1763, %v1630
        %v1784 = vsel %vm1770, %v1766, %v1632
        %v1786 = vsel %vm1770, %v1769, %v1634
        %vm1787 = vcmask 97280
        %v1789 = vsel %vm1787, %v1772, %v1639
        %v1791 = vsel %vm1787, %v1774, %v1641
        %v1793 = vsel %vm1787, %v1776, %v1643
        %v1795 = vsel %vm1787, %v1778, %v1645
        %v1797 = vsel %vm1787, %v1780, %v1647
        %v1799 = vsel %vm1787, %v1782, %v1649
        %v1801 = vsel %vm1787, %v1784, %v1651
        %v1803 = vsel %vm1787, %v1786, %v1653
        %vm1804 = vcmask 130048
        %v1806 = vsel %vm1804, %v1789, %v1655
        %v1808 = vsel %vm1804, %v1791, %v1657
        %v1810 = vsel %vm1804, %v1793, %v1659
        %v1812 = vsel %vm1804, %v1795, %v1661
        %v1814 = vsel %vm1804, %v1797, %v1663
        %v1816 = vsel %vm1804, %v1799, %v1665
        %v1818 = vsel %vm1804, %v1801, %v1667
        %v1820 = vsel %vm1804, %v1803, %v1669
        %vm1821 = vcmask 162816
        %v1823 = vsel %vm1821, %v1806, %v1674
        %v1825 = vsel %vm1821, %v1808, %v1676
        %v1827 = vsel %vm1821, %v1810, %v1678
        %v1829 = vsel %vm1821, %v1812, %v1680
        %v1831 = vsel %vm1821, %v1814, %v1682
        %v1833 = vsel %vm1821, %v1816, %v1684
        %v1835 = vsel %vm1821, %v1818, %v1686
        %v1837 = vsel %vm1821, %v1820, %v1688
        %vm1838 = vcmask 195584
        %v1840 = vsel %vm1838, %v1823, %v1693
        %v1842 = vsel %vm1838, %v1825, %v1695
        %v1844 = vsel %vm1838, %v1827, %v1697
        %v1846 = vsel %vm1838, %v1829, %v1699
        %v1848 = vsel %vm1838, %v1831, %v1701
        %v1850 = vsel %vm1838, %v1833, %v1703
        %v1852 = vsel %vm1838, %v1835, %v1705
        %v1854 = vsel %vm1838, %v1837, %v1707
        %vm1855 = vcmask 228352
        %v1857 = vsel %vm1855, %v1840, %v1712
        %v1859 = vsel %vm1855, %v1842, %v1714
        %v1861 = vsel %vm1855, %v1844, %v1716
        %v1863 = vsel %vm1855, %v1846, %v1718
        %v1865 = vsel %vm1855, %v1848, %v1720
        %v1867 = vsel %vm1855, %v1850, %v1722
        %v1869 = vsel %vm1855, %v1852, %v1724
        %v1871 = vsel %vm1855, %v1854, %v1726
        %v1873 = vsel %vm1182, %v1857, %v1731
        %v1875 = vsel %vm1182, %v1859, %v1733
        %v1877 = vsel %vm1182, %v1861, %v1735
        %v1879 = vsel %vm1182, %v1863, %v1737
        %v1881 = vsel %vm1182, %v1865, %v1739
        %v1883 = vsel %vm1182, %v1867, %v1741
        %v1885 = vsel %vm1182, %v1869, %v1743
        %v1887 = vsel %vm1182, %v1871, %v1745
        %v1888 = vld [vmem:[%s6] sm:$0xf]
        %v1889 = vld [vmem:[%s6 + $0x4] sm:$0xf]
        %v1890 = vld [vmem:[%s6 + $0x8] sm:$0xf]
        %v1891 = vld [vmem:[%s6 + $0xc] sm:$0xf]
        %v1892 = vld [vmem:[%s6 + $0x10] sm:$0x3]
        %v1898 = vunpack.c.l.b16 %v1888
        %v1899 = vunpack.c.l.b16 %v1889
        %v1900 = vunpack.c.l.b16 %v1890
        %v1901 = vunpack.c.l.b16 %v1891
        %v1902 = vunpack.c.l.b16 %v1892
        %v1903 = vpack.c.b16 %v1899, %v1898
        %v1904 = vpack.c.b16 %v1901, %v1900
        %v1905 = vpack.c.b16 %v1902, %v1902
        %vm1908 = vcmask 293888
        %v1909 = vsel %vm1908, %v1873, 0
        %v1911 = vsel %vm1908, %v1875, 0
        %v1913 = vsel %vm1908, %v1877, 0
        %v1915 = vsel %vm1908, %v1879, 0
        %v1917 = vsel %vm1908, %v1881, 0
        %v1919 = vsel %vm1908, %v1883, 0
        %v1921 = vsel %vm1908, %v1885, 0
        %v1923 = vsel %vm1908, %v1887, 0
        %v1926 = vsel %vm995, %v1905, 0
        %1928 = vmatprep.subr.bf16.mxu0 0
        %1929 = vmatpush1.bf16.msra.mxu0 0
        %1930 = vmatprep.subr.bf16.mxu0 0
        %1931 = vmatpush1.bf16.msra.mxu0 0
        %1932 = vmatprep.subr.bf16.mxu0 0
        %1933 = vmatpush1.bf16.msra.mxu0 0
        %1934 = vmatprep.subr.bf16.mxu0 0
        %1935 = vmatpush1.bf16.msra.mxu0 0
        %1936 = vmatprep.subr.bf16.mxu0 0
        %1937 = vmatpush1.bf16.msra.mxu0 0
        %1938 = vmatprep.subr.bf16.mxu0 0
        %1939 = vmatpush1.bf16.msra.mxu0 %v1926
        %1940 = vmatprep.subr.bf16.mxu0 0
        %1941 = vmatpush1.bf16.msra.mxu0 %v1904
        %1942 = vmatprep.subr.bf16.mxu0 0
        %1943 = vmatpush1.bf16.msra.mxu0 %v1903
        %1944 = vmatprep.subr.bf16.mxu0 0
        %1945 = vmatpush2.bf16.msra.mxu0 0
        %1946 = vmatprep.subr.bf16.mxu0 0
        %1947 = vmatpush2.bf16.msra.mxu0 0
        %1948 = vmatprep.subr.bf16.mxu0 0
        %1949 = vmatpush2.bf16.msra.mxu0 0
        %1950 = vmatprep.subr.bf16.mxu0 0
        %1951 = vmatpush2.bf16.msra.mxu0 0
        %1952 = vmatprep.subr.bf16.mxu0 0
        %1953 = vmatpush2.bf16.msra.mxu0 0
        %1954 = vmatprep.subr.bf16.mxu0 0
        %1955 = vmatpush2.bf16.msra.mxu0 0
        %1956 = vmatprep.subr.bf16.mxu0 0
        %1957 = vmatpush2.bf16.msra.mxu0 0
        %1958 = vmatprep.subr.bf16.mxu0 0
        %1959 = vmatpush2.bf16.msra.mxu0 0
        %1960 = vmatprep.mubr.bf16.mxu0 0
        %1961 = vmatmul.mubr.bf16.gmra.mxu0 %v1909
        %v1962 = vpop.f32.mrf.mxu0
        %v1963 = vadd.f32 0.0, %v1962
        %v1964 = vpop.f32.mrf.mxu0
        %v1965 = vpop.f32.mrf.mxu0
        %v1966 = vadd.f32 0.0, %v1965
        %v1967 = vpop.f32.mrf.mxu0
        %1968 = vmatprep.mubr.bf16.mxu0 0
        %1969 = vmatmul.mubr.bf16.gmra.mxu0 %v1911
        %v1970 = vpop.f32.mrf.mxu0
        %v1971 = vadd.f32 0.0, %v1970
        %v1972 = vpop.f32.mrf.mxu0
        %v1973 = vpop.f32.mrf.mxu0
        %v1974 = vadd.f32 0.0, %v1973
        %v1975 = vpop.f32.mrf.mxu0
        %1976 = vmatprep.mubr.bf16.mxu0 0
        %1977 = vmatmul.mubr.bf16.gmra.mxu0 %v1913
        %v1978 = vpop.f32.mrf.mxu0
        %v1979 = vadd.f32 0.0, %v1978
        %v1980 = vpop.f32.mrf.mxu0
        %v1981 = vpop.f32.mrf.mxu0
        %v1982 = vadd.f32 0.0, %v1981
        %v1983 = vpop.f32.mrf.mxu0
        %1984 = vmatprep.mubr.bf16.mxu0 0
        %1985 = vmatmul.mubr.bf16.gmra.mxu0 %v1915
        %v1986 = vpop.f32.mrf.mxu0
        %v1987 = vadd.f32 0.0, %v1986
        %v1988 = vpop.f32.mrf.mxu0
        %v1989 = vpop.f32.mrf.mxu0
        %v1990 = vadd.f32 0.0, %v1989
        %v1991 = vpop.f32.mrf.mxu0
        %1992 = vmatprep.mubr.bf16.mxu0 0
        %1993 = vmatmul.mubr.bf16.gmra.mxu0 %v1917
        %v1994 = vpop.f32.mrf.mxu0
        %v1995 = vadd.f32 0.0, %v1994
        %v1996 = vpop.f32.mrf.mxu0
        %v1997 = vpop.f32.mrf.mxu0
        %v1998 = vadd.f32 0.0, %v1997
        %v1999 = vpop.f32.mrf.mxu0
        %2000 = vmatprep.mubr.bf16.mxu0 0
        %2001 = vmatmul.mubr.bf16.gmra.mxu0 %v1919
        %v2002 = vpop.f32.mrf.mxu0
        %v2003 = vadd.f32 0.0, %v2002
        %v2004 = vpop.f32.mrf.mxu0
        %v2005 = vpop.f32.mrf.mxu0
        %v2006 = vadd.f32 0.0, %v2005
        %v2007 = vpop.f32.mrf.mxu0
        %2008 = vmatprep.mubr.bf16.mxu0 0
        %2009 = vmatmul.mubr.bf16.gmra.mxu0 %v1921
        %v2010 = vpop.f32.mrf.mxu0
        %v2011 = vadd.f32 0.0, %v2010
        %v2012 = vpop.f32.mrf.mxu0
        %v2013 = vpop.f32.mrf.mxu0
        %v2014 = vadd.f32 0.0, %v2013
        %v2015 = vpop.f32.mrf.mxu0
        %2016 = vmatprep.mubr.bf16.mxu0 0
        %2017 = vmatmul.mubr.bf16.gmra.mxu0 %v1923
        %v2018 = vpop.f32.mrf.mxu0
        %v2019 = vadd.f32 0.0, %v2018
        %v2020 = vpop.f32.mrf.mxu0
        %v2021 = vpop.f32.mrf.mxu0
        %v2022 = vadd.f32 0.0, %v2021
        %v2023 = vpop.f32.mrf.mxu0
        %2024 = vdwg.mxu0
        %v2025 = vld [vmem:[%s7] sm:$0x1]
        %v2027 = vlaneseq
        %v2028 = vshrl.u32 %v2027, 7
        %v2029 = vsub.s32 0, %v2028
        %v2030 = vrot.slane %v2025, %v2029
        %v2032 = vmul.f32 %v1963, %v2030
        %v2033 = vmul.f32 %v1966, %v2030
        %v2034 = vmul.f32 %v1971, %v2030
        %v2035 = vmul.f32 %v1974, %v2030
        %v2036 = vmul.f32 %v1979, %v2030
        %v2037 = vmul.f32 %v1982, %v2030
        %v2038 = vmul.f32 %v1987, %v2030
        %v2039 = vmul.f32 %v1990, %v2030
        %v2040 = vmul.f32 %v1995, %v2030
        %v2041 = vmul.f32 %v1998, %v2030
        %v2042 = vmul.f32 %v2003, %v2030
        %v2043 = vmul.f32 %v2006, %v2030
        %v2044 = vmul.f32 %v2011, %v2030
        %v2045 = vmul.f32 %v2014, %v2030
        %v2046 = vmul.f32 %v2019, %v2030
        %v2047 = vmul.f32 %v2022, %v2030
        %v2048 = vld [vmem:[%s8] sm:$0x1]
        %v2050 = vlaneseq
        %v2051 = vshrl.u32 %v2050, 7
        %v2052 = vsub.s32 0, %v2051
        %v2053 = vrot.slane %v2048, %v2052
        %v2055 = vadd.f32 %v2032, %v2053
        %v2056 = vadd.f32 %v2033, %v2053
        %v2057 = vadd.f32 %v2034, %v2053
        %v2058 = vadd.f32 %v2035, %v2053
        %v2059 = vadd.f32 %v2036, %v2053
        %v2060 = vadd.f32 %v2037, %v2053
        %v2061 = vadd.f32 %v2038, %v2053
        %v2062 = vadd.f32 %v2039, %v2053
        %v2063 = vadd.f32 %v2040, %v2053
        %v2064 = vadd.f32 %v2041, %v2053
        %v2065 = vadd.f32 %v2042, %v2053
        %v2066 = vadd.f32 %v2043, %v2053
        %v2067 = vadd.f32 %v2044, %v2053
        %v2068 = vadd.f32 %v2045, %v2053
        %v2069 = vadd.f32 %v2046, %v2053
        %v2070 = vadd.f32 %v2047, %v2053
        %v2071 = vmax.f32 %v2055, 0.0
        %v2072 = vmax.f32 %v2056, 0.0
        %v2073 = vmax.f32 %v2057, 0.0
        %v2074 = vmax.f32 %v2058, 0.0
        %v2075 = vmax.f32 %v2059, 0.0
        %v2076 = vmax.f32 %v2060, 0.0
        %v2077 = vmax.f32 %v2061, 0.0
        %v2078 = vmax.f32 %v2062, 0.0
        %v2079 = vmax.f32 %v2063, 0.0
        %v2080 = vmax.f32 %v2064, 0.0
        %v2081 = vmax.f32 %v2065, 0.0
        %v2082 = vmax.f32 %v2066, 0.0
        %v2083 = vmax.f32 %v2067, 0.0
        %v2084 = vmax.f32 %v2068, 0.0
        %v2085 = vmax.f32 %v2069, 0.0
        %v2086 = vmax.f32 %v2070, 0.0
        %v2087 = vpack.c.bf16 %v2072, %v2071
        %v2088 = vpack.c.bf16 %v2074, %v2073
        %v2089 = vpack.c.bf16 %v2076, %v2075
        %v2090 = vpack.c.bf16 %v2078, %v2077
        %v2091 = vpack.c.bf16 %v2080, %v2079
        %v2092 = vpack.c.bf16 %v2082, %v2081
        %v2093 = vpack.c.bf16 %v2084, %v2083
        %v2094 = vpack.c.bf16 %v2086, %v2085
        %v2095 = vld [vmem:[%s15 + $0x10] sm:$0xf]
        %v2096 = vld [vmem:[%s15 + $0x14] sm:$0xf]
        %v2097 = vld [vmem:[%s15 + $0x18] sm:$0xf]
        %v2098 = vld [vmem:[%s15 + $0x1c] sm:$0xf]
        %v2103 = vunpack.c.l.b16 %v2095
        %v2104 = vunpack.c.l.b16 %v2096
        %v2105 = vunpack.c.l.b16 %v2097
        %v2106 = vunpack.c.l.b16 %v2098
        %v2107 = vpack.c.b16 %v2104, %v2103
        %v2108 = vpack.c.b16 %v2106, %v2105
        %v2112 = vsel %vm1182, %v2087, 0
        %v2115 = vsel %vm1182, %v2088, 0
        %v2118 = vsel %vm1182, %v2089, 0
        %v2121 = vsel %vm1182, %v2090, 0
        %v2124 = vsel %vm1182, %v2091, 0
        %v2127 = vsel %vm1182, %v2092, 0
        %v2130 = vsel %vm1182, %v2093, 0
        %v2133 = vsel %vm1182, %v2094, 0
        %2135 = vmatprep.subr.bf16.mxu0 0
        %2136 = vmatpush1.bf16.msra.mxu0 0
        %2137 = vmatprep.subr.bf16.mxu0 0
        %2138 = vmatpush1.bf16.msra.mxu0 0
        %2139 = vmatprep.subr.bf16.mxu0 0
        %2140 = vmatpush1.bf16.msra.mxu0 0
        %2141 = vmatprep.subr.bf16.mxu0 0
        %2142 = vmatpush1.bf16.msra.mxu0 0
        %2143 = vmatprep.subr.bf16.mxu0 0
        %2144 = vmatpush1.bf16.msra.mxu0 0
        %2145 = vmatprep.subr.bf16.mxu0 0
        %2146 = vmatpush1.bf16.msra.mxu0 0
        %2147 = vmatprep.subr.bf16.mxu0 0
        %2148 = vmatpush1.bf16.msra.mxu0 %v2108
        %2149 = vmatprep.subr.bf16.mxu0 0
        %2150 = vmatpush1.bf16.msra.mxu0 %v2107
        %2151 = vmatprep.subr.bf16.mxu0 0
        %2152 = vmatpush2.bf16.msra.mxu0 0
        %2153 = vmatprep.subr.bf16.mxu0 0
        %2154 = vmatpush2.bf16.msra.mxu0 0
        %2155 = vmatprep.subr.bf16.mxu0 0
        %2156 = vmatpush2.bf16.msra.mxu0 0
        %2157 = vmatprep.subr.bf16.mxu0 0
        %2158 = vmatpush2.bf16.msra.mxu0 0
        %2159 = vmatprep.subr.bf16.mxu0 0
        %2160 = vmatpush2.bf16.msra.mxu0 0
        %2161 = vmatprep.subr.bf16.mxu0 0
        %2162 = vmatpush2.bf16.msra.mxu0 0
        %2163 = vmatprep.subr.bf16.mxu0 0
        %2164 = vmatpush2.bf16.msra.mxu0 0
        %2165 = vmatprep.subr.bf16.mxu0 0
        %2166 = vmatpush2.bf16.msra.mxu0 0
        %2167 = vmatprep.mubr.bf16.mxu0 0
        %2168 = vmatmul.mubr.bf16.gmra.mxu0 %v2112
        %v2169 = vpop.f32.mrf.mxu0
        %v2170 = vadd.f32 0.0, %v2169
        %v2171 = vpop.f32.mrf.mxu0
        %v2172 = vpop.f32.mrf.mxu0
        %v2173 = vadd.f32 0.0, %v2172
        %v2174 = vpop.f32.mrf.mxu0
        %2175 = vmatprep.mubr.bf16.mxu0 0
        %2176 = vmatmul.mubr.bf16.gmra.mxu0 %v2115
        %v2177 = vpop.f32.mrf.mxu0
        %v2178 = vadd.f32 0.0, %v2177
        %v2179 = vpop.f32.mrf.mxu0
        %v2180 = vpop.f32.mrf.mxu0
        %v2181 = vadd.f32 0.0, %v2180
        %v2182 = vpop.f32.mrf.mxu0
        %2183 = vmatprep.mubr.bf16.mxu0 0
        %2184 = vmatmul.mubr.bf16.gmra.mxu0 %v2118
        %v2185 = vpop.f32.mrf.mxu0
        %v2186 = vadd.f32 0.0, %v2185
        %v2187 = vpop.f32.mrf.mxu0
        %v2188 = vpop.f32.mrf.mxu0
        %v2189 = vadd.f32 0.0, %v2188
        %v2190 = vpop.f32.mrf.mxu0
        %2191 = vmatprep.mubr.bf16.mxu0 0
        %2192 = vmatmul.mubr.bf16.gmra.mxu0 %v2121
        %v2193 = vpop.f32.mrf.mxu0
        %v2194 = vadd.f32 0.0, %v2193
        %v2195 = vpop.f32.mrf.mxu0
        %v2196 = vpop.f32.mrf.mxu0
        %v2197 = vadd.f32 0.0, %v2196
        %v2198 = vpop.f32.mrf.mxu0
        %2199 = vmatprep.mubr.bf16.mxu0 0
        %2200 = vmatmul.mubr.bf16.gmra.mxu0 %v2124
        %v2201 = vpop.f32.mrf.mxu0
        %v2202 = vadd.f32 0.0, %v2201
        %v2203 = vpop.f32.mrf.mxu0
        %v2204 = vpop.f32.mrf.mxu0
        %v2205 = vadd.f32 0.0, %v2204
        %v2206 = vpop.f32.mrf.mxu0
        %2207 = vmatprep.mubr.bf16.mxu0 0
        %2208 = vmatmul.mubr.bf16.gmra.mxu0 %v2127
        %v2209 = vpop.f32.mrf.mxu0
        %v2210 = vadd.f32 0.0, %v2209
        %v2211 = vpop.f32.mrf.mxu0
        %v2212 = vpop.f32.mrf.mxu0
        %v2213 = vadd.f32 0.0, %v2212
        %v2214 = vpop.f32.mrf.mxu0
        %2215 = vmatprep.mubr.bf16.mxu0 0
        %2216 = vmatmul.mubr.bf16.gmra.mxu0 %v2130
        %v2217 = vpop.f32.mrf.mxu0
        %v2218 = vadd.f32 0.0, %v2217
        %v2219 = vpop.f32.mrf.mxu0
        %v2220 = vpop.f32.mrf.mxu0
        %v2221 = vadd.f32 0.0, %v2220
        %v2222 = vpop.f32.mrf.mxu0
        %2223 = vmatprep.mubr.bf16.mxu0 0
        %2224 = vmatmul.mubr.bf16.gmra.mxu0 %v2133
        %v2225 = vpop.f32.mrf.mxu0
        %v2226 = vadd.f32 0.0, %v2225
        %v2227 = vpop.f32.mrf.mxu0
        %v2228 = vpop.f32.mrf.mxu0
        %v2229 = vadd.f32 0.0, %v2228
        %v2230 = vpop.f32.mrf.mxu0
        %2231 = vdwg.mxu0
        %v2232 = vadd.f32 %v1304, %v2170
        %v2233 = vadd.f32 %v1305, %v2173
        %v2234 = vadd.f32 %v1306, %v2178
        %v2235 = vadd.f32 %v1307, %v2181
        %v2236 = vadd.f32 %v1308, %v2186
        %v2237 = vadd.f32 %v1309, %v2189
        %v2238 = vadd.f32 %v1310, %v2194
        %v2239 = vadd.f32 %v1311, %v2197
        %v2240 = vadd.f32 %v1312, %v2202
        %v2241 = vadd.f32 %v1313, %v2205
        %v2242 = vadd.f32 %v1314, %v2210
        %v2243 = vadd.f32 %v1315, %v2213
        %v2244 = vadd.f32 %v1316, %v2218
        %v2245 = vadd.f32 %v1317, %v2221
        %v2246 = vadd.f32 %v1318, %v2226
        %v2247 = vadd.f32 %v1319, %v2229
        %vm2248 = vsmask.f32 3328
        %vm2249 = vsmask.f32 7440
        %vm2250 = vmor %vm2248, %vm2249
        %v2252 = vshrl.u32 %v672, 16
        %v2254 = vrot.slane %v2252, 4
        %v2255 = vshll.u32 %v672, 16
        %v2257 = vrot.slane %v2255, 5
        %v2258 = vor.u32 %v2254, %v2257
        %v2259 = vrot.slane %v2258, 4
        %v2261 = vshll.u32 %v673, 16
        %v2263 = vrot.slane %v2261, 5
        %v2264 = vsel %vm2250, %v2259, %v2263
        %v2265 = vshrl.u32 %v673, 16
        %v2267 = vrot.slane %v2265, 4
        %v2268 = vor.u32 %v2267, %v2263
        %v2269 = vrot.slane %v2268, 4
        %v2271 = vshll.u32 %v674, 16
        %v2273 = vrot.slane %v2271, 5
        %v2274 = vsel %vm2250, %v2269, %v2273
        %v2275 = vrot.slane %v1404, 4
        %v2276 = vrot.slane %v1407, 5
        %v2277 = vor.u32 %v2275, %v2276
        %v2278 = vrot.slane %v2277, 4
        %v2279 = vrot.slane %v1416, 5
        %v2280 = vsel %vm2250, %v2278, %v2279
        %v2281 = vrot.slane %v1413, 4
        %v2282 = vor.u32 %v2281, %v2279
        %v2283 = vrot.slane %v2282, 4
        %v2284 = vrot.slane %v1426, 5
        %v2285 = vsel %vm2250, %v2283, %v2284
        %v2286 = vrot.slane %v722, 4
        %v2287 = vrot.slane %v725, 5
        %v2288 = vor.u32 %v2286, %v2287
        %v2289 = vrot.slane %v2288, 4
        %v2290 = vrot.slane %v734, 5
        %v2291 = vsel %vm2250, %v2289, %v2290
        %v2292 = vrot.slane %v731, 4
        %v2293 = vor.u32 %v2292, %v2290
        %v2294 = vrot.slane %v2293, 4
        %v2295 = vrot.slane %v744, 5
        %v2296 = vsel %vm2250, %v2294, %v2295
        %v2297 = vrot.slane %v750, 4
        %v2298 = vrot.slane %v753, 5
        %v2299 = vor.u32 %v2297, %v2298
        %v2300 = vrot.slane %v2299, 4
        %v2301 = vrot.slane %v762, 5
        %v2302 = vsel %vm2250, %v2300, %v2301
        %v2303 = vrot.slane %v759, 4
        %v2304 = vor.u32 %v2303, %v2301
        %v2305 = vrot.slane %v2304, 4
        %v2306 = vrot.slane %v772, 5
        %v2307 = vsel %vm2250, %v2305, %v2306
        %v2308 = vrot.slane %v778, 4
        %v2309 = vrot.slane %v781, 5
        %v2310 = vor.u32 %v2308, %v2309
        %v2311 = vrot.slane %v2310, 4
        %v2312 = vrot.slane %v790, 5
        %v2313 = vsel %vm2250, %v2311, %v2312
        %v2314 = vrot.slane %v787, 4
        %v2315 = vor.u32 %v2314, %v2312
        %v2316 = vrot.slane %v2315, 4
        %v2317 = vrot.slane %v800, 5
        %v2318 = vsel %vm2250, %v2316, %v2317
        %v2319 = vrot.slane %v806, 4
        %v2320 = vrot.slane %v809, 5
        %v2321 = vor.u32 %v2319, %v2320
        %v2322 = vrot.slane %v2321, 4
        %v2323 = vrot.slane %v818, 5
        %v2324 = vsel %vm2250, %v2322, %v2323
        %v2325 = vrot.slane %v815, 4
        %v2326 = vor.u32 %v2325, %v2323
        %v2327 = vrot.slane %v2326, 4
        %v2328 = vrot.slane %v828, 5
        %v2329 = vsel %vm2250, %v2327, %v2328
        %v2330 = vrot.slane %v834, 4
        %v2331 = vrot.slane %v837, 5
        %v2332 = vor.u32 %v2330, %v2331
        %v2333 = vrot.slane %v2332, 4
        %v2334 = vrot.slane %v846, 5
        %v2335 = vsel %vm2250, %v2333, %v2334
        %v2336 = vrot.slane %v843, 4
        %v2337 = vor.u32 %v2336, %v2334
        %v2338 = vrot.slane %v2337, 4
        %v2339 = vrot.slane %v856, 5
        %v2340 = vsel %vm2250, %v2338, %v2339
        %v2341 = vrot.slane %v862, 4
        %v2342 = vrot.slane %v865, 5
        %v2343 = vor.u32 %v2341, %v2342
        %v2344 = vrot.slane %v2343, 4
        %v2345 = vrot.slane %v874, 5
        %v2346 = vsel %vm2250, %v2344, %v2345
        %v2347 = vrot.slane %v871, 4
        %v2348 = vor.u32 %v2347, %v2345
        %v2349 = vrot.slane %v2348, 4
        %v2350 = vrot.slane %v884, 5
        %v2351 = vsel %vm2250, %v2349, %v2350
        %v2352 = vrot.slane %v2252, 5
        %v2353 = vrot.slane %v2255, 6
        %v2354 = vor.u32 %v2352, %v2353
        %v2355 = vrot.slane %v2354, 4
        %v2356 = vrot.slane %v2265, 5
        %v2357 = vrot.slane %v2261, 6
        %v2358 = vor.u32 %v2356, %v2357
        %v2359 = vsel %vm720, %v2355, %v2358
        %v2360 = vrot.slane %v2358, 4
        %v2361 = vshrl.u32 %v674, 16
        %v2363 = vrot.slane %v2361, 5
        %v2364 = vrot.slane %v2271, 6
        %v2365 = vor.u32 %v2363, %v2364
        %v2366 = vsel %vm720, %v2360, %v2365
        %vm2367 = vsmask.f32 1280
        %vm2368 = vsmask.f32 5392
        %vm2369 = vmor %vm2367, %vm2368
        %v2370 = vrot.slane %v2252, 6
        %v2371 = vrot.slane %v2255, 7
        %v2372 = vor.u32 %v2370, %v2371
        %v2373 = vrot.slane %v2372, 4
        %v2374 = vrot.slane %v2265, 6
        %v2375 = vrot.slane %v2261, 7
        %v2376 = vor.u32 %v2374, %v2375
        %v2377 = vsel %vm2369, %v2373, %v2376
        %v2378 = vrot.slane %v2376, 4
        %v2379 = vrot.slane %v2361, 6
        %v2380 = vrot.slane %v2271, 7
        %v2381 = vor.u32 %v2379, %v2380
        %v2382 = vsel %vm2369, %v2378, %v2381
        %v2383 = vrot.slane %v1404, 6
        %v2384 = vrot.slane %v1407, 7
        %v2385 = vor.u32 %v2383, %v2384
        %v2386 = vrot.slane %v2385, 4
        %v2387 = vrot.slane %v1413, 6
        %v2388 = vrot.slane %v1416, 7
        %v2389 = vor.u32 %v2387, %v2388
        %v2390 = vsel %vm2369, %v2386, %v2389
        %v2391 = vrot.slane %v2389, 4
        %v2392 = vrot.slane %v1423, 6
        %v2393 = vrot.slane %v1426, 7
        %v2394 = vor.u32 %v2392, %v2393
        %v2395 = vsel %vm2369, %v2391, %v2394
        %v2396 = vrot.slane %v722, 6
        %v2397 = vrot.slane %v725, 7
        %v2398 = vor.u32 %v2396, %v2397
        %v2399 = vrot.slane %v2398, 4
        %v2400 = vrot.slane %v731, 6
        %v2401 = vrot.slane %v734, 7
        %v2402 = vor.u32 %v2400, %v2401
        %v2403 = vsel %vm2369, %v2399, %v2402
        %v2404 = vrot.slane %v2402, 4
        %v2405 = vrot.slane %v741, 6
        %v2406 = vrot.slane %v744, 7
        %v2407 = vor.u32 %v2405, %v2406
        %v2408 = vsel %vm2369, %v2404, %v2407
        %v2409 = vrot.slane %v750, 6
        %v2410 = vrot.slane %v753, 7
        %v2411 = vor.u32 %v2409, %v2410
        %v2412 = vrot.slane %v2411, 4
        %v2413 = vrot.slane %v759, 6
        %v2414 = vrot.slane %v762, 7
        %v2415 = vor.u32 %v2413, %v2414
        %v2416 = vsel %vm2369, %v2412, %v2415
        %v2417 = vrot.slane %v2415, 4
        %v2418 = vrot.slane %v769, 6
        %v2419 = vrot.slane %v772, 7
        %v2420 = vor.u32 %v2418, %v2419
        %v2421 = vsel %vm2369, %v2417, %v2420
        %v2422 = vrot.slane %v778, 6
        %v2423 = vrot.slane %v781, 7
        %v2424 = vor.u32 %v2422, %v2423
        %v2425 = vrot.slane %v2424, 4
        %v2426 = vrot.slane %v787, 6
        %v2427 = vrot.slane %v790, 7
        %v2428 = vor.u32 %v2426, %v2427
        %v2429 = vsel %vm2369, %v2425, %v2428
        %v2430 = vrot.slane %v2428, 4
        %v2431 = vrot.slane %v797, 6
        %v2432 = vrot.slane %v800, 7
        %v2433 = vor.u32 %v2431, %v2432
        %v2434 = vsel %vm2369, %v2430, %v2433
        %v2435 = vrot.slane %v806, 6
        %v2436 = vrot.slane %v809, 7
        %v2437 = vor.u32 %v2435, %v2436
        %v2438 = vrot.slane %v2437, 4
        %v2439 = vrot.slane %v815, 6
        %v2440 = vrot.slane %v818, 7
        %v2441 = vor.u32 %v2439, %v2440
        %v2442 = vsel %vm2369, %v2438, %v2441
        %v2443 = vrot.slane %v2441, 4
        %v2444 = vrot.slane %v825, 6
        %v2445 = vrot.slane %v828, 7
        %v2446 = vor.u32 %v2444, %v2445
        %v2447 = vsel %vm2369, %v2443, %v2446
        %v2448 = vrot.slane %v834, 6
        %v2449 = vrot.slane %v837, 7
        %v2450 = vor.u32 %v2448, %v2449
        %v2451 = vrot.slane %v2450, 4
        %v2452 = vrot.slane %v843, 6
        %v2453 = vrot.slane %v846, 7
        %v2454 = vor.u32 %v2452, %v2453
        %v2455 = vsel %vm2369, %v2451, %v2454
        %v2456 = vrot.slane %v2454, 4
        %v2457 = vrot.slane %v853, 6
        %v2458 = vrot.slane %v856, 7
        %v2459 = vor.u32 %v2457, %v2458
        %v2460 = vsel %vm2369, %v2456, %v2459
        %v2461 = vrot.slane %v862, 6
        %v2462 = vrot.slane %v865, 7
        %v2463 = vor.u32 %v2461, %v2462
        %v2464 = vrot.slane %v2463, 4
        %v2465 = vrot.slane %v871, 6
        %v2466 = vrot.slane %v874, 7
        %v2467 = vor.u32 %v2465, %v2466
        %v2468 = vsel %vm2369, %v2464, %v2467
        %v2469 = vrot.slane %v2467, 4
        %v2470 = vrot.slane %v881, 6
        %v2471 = vrot.slane %v884, 7
        %v2472 = vor.u32 %v2470, %v2471
        %v2473 = vsel %vm2369, %v2469, %v2472
        %v2474 = vrot.slane %v890, 4
        %v2475 = vrot.slane %v893, 5
        %v2476 = vor.u32 %v2474, %v2475
        %v2477 = vrot.slane %v2476, 4
        %v2478 = vrot.slane %v902, 5
        %v2479 = vsel %vm2250, %v2477, %v2478
        %v2480 = vrot.slane %v899, 4
        %v2481 = vor.u32 %v2480, %v2478
        %v2482 = vrot.slane %v2481, 4
        %v2483 = vrot.slane %v912, 5
        %v2484 = vsel %vm2250, %v2482, %v2483
        %v2485 = vrot.slane %v918, 4
        %v2486 = vrot.slane %v921, 5
        %v2487 = vor.u32 %v2485, %v2486
        %v2488 = vrot.slane %v2487, 4
        %v2489 = vrot.slane %v930, 5
        %v2490 = vsel %vm2250, %v2488, %v2489
        %v2491 = vrot.slane %v927, 4
        %v2492 = vor.u32 %v2491, %v2489
        %v2493 = vrot.slane %v2492, 4
        %v2494 = vrot.slane %v940, 5
        %v2495 = vsel %vm2250, %v2493, %v2494
        %v2496 = vrot.slane %v890, 6
        %v2497 = vrot.slane %v893, 7
        %v2498 = vor.u32 %v2496, %v2497
        %v2499 = vrot.slane %v2498, 4
        %v2500 = vrot.slane %v899, 6
        %v2501 = vrot.slane %v902, 7
        %v2502 = vor.u32 %v2500, %v2501
        %v2503 = vsel %vm2369, %v2499, %v2502
        %v2504 = vrot.slane %v2502, 4
        %v2505 = vrot.slane %v909, 6
        %v2506 = vrot.slane %v912, 7
        %v2507 = vor.u32 %v2505, %v2506
        %v2508 = vsel %vm2369, %v2504, %v2507
        %v2509 = vrot.slane %v918, 6
        %v2510 = vrot.slane %v921, 7
        %v2511 = vor.u32 %v2509, %v2510
        %v2512 = vrot.slane %v2511, 4
        %v2513 = vrot.slane %v927, 6
        %v2514 = vrot.slane %v930, 7
        %v2515 = vor.u32 %v2513, %v2514
        %v2516 = vsel %vm2369, %v2512, %v2515
        %v2517 = vrot.slane %v2515, 4
        %v2518 = vrot.slane %v937, 6
        %v2519 = vrot.slane %v940, 7
        %v2520 = vor.u32 %v2518, %v2519
        %v2521 = vsel %vm2369, %v2517, %v2520
        %v2522 = vrot.slane %v1518, 4
        %v2523 = vrot.slane %v1521, 5
        %v2524 = vor.u32 %v2522, %v2523
        %v2525 = vrot.slane %v2524, 4
        %v2526 = vrot.slane %v1530, 5
        %v2527 = vsel %vm2250, %v2525, %v2526
        %v2528 = vrot.slane %v1527, 4
        %v2529 = vor.u32 %v2528, %v2526
        %v2530 = vrot.slane %v2529, 4
        %v2531 = vrot.slane %v1540, 5
        %v2532 = vsel %vm2250, %v2530, %v2531
        %v2534 = vshrl.u32 %v705, 16
        %v2536 = vrot.slane %v2534, 4
        %v2537 = vshll.u32 %v705, 16
        %v2539 = vrot.slane %v2537, 5
        %v2540 = vor.u32 %v2536, %v2539
        %v2541 = vrot.slane %v2540, 4
        %v2543 = vshll.u32 %v706, 16
        %v2545 = vrot.slane %v2543, 5
        %v2546 = vsel %vm2250, %v2541, %v2545
        %v2547 = vshrl.u32 %v706, 16
        %v2549 = vrot.slane %v2547, 4
        %v2550 = vor.u32 %v2549, %v2545
        %v2551 = vrot.slane %v2550, 4
        %v2553 = vshll.u32 %v707, 16
        %v2555 = vrot.slane %v2553, 5
        %v2556 = vsel %vm2250, %v2551, %v2555
        %v2557 = vrot.slane %v2534, 5
        %v2558 = vrot.slane %v2537, 6
        %v2559 = vor.u32 %v2557, %v2558
        %v2560 = vrot.slane %v2559, 4
        %v2561 = vrot.slane %v2547, 5
        %v2562 = vrot.slane %v2543, 6
        %v2563 = vor.u32 %v2561, %v2562
        %v2564 = vsel %vm720, %v2560, %v2563
        %v2565 = vrot.slane %v2563, 4
        %v2566 = vshrl.u32 %v707, 16
        %v2568 = vrot.slane %v2566, 5
        %v2569 = vrot.slane %v2553, 6
        %v2570 = vor.u32 %v2568, %v2569
        %v2571 = vsel %vm720, %v2565, %v2570
        %v2572 = vrot.slane %v1518, 6
        %v2573 = vrot.slane %v1521, 7
        %v2574 = vor.u32 %v2572, %v2573
        %v2575 = vrot.slane %v2574, 4
        %v2576 = vrot.slane %v1527, 6
        %v2577 = vrot.slane %v1530, 7
        %v2578 = vor.u32 %v2576, %v2577
        %v2579 = vsel %vm2369, %v2575, %v2578
        %v2580 = vrot.slane %v2578, 4
        %v2581 = vrot.slane %v1537, 6
        %v2582 = vrot.slane %v1540, 7
        %v2583 = vor.u32 %v2581, %v2582
        %v2584 = vsel %vm2369, %v2580, %v2583
        %v2585 = vrot.slane %v2534, 6
        %v2586 = vrot.slane %v2537, 7
        %v2587 = vor.u32 %v2585, %v2586
        %v2588 = vrot.slane %v2587, 4
        %v2589 = vrot.slane %v2547, 6
        %v2590 = vrot.slane %v2543, 7
        %v2591 = vor.u32 %v2589, %v2590
        %v2592 = vsel %vm2369, %v2588, %v2591
        %v2593 = vrot.slane %v2591, 4
        %v2594 = vrot.slane %v2566, 6
        %v2595 = vrot.slane %v2553, 7
        %v2596 = vor.u32 %v2594, %v2595
        %v2597 = vsel %vm2369, %v2593, %v2596
        %v2598 = vunpack.c.l.b16 %v2264
        %v2599 = vunpack.c.l.b16 %v2274
        %v2600 = vunpack.c.l.b16 %v2280
        %v2601 = vunpack.c.l.b16 %v2285
        %v2602 = vunpack.c.l.b16 %v2291
        %v2603 = vunpack.c.l.b16 %v2296
        %v2604 = vunpack.c.l.b16 %v2302
        %v2605 = vunpack.c.l.b16 %v2307
        %v2606 = vunpack.c.l.b16 %v2313
        %v2607 = vunpack.c.l.b16 %v2318
        %v2608 = vunpack.c.l.b16 %v2324
        %v2609 = vunpack.c.l.b16 %v2329
        %v2610 = vunpack.c.l.b16 %v2335
        %v2611 = vunpack.c.l.b16 %v2340
        %v2612 = vunpack.c.l.b16 %v2346
        %v2613 = vunpack.c.l.b16 %v2351
        %v2614 = vpack.c.b16 %v2599, %v2598
        %v2615 = vpack.c.b16 %v2601, %v2600
        %v2616 = vpack.c.b16 %v2603, %v2602
        %v2617 = vpack.c.b16 %v2605, %v2604
        %v2618 = vpack.c.b16 %v2607, %v2606
        %v2619 = vpack.c.b16 %v2609, %v2608
        %v2620 = vpack.c.b16 %v2611, %v2610
        %v2621 = vpack.c.b16 %v2613, %v2612
        %v2622 = vunpack.c.l.b16 %v2359
        %v2623 = vunpack.c.l.b16 %v2366
        %v2624 = vpack.c.b16 %v2623, %v2622
        %2625 = vrot.lane.b32.xlu0 %v2624, 4
        %v2626 = vpop.permute.xlu0 %2625
        %v2627 = vunpack.c.l.b16 %v2377
        %v2628 = vunpack.c.l.b16 %v2382
        %v2629 = vunpack.c.l.b16 %v2390
        %v2630 = vunpack.c.l.b16 %v2395
        %v2631 = vunpack.c.l.b16 %v2403
        %v2632 = vunpack.c.l.b16 %v2408
        %v2633 = vunpack.c.l.b16 %v2416
        %v2634 = vunpack.c.l.b16 %v2421
        %v2635 = vunpack.c.l.b16 %v2429
        %v2636 = vunpack.c.l.b16 %v2434
        %v2637 = vunpack.c.l.b16 %v2442
        %v2638 = vunpack.c.l.b16 %v2447
        %v2639 = vunpack.c.l.b16 %v2455
        %v2640 = vunpack.c.l.b16 %v2460
        %v2641 = vunpack.c.l.b16 %v2468
        %v2642 = vunpack.c.l.b16 %v2473
        %v2643 = vpack.c.b16 %v2628, %v2627
        %v2644 = vpack.c.b16 %v2630, %v2629
        %v2645 = vpack.c.b16 %v2632, %v2631
        %v2646 = vpack.c.b16 %v2634, %v2633
        %v2647 = vpack.c.b16 %v2636, %v2635
        %v2648 = vpack.c.b16 %v2638, %v2637
        %v2649 = vpack.c.b16 %v2640, %v2639
        %v2650 = vpack.c.b16 %v2642, %v2641
        %2651 = vrot.lane.b32.xlu0 %v2643, 8
        %v2652 = vpop.permute.xlu0 %2651
        %2653 = vrot.lane.b32.xlu0 %v2644, 8
        %v2654 = vpop.permute.xlu0 %2653
        %2655 = vrot.lane.b32.xlu0 %v2645, 8
        %v2656 = vpop.permute.xlu0 %2655
        %2657 = vrot.lane.b32.xlu0 %v2646, 8
        %v2658 = vpop.permute.xlu0 %2657
        %2659 = vrot.lane.b32.xlu0 %v2647, 8
        %v2660 = vpop.permute.xlu0 %2659
        %2661 = vrot.lane.b32.xlu0 %v2648, 8
        %v2662 = vpop.permute.xlu0 %2661
        %2663 = vrot.lane.b32.xlu0 %v2649, 8
        %v2664 = vpop.permute.xlu0 %2663
        %2665 = vrot.lane.b32.xlu0 %v2650, 8
        %v2666 = vpop.permute.xlu0 %2665
        %v2667 = vunpack.c.l.b16 %v2479
        %v2668 = vunpack.c.l.b16 %v2484
        %v2669 = vunpack.c.l.b16 %v2490
        %v2670 = vunpack.c.l.b16 %v2495
        %v2671 = vpack.c.b16 %v2668, %v2667
        %v2672 = vpack.c.b16 %v2670, %v2669
        %2673 = vrot.lane.b32.xlu0 %v2616, 12
        %v2674 = vpop.permute.xlu0 %2673
        %2675 = vrot.lane.b32.xlu0 %v2617, 12
        %v2676 = vpop.permute.xlu0 %2675
        %2677 = vrot.lane.b32.xlu0 %v2618, 12
        %v2678 = vpop.permute.xlu0 %2677
        %2679 = vrot.lane.b32.xlu0 %v2619, 12
        %v2680 = vpop.permute.xlu0 %2679
        %2681 = vrot.lane.b32.xlu0 %v2620, 12
        %v2682 = vpop.permute.xlu0 %2681
        %2683 = vrot.lane.b32.xlu0 %v2621, 12
        %v2684 = vpop.permute.xlu0 %2683
        %2685 = vrot.lane.b32.xlu0 %v2671, 12
        %v2686 = vpop.permute.xlu0 %2685
        %2687 = vrot.lane.b32.xlu0 %v2672, 12
        %v2688 = vpop.permute.xlu0 %2687
        %v2689 = vunpack.c.l.b16 %v2503
        %v2690 = vunpack.c.l.b16 %v2508
        %v2691 = vunpack.c.l.b16 %v2516
        %v2692 = vunpack.c.l.b16 %v2521
        %v2693 = vpack.c.b16 %v2690, %v2689
        %v2694 = vpack.c.b16 %v2692, %v2691
        %2695 = vrot.lane.b32.xlu0 %v2645, 20
        %v2696 = vpop.permute.xlu0 %2695
        %2697 = vrot.lane.b32.xlu0 %v2646, 20
        %v2698 = vpop.permute.xlu0 %2697
        %2699 = vrot.lane.b32.xlu0 %v2647, 20
        %v2700 = vpop.permute.xlu0 %2699
        %2701 = vrot.lane.b32.xlu0 %v2648, 20
        %v2702 = vpop.permute.xlu0 %2701
        %2703 = vrot.lane.b32.xlu0 %v2649, 20
        %v2704 = vpop.permute.xlu0 %2703
        %2705 = vrot.lane.b32.xlu0 %v2650, 20
        %v2706 = vpop.permute.xlu0 %2705
        %2707 = vrot.lane.b32.xlu0 %v2693, 20
        %v2708 = vpop.permute.xlu0 %2707
        %2709 = vrot.lane.b32.xlu0 %v2694, 20
        %v2710 = vpop.permute.xlu0 %2709
        %v2711 = vunpack.c.l.b16 %v2527
        %v2712 = vunpack.c.l.b16 %v2532
        %v2713 = vunpack.c.l.b16 %v2546
        %v2714 = vunpack.c.l.b16 %v2556
        %v2715 = vpack.c.b16 %v2712, %v2711
        %v2716 = vpack.c.b16 %v2714, %v2713
        %2717 = vrot.lane.b32.xlu0 %v2618, 24
        %v2718 = vpop.permute.xlu0 %2717
        %2719 = vrot.lane.b32.xlu0 %v2619, 24
        %v2720 = vpop.permute.xlu0 %2719
        %2721 = vrot.lane.b32.xlu0 %v2620, 24
        %v2722 = vpop.permute.xlu0 %2721
        %2723 = vrot.lane.b32.xlu0 %v2621, 24
        %v2724 = vpop.permute.xlu0 %2723
        %2725 = vrot.lane.b32.xlu0 %v2671, 24
        %v2726 = vpop.permute.xlu0 %2725
        %2727 = vrot.lane.b32.xlu0 %v2672, 24
        %v2728 = vpop.permute.xlu0 %2727
        %2729 = vrot.lane.b32.xlu0 %v2715, 24
        %v2730 = vpop.permute.xlu0 %2729
        %2731 = vrot.lane.b32.xlu0 %v2716, 24
        %v2732 = vpop.permute.xlu0 %2731
        %v2733 = vunpack.c.l.b16 %v2564
        %v2734 = vunpack.c.l.b16 %v2571
        %v2735 = vpack.c.b16 %v2734, %v2733
        %2736 = vrot.lane.b32.xlu0 %v2735, 28
        %v2737 = vpop.permute.xlu0 %2736
        %v2738 = vunpack.c.l.b16 %v2579
        %v2739 = vunpack.c.l.b16 %v2584
        %v2740 = vunpack.c.l.b16 %v2592
        %v2741 = vunpack.c.l.b16 %v2597
        %v2742 = vpack.c.b16 %v2739, %v2738
        %v2743 = vpack.c.b16 %v2741, %v2740
        %2744 = vrot.lane.b32.xlu0 %v2647, 32
        %v2745 = vpop.permute.xlu0 %2744
        %2746 = vrot.lane.b32.xlu0 %v2648, 32
        %v2747 = vpop.permute.xlu0 %2746
        %2748 = vrot.lane.b32.xlu0 %v2649, 32
        %v2749 = vpop.permute.xlu0 %2748
        %2750 = vrot.lane.b32.xlu0 %v2650, 32
        %v2751 = vpop.permute.xlu0 %2750
        %2752 = vrot.lane.b32.xlu0 %v2693, 32
        %v2753 = vpop.permute.xlu0 %2752
        %2754 = vrot.lane.b32.xlu0 %v2694, 32
        %v2755 = vpop.permute.xlu0 %2754
        %2756 = vrot.lane.b32.xlu0 %v2742, 32
        %v2757 = vpop.permute.xlu0 %2756
        %2758 = vrot.lane.b32.xlu0 %v2743, 32
        %v2759 = vpop.permute.xlu0 %2758
        %v2762 = vsel %vm970, %v2614, %v2626
        %v2764 = vsel %vm970, %v2615, %v1580
        %v2766 = vsel %vm970, %v2616, %v1582
        %v2768 = vsel %vm970, %v2617, %v1584
        %v2770 = vsel %vm970, %v2618, %v1586
        %v2772 = vsel %vm970, %v2619, %v1588
        %v2774 = vsel %vm970, %v2620, %v1590
        %v2776 = vsel %vm970, %v2621, %v1592
        %v2778 = vsel %vm1770, %v2762, %v2652
        %v2780 = vsel %vm1770, %v2764, %v2654
        %v2782 = vsel %vm1770, %v2766, %v2656
        %v2784 = vsel %vm1770, %v2768, %v2658
        %v2786 = vsel %vm1770, %v2770, %v2660
        %v2788 = vsel %vm1770, %v2772, %v2662
        %v2790 = vsel %vm1770, %v2774, %v2664
        %v2792 = vsel %vm1770, %v2776, %v2666
        %v2794 = vsel %vm1787, %v2778, %v2674
        %v2796 = vsel %vm1787, %v2780, %v2676
        %v2798 = vsel %vm1787, %v2782, %v2678
        %v2800 = vsel %vm1787, %v2784, %v2680
        %v2802 = vsel %vm1787, %v2786, %v2682
        %v2804 = vsel %vm1787, %v2788, %v2684
        %v2806 = vsel %vm1787, %v2790, %v2686
        %v2808 = vsel %vm1787, %v2792, %v2688
        %v2809 = vsel %vm1804, %v2794, %v1655
        %v2810 = vsel %vm1804, %v2796, %v1657
        %v2811 = vsel %vm1804, %v2798, %v1659
        %v2812 = vsel %vm1804, %v2800, %v1661
        %v2813 = vsel %vm1804, %v2802, %v1663
        %v2814 = vsel %vm1804, %v2804, %v1665
        %v2815 = vsel %vm1804, %v2806, %v1667
        %v2816 = vsel %vm1804, %v2808, %v1669
        %v2818 = vsel %vm1821, %v2809, %v2696
        %v2820 = vsel %vm1821, %v2810, %v2698
        %v2822 = vsel %vm1821, %v2811, %v2700
        %v2824 = vsel %vm1821, %v2812, %v2702
        %v2826 = vsel %vm1821, %v2813, %v2704
        %v2828 = vsel %vm1821, %v2814, %v2706
        %v2830 = vsel %vm1821, %v2815, %v2708
        %v2832 = vsel %vm1821, %v2816, %v2710
        %v2834 = vsel %vm1838, %v2818, %v2718
        %v2836 = vsel %vm1838, %v2820, %v2720
        %v2838 = vsel %vm1838, %v2822, %v2722
        %v2840 = vsel %vm1838, %v2824, %v2724
        %v2842 = vsel %vm1838, %v2826, %v2726
        %v2844 = vsel %vm1838, %v2828, %v2728
        %v2846 = vsel %vm1838, %v2830, %v2730
        %v2848 = vsel %vm1838, %v2832, %v2732
        %v2849 = vsel %vm1855, %v2834, %v1714
        %v2850 = vsel %vm1855, %v2836, %v1716
        %v2851 = vsel %vm1855, %v2838, %v1718
        %v2852 = vsel %vm1855, %v2840, %v1720
        %v2853 = vsel %vm1855, %v2842, %v1722
        %v2854 = vsel %vm1855, %v2844, %v1724
        %v2855 = vsel %vm1855, %v2846, %v1726
        %v2857 = vsel %vm1855, %v2848, %v2737
        %v2859 = vsel %vm1182, %v2849, %v2745
        %v2861 = vsel %vm1182, %v2850, %v2747
        %v2863 = vsel %vm1182, %v2851, %v2749
        %v2865 = vsel %vm1182, %v2852, %v2751
        %v2867 = vsel %vm1182, %v2853, %v2753
        %v2869 = vsel %vm1182, %v2854, %v2755
        %v2871 = vsel %vm1182, %v2855, %v2757
        %v2873 = vsel %vm1182, %v2857, %v2759
        %v2874 = vld [vmem:[%s9] sm:$0xf]
        %v2875 = vld [vmem:[%s9 + $0x4] sm:$0xf]
        %v2876 = vld [vmem:[%s9 + $0x8] sm:$0xf]
        %v2877 = vld [vmem:[%s9 + $0xc] sm:$0xf]
        %v2878 = vld [vmem:[%s9 + $0x10] sm:$0x3]
        %v2884 = vunpack.c.l.b16 %v2874
        %v2885 = vunpack.c.l.b16 %v2875
        %v2886 = vunpack.c.l.b16 %v2876
        %v2887 = vunpack.c.l.b16 %v2877
        %v2888 = vunpack.c.l.b16 %v2878
        %v2889 = vpack.c.b16 %v2885, %v2884
        %v2890 = vpack.c.b16 %v2887, %v2886
        %v2891 = vpack.c.b16 %v2888, %v2888
        %v2894 = vsel %vm1908, %v2859, 0
        %v2896 = vsel %vm1908, %v2861, 0
        %v2898 = vsel %vm1908, %v2863, 0
        %v2900 = vsel %vm1908, %v2865, 0
        %v2902 = vsel %vm1908, %v2867, 0
        %v2904 = vsel %vm1908, %v2869, 0
        %v2906 = vsel %vm1908, %v2871, 0
        %v2908 = vsel %vm1908, %v2873, 0
        %v2911 = vsel %vm995, %v2891, 0
        %2913 = vmatprep.subr.bf16.mxu0 0
        %2914 = vmatpush1.bf16.msra.mxu0 0
        %2915 = vmatprep.subr.bf16.mxu0 0
        %2916 = vmatpush1.bf16.msra.mxu0 0
        %2917 = vmatprep.subr.bf16.mxu0 0
        %2918 = vmatpush1.bf16.msra.mxu0 0
        %2919 = vmatprep.subr.bf16.mxu0 0
        %2920 = vmatpush1.bf16.msra.mxu0 0
        %2921 = vmatprep.subr.bf16.mxu0 0
        %2922 = vmatpush1.bf16.msra.mxu0 0
        %2923 = vmatprep.subr.bf16.mxu0 0
        %2924 = vmatpush1.bf16.msra.mxu0 %v2911
        %2925 = vmatprep.subr.bf16.mxu0 0
        %2926 = vmatpush1.bf16.msra.mxu0 %v2890
        %2927 = vmatprep.subr.bf16.mxu0 0
        %2928 = vmatpush1.bf16.msra.mxu0 %v2889
        %2929 = vmatprep.subr.bf16.mxu0 0
        %2930 = vmatpush2.bf16.msra.mxu0 0
        %2931 = vmatprep.subr.bf16.mxu0 0
        %2932 = vmatpush2.bf16.msra.mxu0 0
        %2933 = vmatprep.subr.bf16.mxu0 0
        %2934 = vmatpush2.bf16.msra.mxu0 0
        %2935 = vmatprep.subr.bf16.mxu0 0
        %2936 = vmatpush2.bf16.msra.mxu0 0
        %2937 = vmatprep.subr.bf16.mxu0 0
        %2938 = vmatpush2.bf16.msra.mxu0 0
        %2939 = vmatprep.subr.bf16.mxu0 0
        %2940 = vmatpush2.bf16.msra.mxu0 0
        %2941 = vmatprep.subr.bf16.mxu0 0
        %2942 = vmatpush2.bf16.msra.mxu0 0
        %2943 = vmatprep.subr.bf16.mxu0 0
        %2944 = vmatpush2.bf16.msra.mxu0 0
        %2945 = vmatprep.mubr.bf16.mxu0 0
        %2946 = vmatmul.mubr.bf16.gmra.mxu0 %v2894
        %v2947 = vpop.f32.mrf.mxu0
        %v2948 = vadd.f32 0.0, %v2947
        %v2949 = vpop.f32.mrf.mxu0
        %v2950 = vpop.f32.mrf.mxu0
        %v2951 = vadd.f32 0.0, %v2950
        %v2952 = vpop.f32.mrf.mxu0
        %2953 = vmatprep.mubr.bf16.mxu0 0
        %2954 = vmatmul.mubr.bf16.gmra.mxu0 %v2896
        %v2955 = vpop.f32.mrf.mxu0
        %v2956 = vadd.f32 0.0, %v2955
        %v2957 = vpop.f32.mrf.mxu0
        %v2958 = vpop.f32.mrf.mxu0
        %v2959 = vadd.f32 0.0, %v2958
        %v2960 = vpop.f32.mrf.mxu0
        %2961 = vmatprep.mubr.bf16.mxu0 0
        %2962 = vmatmul.mubr.bf16.gmra.mxu0 %v2898
        %v2963 = vpop.f32.mrf.mxu0
        %v2964 = vadd.f32 0.0, %v2963
        %v2965 = vpop.f32.mrf.mxu0
        %v2966 = vpop.f32.mrf.mxu0
        %v2967 = vadd.f32 0.0, %v2966
        %v2968 = vpop.f32.mrf.mxu0
        %2969 = vmatprep.mubr.bf16.mxu0 0
        %2970 = vmatmul.mubr.bf16.gmra.mxu0 %v2900
        %v2971 = vpop.f32.mrf.mxu0
        %v2972 = vadd.f32 0.0, %v2971
        %v2973 = vpop.f32.mrf.mxu0
        %v2974 = vpop.f32.mrf.mxu0
        %v2975 = vadd.f32 0.0, %v2974
        %v2976 = vpop.f32.mrf.mxu0
        %2977 = vmatprep.mubr.bf16.mxu0 0
        %2978 = vmatmul.mubr.bf16.gmra.mxu0 %v2902
        %v2979 = vpop.f32.mrf.mxu0
        %v2980 = vadd.f32 0.0, %v2979
        %v2981 = vpop.f32.mrf.mxu0
        %v2982 = vpop.f32.mrf.mxu0
        %v2983 = vadd.f32 0.0, %v2982
        %v2984 = vpop.f32.mrf.mxu0
        %2985 = vmatprep.mubr.bf16.mxu0 0
        %2986 = vmatmul.mubr.bf16.gmra.mxu0 %v2904
        %v2987 = vpop.f32.mrf.mxu0
        %v2988 = vadd.f32 0.0, %v2987
        %v2989 = vpop.f32.mrf.mxu0
        %v2990 = vpop.f32.mrf.mxu0
        %v2991 = vadd.f32 0.0, %v2990
        %v2992 = vpop.f32.mrf.mxu0
        %2993 = vmatprep.mubr.bf16.mxu0 0
        %2994 = vmatmul.mubr.bf16.gmra.mxu0 %v2906
        %v2995 = vpop.f32.mrf.mxu0
        %v2996 = vadd.f32 0.0, %v2995
        %v2997 = vpop.f32.mrf.mxu0
        %v2998 = vpop.f32.mrf.mxu0
        %v2999 = vadd.f32 0.0, %v2998
        %v3000 = vpop.f32.mrf.mxu0
        %3001 = vmatprep.mubr.bf16.mxu0 0
        %3002 = vmatmul.mubr.bf16.gmra.mxu0 %v2908
        %v3003 = vpop.f32.mrf.mxu0
        %v3004 = vadd.f32 0.0, %v3003
        %v3005 = vpop.f32.mrf.mxu0
        %v3006 = vpop.f32.mrf.mxu0
        %v3007 = vadd.f32 0.0, %v3006
        %v3008 = vpop.f32.mrf.mxu0
        %3009 = vdwg.mxu0
        %v3010 = vld [vmem:[%s10] sm:$0x1]
        %v3012 = vlaneseq
        %v3013 = vshrl.u32 %v3012, 7
        %v3014 = vsub.s32 0, %v3013
        %v3015 = vrot.slane %v3010, %v3014
        %v3017 = vmul.f32 %v2948, %v3015
        %v3018 = vmul.f32 %v2951, %v3015
        %v3019 = vmul.f32 %v2956, %v3015
        %v3020 = vmul.f32 %v2959, %v3015
        %v3021 = vmul.f32 %v2964, %v3015
        %v3022 = vmul.f32 %v2967, %v3015
        %v3023 = vmul.f32 %v2972, %v3015
        %v3024 = vmul.f32 %v2975, %v3015
        %v3025 = vmul.f32 %v2980, %v3015
        %v3026 = vmul.f32 %v2983, %v3015
        %v3027 = vmul.f32 %v2988, %v3015
        %v3028 = vmul.f32 %v2991, %v3015
        %v3029 = vmul.f32 %v2996, %v3015
        %v3030 = vmul.f32 %v2999, %v3015
        %v3031 = vmul.f32 %v3004, %v3015
        %v3032 = vmul.f32 %v3007, %v3015
        %v3033 = vld [vmem:[%s11] sm:$0x1]
        %v3035 = vlaneseq
        %v3036 = vshrl.u32 %v3035, 7
        %v3037 = vsub.s32 0, %v3036
        %v3038 = vrot.slane %v3033, %v3037
        %v3040 = vadd.f32 %v3017, %v3038
        %v3041 = vadd.f32 %v3018, %v3038
        %v3042 = vadd.f32 %v3019, %v3038
        %v3043 = vadd.f32 %v3020, %v3038
        %v3044 = vadd.f32 %v3021, %v3038
        %v3045 = vadd.f32 %v3022, %v3038
        %v3046 = vadd.f32 %v3023, %v3038
        %v3047 = vadd.f32 %v3024, %v3038
        %v3048 = vadd.f32 %v3025, %v3038
        %v3049 = vadd.f32 %v3026, %v3038
        %v3050 = vadd.f32 %v3027, %v3038
        %v3051 = vadd.f32 %v3028, %v3038
        %v3052 = vadd.f32 %v3029, %v3038
        %v3053 = vadd.f32 %v3030, %v3038
        %v3054 = vadd.f32 %v3031, %v3038
        %v3055 = vadd.f32 %v3032, %v3038
        %v3056 = vmax.f32 %v3040, 0.0
        %v3057 = vmax.f32 %v3041, 0.0
        %v3058 = vmax.f32 %v3042, 0.0
        %v3059 = vmax.f32 %v3043, 0.0
        %v3060 = vmax.f32 %v3044, 0.0
        %v3061 = vmax.f32 %v3045, 0.0
        %v3062 = vmax.f32 %v3046, 0.0
        %v3063 = vmax.f32 %v3047, 0.0
        %v3064 = vmax.f32 %v3048, 0.0
        %v3065 = vmax.f32 %v3049, 0.0
        %v3066 = vmax.f32 %v3050, 0.0
        %v3067 = vmax.f32 %v3051, 0.0
        %v3068 = vmax.f32 %v3052, 0.0
        %v3069 = vmax.f32 %v3053, 0.0
        %v3070 = vmax.f32 %v3054, 0.0
        %v3071 = vmax.f32 %v3055, 0.0
        %v3072 = vpack.c.bf16 %v3057, %v3056
        %v3073 = vpack.c.bf16 %v3059, %v3058
        %v3074 = vpack.c.bf16 %v3061, %v3060
        %v3075 = vpack.c.bf16 %v3063, %v3062
        %v3076 = vpack.c.bf16 %v3065, %v3064
        %v3077 = vpack.c.bf16 %v3067, %v3066
        %v3078 = vpack.c.bf16 %v3069, %v3068
        %v3079 = vpack.c.bf16 %v3071, %v3070
        %v3080 = vld [vmem:[%s15 + $0x20] sm:$0xf]
        %v3081 = vld [vmem:[%s15 + $0x24] sm:$0xf]
        %v3082 = vld [vmem:[%s15 + $0x28] sm:$0xf]
        %v3083 = vld [vmem:[%s15 + $0x2c] sm:$0xf]
        %v3088 = vunpack.c.l.b16 %v3080
        %v3089 = vunpack.c.l.b16 %v3081
        %v3090 = vunpack.c.l.b16 %v3082
        %v3091 = vunpack.c.l.b16 %v3083
        %v3092 = vpack.c.b16 %v3089, %v3088
        %v3093 = vpack.c.b16 %v3091, %v3090
        %v3097 = vsel %vm1182, %v3072, 0
        %v3100 = vsel %vm1182, %v3073, 0
        %v3103 = vsel %vm1182, %v3074, 0
        %v3106 = vsel %vm1182, %v3075, 0
        %v3109 = vsel %vm1182, %v3076, 0
        %v3112 = vsel %vm1182, %v3077, 0
        %v3115 = vsel %vm1182, %v3078, 0
        %v3118 = vsel %vm1182, %v3079, 0
        %3120 = vmatprep.subr.bf16.mxu0 0
        %3121 = vmatpush1.bf16.msra.mxu0 0
        %3122 = vmatprep.subr.bf16.mxu0 0
        %3123 = vmatpush1.bf16.msra.mxu0 0
        %3124 = vmatprep.subr.bf16.mxu0 0
        %3125 = vmatpush1.bf16.msra.mxu0 0
        %3126 = vmatprep.subr.bf16.mxu0 0
        %3127 = vmatpush1.bf16.msra.mxu0 0
        %3128 = vmatprep.subr.bf16.mxu0 0
        %3129 = vmatpush1.bf16.msra.mxu0 0
        %3130 = vmatprep.subr.bf16.mxu0 0
        %3131 = vmatpush1.bf16.msra.mxu0 0
        %3132 = vmatprep.subr.bf16.mxu0 0
        %3133 = vmatpush1.bf16.msra.mxu0 %v3093
        %3134 = vmatprep.subr.bf16.mxu0 0
        %3135 = vmatpush1.bf16.msra.mxu0 %v3092
        %3136 = vmatprep.subr.bf16.mxu0 0
        %3137 = vmatpush2.bf16.msra.mxu0 0
        %3138 = vmatprep.subr.bf16.mxu0 0
        %3139 = vmatpush2.bf16.msra.mxu0 0
        %3140 = vmatprep.subr.bf16.mxu0 0
        %3141 = vmatpush2.bf16.msra.mxu0 0
        %3142 = vmatprep.subr.bf16.mxu0 0
        %3143 = vmatpush2.bf16.msra.mxu0 0
        %3144 = vmatprep.subr.bf16.mxu0 0
        %3145 = vmatpush2.bf16.msra.mxu0 0
        %3146 = vmatprep.subr.bf16.mxu0 0
        %3147 = vmatpush2.bf16.msra.mxu0 0
        %3148 = vmatprep.subr.bf16.mxu0 0
        %3149 = vmatpush2.bf16.msra.mxu0 0
        %3150 = vmatprep.subr.bf16.mxu0 0
        %3151 = vmatpush2.bf16.msra.mxu0 0
        %3152 = vmatprep.mubr.bf16.mxu0 0
        %3153 = vmatmul.mubr.bf16.gmra.mxu0 %v3097
        %v3154 = vpop.f32.mrf.mxu0
        %v3155 = vadd.f32 0.0, %v3154
        %v3156 = vpop.f32.mrf.mxu0
        %v3157 = vpop.f32.mrf.mxu0
        %v3158 = vadd.f32 0.0, %v3157
        %v3159 = vpop.f32.mrf.mxu0
        %3160 = vmatprep.mubr.bf16.mxu0 0
        %3161 = vmatmul.mubr.bf16.gmra.mxu0 %v3100
        %v3162 = vpop.f32.mrf.mxu0
        %v3163 = vadd.f32 0.0, %v3162
        %v3164 = vpop.f32.mrf.mxu0
        %v3165 = vpop.f32.mrf.mxu0
        %v3166 = vadd.f32 0.0, %v3165
        %v3167 = vpop.f32.mrf.mxu0
        %3168 = vmatprep.mubr.bf16.mxu0 0
        %3169 = vmatmul.mubr.bf16.gmra.mxu0 %v3103
        %v3170 = vpop.f32.mrf.mxu0
        %v3171 = vadd.f32 0.0, %v3170
        %v3172 = vpop.f32.mrf.mxu0
        %v3173 = vpop.f32.mrf.mxu0
        %v3174 = vadd.f32 0.0, %v3173
        %v3175 = vpop.f32.mrf.mxu0
        %3176 = vmatprep.mubr.bf16.mxu0 0
        %3177 = vmatmul.mubr.bf16.gmra.mxu0 %v3106
        %v3178 = vpop.f32.mrf.mxu0
        %v3179 = vadd.f32 0.0, %v3178
        %v3180 = vpop.f32.mrf.mxu0
        %v3181 = vpop.f32.mrf.mxu0
        %v3182 = vadd.f32 0.0, %v3181
        %v3183 = vpop.f32.mrf.mxu0
        %3184 = vmatprep.mubr.bf16.mxu0 0
        %3185 = vmatmul.mubr.bf16.gmra.mxu0 %v3109
        %v3186 = vpop.f32.mrf.mxu0
        %v3187 = vadd.f32 0.0, %v3186
        %v3188 = vpop.f32.mrf.mxu0
        %v3189 = vpop.f32.mrf.mxu0
        %v3190 = vadd.f32 0.0, %v3189
        %v3191 = vpop.f32.mrf.mxu0
        %3192 = vmatprep.mubr.bf16.mxu0 0
        %3193 = vmatmul.mubr.bf16.gmra.mxu0 %v3112
        %v3194 = vpop.f32.mrf.mxu0
        %v3195 = vadd.f32 0.0, %v3194
        %v3196 = vpop.f32.mrf.mxu0
        %v3197 = vpop.f32.mrf.mxu0
        %v3198 = vadd.f32 0.0, %v3197
        %v3199 = vpop.f32.mrf.mxu0
        %3200 = vmatprep.mubr.bf16.mxu0 0
        %3201 = vmatmul.mubr.bf16.gmra.mxu0 %v3115
        %v3202 = vpop.f32.mrf.mxu0
        %v3203 = vadd.f32 0.0, %v3202
        %v3204 = vpop.f32.mrf.mxu0
        %v3205 = vpop.f32.mrf.mxu0
        %v3206 = vadd.f32 0.0, %v3205
        %v3207 = vpop.f32.mrf.mxu0
        %3208 = vmatprep.mubr.bf16.mxu0 0
        %3209 = vmatmul.mubr.bf16.gmra.mxu0 %v3118
        %v3210 = vpop.f32.mrf.mxu0
        %v3211 = vadd.f32 0.0, %v3210
        %v3212 = vpop.f32.mrf.mxu0
        %v3213 = vpop.f32.mrf.mxu0
        %v3214 = vadd.f32 0.0, %v3213
        %v3215 = vpop.f32.mrf.mxu0
        %3216 = vdwg.mxu0
        %v3217 = vadd.f32 %v2232, %v3155
        %v3218 = vadd.f32 %v2233, %v3158
        %v3219 = vadd.f32 %v2234, %v3163
        %v3220 = vadd.f32 %v2235, %v3166
        %v3221 = vadd.f32 %v2236, %v3171
        %v3222 = vadd.f32 %v2237, %v3174
        %v3223 = vadd.f32 %v2238, %v3179
        %v3224 = vadd.f32 %v2239, %v3182
        %v3225 = vadd.f32 %v2240, %v3187
        %v3226 = vadd.f32 %v2241, %v3190
        %v3227 = vadd.f32 %v2242, %v3195
        %v3228 = vadd.f32 %v2243, %v3198
        %v3229 = vadd.f32 %v2244, %v3203
        %v3230 = vadd.f32 %v2245, %v3206
        %v3231 = vadd.f32 %v2246, %v3211
        %v3232 = vadd.f32 %v2247, %v3214
        %v3234 = vshrl.u32 %v669, 16
        %v3236 = vrot.slane %v3234, 5
        %v3237 = vshll.u32 %v669, 16
        %v3239 = vrot.slane %v3237, 6
        %v3240 = vor.u32 %v3236, %v3239
        %v3241 = vrot.slane %v3240, 4
        %v3243 = vshrl.u32 %v670, 16
        %v3245 = vrot.slane %v3243, 5
        %v3246 = vshll.u32 %v670, 16
        %v3248 = vrot.slane %v3246, 6
        %v3249 = vor.u32 %v3245, %v3248
        %v3250 = vsel %vm720, %v3241, %v3249
        %v3251 = vrot.slane %v3249, 4
        %v3253 = vshrl.u32 %v671, 16
        %v3255 = vrot.slane %v3253, 5
        %v3256 = vshll.u32 %v671, 16
        %v3258 = vrot.slane %v3256, 6
        %v3259 = vor.u32 %v3255, %v3258
        %v3260 = vsel %vm720, %v3251, %v3259
        %vm3267 = vcmask 1040384
        %vm3268 = vcmask 1044484
        %vm3269 = vmor %vm3267, %vm3268
        %v3270 = vrot.slane %v669, 7
        %v3271 = vrot.slane %v3270, 4
        %v3272 = vrot.slane %v670, 7
        %v3273 = vsel %vm3269, %v3271, %v3272
        %v3274 = vrot.slane %v3272, 4
        %v3275 = vrot.slane %v671, 7
        %v3276 = vsel %vm3269, %v3274, %v3275
        %v3277 = vrot.slane %v672, 7
        %v3278 = vrot.slane %v3277, 4
        %v3279 = vrot.slane %v673, 7
        %v3280 = vsel %vm3269, %v3278, %v3279
        %v3281 = vrot.slane %v3279, 4
        %v3282 = vrot.slane %v674, 7
        %v3283 = vsel %vm3269, %v3281, %v3282
        %v3284 = vrot.slane %v675, 7
        %v3285 = vrot.slane %v3284, 4
        %v3286 = vrot.slane %v676, 7
        %v3287 = vsel %vm3269, %v3285, %v3286
        %v3288 = vrot.slane %v3286, 4
        %v3289 = vrot.slane %v677, 7
        %v3290 = vsel %vm3269, %v3288, %v3289
        %v3291 = vrot.slane %v678, 7
        %v3292 = vrot.slane %v3291, 4
        %v3293 = vrot.slane %v679, 7
        %v3294 = vsel %vm3269, %v3292, %v3293
        %v3295 = vrot.slane %v3293, 4
        %v3296 = vrot.slane %v680, 7
        %v3297 = vsel %vm3269, %v3295, %v3296
        %v3298 = vrot.slane %v681, 7
        %v3299 = vrot.slane %v3298, 4
        %v3300 = vrot.slane %v682, 7
        %v3301 = vsel %vm3269, %v3299, %v3300
        %v3302 = vrot.slane %v3300, 4
        %v3303 = vrot.slane %v683, 7
        %v3304 = vsel %vm3269, %v3302, %v3303
        %v3305 = vrot.slane %v684, 7
        %v3306 = vrot.slane %v3305, 4
        %v3307 = vrot.slane %v685, 7
        %v3308 = vsel %vm3269, %v3306, %v3307
        %v3309 = vrot.slane %v3307, 4
        %v3310 = vrot.slane %v686, 7
        %v3311 = vsel %vm3269, %v3309, %v3310
        %v3312 = vrot.slane %v687, 7
        %v3313 = vrot.slane %v3312, 4
        %v3314 = vrot.slane %v688, 7
        %v3315 = vsel %vm3269, %v3313, %v3314
        %v3316 = vrot.slane %v3314, 4
        %v3317 = vrot.slane %v689, 7
        %v3318 = vsel %vm3269, %v3316, %v3317
        %v3319 = vrot.slane %v690, 7
        %v3320 = vrot.slane %v3319, 4
        %v3321 = vrot.slane %v691, 7
        %v3322 = vsel %vm3269, %v3320, %v3321
        %v3323 = vrot.slane %v3321, 4
        %v3324 = vrot.slane %v692, 7
        %v3325 = vsel %vm3269, %v3323, %v3324
        %v3326 = vrot.slane %v693, 7
        %v3327 = vrot.slane %v3326, 4
        %v3328 = vrot.slane %v694, 7
        %v3329 = vsel %vm3269, %v3327, %v3328
        %v3330 = vrot.slane %v3328, 4
        %v3331 = vrot.slane %v695, 7
        %v3332 = vsel %vm3269, %v3330, %v3331
        %v3333 = vrot.slane %v696, 7
        %v3334 = vrot.slane %v3333, 4
        %v3335 = vrot.slane %v697, 7
        %v3336 = vsel %vm3269, %v3334, %v3335
        %v3337 = vrot.slane %v3335, 4
        %v3338 = vrot.slane %v698, 7
        %v3339 = vsel %vm3269, %v3337, %v3338
        %v3340 = vrot.slane %v699, 7
        %v3341 = vrot.slane %v3340, 4
        %v3342 = vrot.slane %v700, 7
        %v3343 = vsel %vm3269, %v3341, %v3342
        %v3344 = vrot.slane %v3342, 4
        %v3345 = vrot.slane %v701, 7
        %v3346 = vsel %vm3269, %v3344, %v3345
        %v3348 = vshrl.u32 %v708, 16
        %v3350 = vrot.slane %v3348, 5
        %v3351 = vshll.u32 %v708, 16
        %v3353 = vrot.slane %v3351, 6
        %v3354 = vor.u32 %v3350, %v3353
        %v3355 = vrot.slane %v3354, 4
        %v3357 = vshrl.u32 %v709, 16
        %v3359 = vrot.slane %v3357, 5
        %v3360 = vshll.u32 %v709, 16
        %v3362 = vrot.slane %v3360, 6
        %v3363 = vor.u32 %v3359, %v3362
        %v3364 = vsel %vm720, %v3355, %v3363
        %v3365 = vrot.slane %v3363, 4
        %v3367 = vshrl.u32 %v710, 16
        %v3369 = vrot.slane %v3367, 5
        %v3370 = vshll.u32 %v710, 16
        %v3372 = vrot.slane %v3370, 6
        %v3373 = vor.u32 %v3369, %v3372
        %v3374 = vsel %vm720, %v3365, %v3373
        %v3381 = vrot.slane %v702, 7
        %v3382 = vrot.slane %v3381, 4
        %v3383 = vrot.slane %v703, 7
        %v3384 = vsel %vm3269, %v3382, %v3383
        %v3385 = vrot.slane %v3383, 4
        %v3386 = vrot.slane %v704, 7
        %v3387 = vsel %vm3269, %v3385, %v3386
        %v3388 = vrot.slane %v705, 7
        %v3389 = vrot.slane %v3388, 4
        %v3390 = vrot.slane %v706, 7
        %v3391 = vsel %vm3269, %v3389, %v3390
        %v3392 = vrot.slane %v3390, 4
        %v3393 = vrot.slane %v707, 7
        %v3394 = vsel %vm3269, %v3392, %v3393
        %v3395 = vrot.slane %v708, 7
        %v3396 = vrot.slane %v3395, 4
        %v3397 = vrot.slane %v709, 7
        %v3398 = vsel %vm3269, %v3396, %v3397
        %v3399 = vrot.slane %v3397, 4
        %v3400 = vrot.slane %v710, 7
        %v3401 = vsel %vm3269, %v3399, %v3400
        %v3402 = vunpack.c.l.b16 %v669
        %v3403 = vunpack.c.l.b16 %v670
        %v3404 = vunpack.c.l.b16 %v672
        %v3405 = vunpack.c.l.b16 %v673
        %v3406 = vunpack.c.l.b16 %v675
        %v3407 = vunpack.c.l.b16 %v676
        %v3408 = vunpack.c.l.b16 %v678
        %v3409 = vunpack.c.l.b16 %v679
        %v3410 = vunpack.c.l.b16 %v681
        %v3411 = vunpack.c.l.b16 %v682
        %v3412 = vunpack.c.l.b16 %v684
        %v3413 = vunpack.c.l.b16 %v685
        %v3414 = vunpack.c.l.b16 %v687
        %v3415 = vunpack.c.l.b16 %v688
        %v3416 = vunpack.c.l.b16 %v690
        %v3417 = vunpack.c.l.b16 %v691
        %v3418 = vpack.c.b16 %v3403, %v3402
        %v3419 = vpack.c.b16 %v3405, %v3404
        %v3420 = vpack.c.b16 %v3407, %v3406
        %v3421 = vpack.c.b16 %v3409, %v3408
        %v3422 = vpack.c.b16 %v3411, %v3410
        %v3423 = vpack.c.b16 %v3413, %v3412
        %v3424 = vpack.c.b16 %v3415, %v3414
        %v3425 = vpack.c.b16 %v3417, %v3416
        %v3426 = vunpack.c.l.b16 %v3250
        %v3427 = vunpack.c.l.b16 %v3260
        %v3428 = vpack.c.b16 %v3427, %v3426
        %3429 = vrot.lane.b32.xlu0 %v3428, 4
        %v3430 = vpop.permute.xlu0 %3429
        %v3431 = vunpack.c.l.b16 %v3273
        %v3432 = vunpack.c.l.b16 %v3276
        %v3433 = vunpack.c.l.b16 %v3280
        %v3434 = vunpack.c.l.b16 %v3283
        %v3435 = vunpack.c.l.b16 %v3287
        %v3436 = vunpack.c.l.b16 %v3290
        %v3437 = vunpack.c.l.b16 %v3294
        %v3438 = vunpack.c.l.b16 %v3297
        %v3439 = vunpack.c.l.b16 %v3301
        %v3440 = vunpack.c.l.b16 %v3304
        %v3441 = vunpack.c.l.b16 %v3308
        %v3442 = vunpack.c.l.b16 %v3311
        %v3443 = vunpack.c.l.b16 %v3315
        %v3444 = vunpack.c.l.b16 %v3318
        %v3445 = vunpack.c.l.b16 %v3322
        %v3446 = vunpack.c.l.b16 %v3325
        %v3447 = vpack.c.b16 %v3432, %v3431
        %v3448 = vpack.c.b16 %v3434, %v3433
        %v3449 = vpack.c.b16 %v3436, %v3435
        %v3450 = vpack.c.b16 %v3438, %v3437
        %v3451 = vpack.c.b16 %v3440, %v3439
        %v3452 = vpack.c.b16 %v3442, %v3441
        %v3453 = vpack.c.b16 %v3444, %v3443
        %v3454 = vpack.c.b16 %v3446, %v3445
        %3455 = vrot.lane.b32.xlu0 %v3447, 8
        %v3456 = vpop.permute.xlu0 %3455
        %3457 = vrot.lane.b32.xlu0 %v3448, 8
        %v3458 = vpop.permute.xlu0 %3457
        %3459 = vrot.lane.b32.xlu0 %v3449, 8
        %v3460 = vpop.permute.xlu0 %3459
        %3461 = vrot.lane.b32.xlu0 %v3450, 8
        %v3462 = vpop.permute.xlu0 %3461
        %3463 = vrot.lane.b32.xlu0 %v3451, 8
        %v3464 = vpop.permute.xlu0 %3463
        %3465 = vrot.lane.b32.xlu0 %v3452, 8
        %v3466 = vpop.permute.xlu0 %3465
        %3467 = vrot.lane.b32.xlu0 %v3453, 8
        %v3468 = vpop.permute.xlu0 %3467
        %3469 = vrot.lane.b32.xlu0 %v3454, 8
        %v3470 = vpop.permute.xlu0 %3469
        %v3471 = vunpack.c.l.b16 %v693
        %v3472 = vunpack.c.l.b16 %v694
        %v3473 = vunpack.c.l.b16 %v696
        %v3474 = vunpack.c.l.b16 %v697
        %v3475 = vunpack.c.l.b16 %v699
        %v3476 = vunpack.c.l.b16 %v700
        %v3477 = vpack.c.b16 %v3472, %v3471
        %v3478 = vpack.c.b16 %v3474, %v3473
        %v3479 = vpack.c.b16 %v3476, %v3475
        %3480 = vrot.lane.b32.xlu0 %v3421, 12
        %v3481 = vpop.permute.xlu0 %3480
        %3482 = vrot.lane.b32.xlu0 %v3422, 12
        %v3483 = vpop.permute.xlu0 %3482
        %3484 = vrot.lane.b32.xlu0 %v3423, 12
        %v3485 = vpop.permute.xlu0 %3484
        %3486 = vrot.lane.b32.xlu0 %v3424, 12
        %v3487 = vpop.permute.xlu0 %3486
        %3488 = vrot.lane.b32.xlu0 %v3425, 12
        %v3489 = vpop.permute.xlu0 %3488
        %3490 = vrot.lane.b32.xlu0 %v3477, 12
        %v3491 = vpop.permute.xlu0 %3490
        %3492 = vrot.lane.b32.xlu0 %v3478, 12
        %v3493 = vpop.permute.xlu0 %3492
        %3494 = vrot.lane.b32.xlu0 %v3479, 12
        %v3495 = vpop.permute.xlu0 %3494
        %v3496 = vunpack.c.l.b16 %v3329
        %v3497 = vunpack.c.l.b16 %v3332
        %v3498 = vunpack.c.l.b16 %v3336
        %v3499 = vunpack.c.l.b16 %v3339
        %v3500 = vunpack.c.l.b16 %v3343
        %v3501 = vunpack.c.l.b16 %v3346
        %v3502 = vpack.c.b16 %v3497, %v3496
        %v3503 = vpack.c.b16 %v3499, %v3498
        %v3504 = vpack.c.b16 %v3501, %v3500
        %3505 = vrot.lane.b32.xlu0 %v3450, 20
        %v3506 = vpop.permute.xlu0 %3505
        %3507 = vrot.lane.b32.xlu0 %v3451, 20
        %v3508 = vpop.permute.xlu0 %3507
        %3509 = vrot.lane.b32.xlu0 %v3452, 20
        %v3510 = vpop.permute.xlu0 %3509
        %3511 = vrot.lane.b32.xlu0 %v3453, 20
        %v3512 = vpop.permute.xlu0 %3511
        %3513 = vrot.lane.b32.xlu0 %v3454, 20
        %v3514 = vpop.permute.xlu0 %3513
        %3515 = vrot.lane.b32.xlu0 %v3502, 20
        %v3516 = vpop.permute.xlu0 %3515
        %3517 = vrot.lane.b32.xlu0 %v3503, 20
        %v3518 = vpop.permute.xlu0 %3517
        %3519 = vrot.lane.b32.xlu0 %v3504, 20
        %v3520 = vpop.permute.xlu0 %3519
        %v3521 = vunpack.c.l.b16 %v702
        %v3522 = vunpack.c.l.b16 %v703
        %v3523 = vunpack.c.l.b16 %v705
        %v3524 = vunpack.c.l.b16 %v706
        %v3525 = vunpack.c.l.b16 %v708
        %v3526 = vunpack.c.l.b16 %v709
        %v3527 = vpack.c.b16 %v3522, %v3521
        %v3528 = vpack.c.b16 %v3524, %v3523
        %v3529 = vpack.c.b16 %v3526, %v3525
        %3530 = vrot.lane.b32.xlu0 %v3424, 24
        %v3531 = vpop.permute.xlu0 %3530
        %3532 = vrot.lane.b32.xlu0 %v3425, 24
        %v3533 = vpop.permute.xlu0 %3532
        %3534 = vrot.lane.b32.xlu0 %v3477, 24
        %v3535 = vpop.permute.xlu0 %3534
        %3536 = vrot.lane.b32.xlu0 %v3478, 24
        %v3537 = vpop.permute.xlu0 %3536
        %3538 = vrot.lane.b32.xlu0 %v3479, 24
        %v3539 = vpop.permute.xlu0 %3538
        %3540 = vrot.lane.b32.xlu0 %v3527, 24
        %v3541 = vpop.permute.xlu0 %3540
        %3542 = vrot.lane.b32.xlu0 %v3528, 24
        %v3543 = vpop.permute.xlu0 %3542
        %3544 = vrot.lane.b32.xlu0 %v3529, 24
        %v3545 = vpop.permute.xlu0 %3544
        %v3546 = vunpack.c.l.b16 %v3364
        %v3547 = vunpack.c.l.b16 %v3374
        %v3548 = vpack.c.b16 %v3547, %v3546
        %3549 = vrot.lane.b32.xlu0 %v3548, 28
        %v3550 = vpop.permute.xlu0 %3549
        %v3551 = vunpack.c.l.b16 %v3384
        %v3552 = vunpack.c.l.b16 %v3387
        %v3553 = vunpack.c.l.b16 %v3391
        %v3554 = vunpack.c.l.b16 %v3394
        %v3555 = vunpack.c.l.b16 %v3398
        %v3556 = vunpack.c.l.b16 %v3401
        %v3557 = vpack.c.b16 %v3552, %v3551
        %v3558 = vpack.c.b16 %v3554, %v3553
        %v3559 = vpack.c.b16 %v3556, %v3555
        %3560 = vrot.lane.b32.xlu0 %v3453, 32
        %v3561 = vpop.permute.xlu0 %3560
        %3562 = vrot.lane.b32.xlu0 %v3454, 32
        %v3563 = vpop.permute.xlu0 %3562
        %3564 = vrot.lane.b32.xlu0 %v3502, 32
        %v3565 = vpop.permute.xlu0 %3564
        %3566 = vrot.lane.b32.xlu0 %v3503, 32
        %v3567 = vpop.permute.xlu0 %3566
        %3568 = vrot.lane.b32.xlu0 %v3504, 32
        %v3569 = vpop.permute.xlu0 %3568
        %3570 = vrot.lane.b32.xlu0 %v3557, 32
        %v3571 = vpop.permute.xlu0 %3570
        %3572 = vrot.lane.b32.xlu0 %v3558, 32
        %v3573 = vpop.permute.xlu0 %3572
        %3574 = vrot.lane.b32.xlu0 %v3559, 32
        %v3575 = vpop.permute.xlu0 %3574
        %v3578 = vsel %vm970, %v3418, %v3430
        %v3580 = vsel %vm970, %v3419, %v2626
        %v3582 = vsel %vm970, %v3420, %v1580
        %v3584 = vsel %vm970, %v3421, %v1582
        %v3586 = vsel %vm970, %v3422, %v1584
        %v3588 = vsel %vm970, %v3423, %v1586
        %v3590 = vsel %vm970, %v3424, %v1588
        %v3592 = vsel %vm970, %v3425, %v1590
        %v3594 = vsel %vm1770, %v3578, %v3456
        %v3596 = vsel %vm1770, %v3580, %v3458
        %v3598 = vsel %vm1770, %v3582, %v3460
        %v3600 = vsel %vm1770, %v3584, %v3462
        %v3602 = vsel %vm1770, %v3586, %v3464
        %v3604 = vsel %vm1770, %v3588, %v3466
        %v3606 = vsel %vm1770, %v3590, %v3468
        %v3608 = vsel %vm1770, %v3592, %v3470
        %v3610 = vsel %vm1787, %v3594, %v3481
        %v3612 = vsel %vm1787, %v3596, %v3483
        %v3614 = vsel %vm1787, %v3598, %v3485
        %v3616 = vsel %vm1787, %v3600, %v3487
        %v3618 = vsel %vm1787, %v3602, %v3489
        %v3620 = vsel %vm1787, %v3604, %v3491
        %v3622 = vsel %vm1787, %v3606, %v3493
        %v3624 = vsel %vm1787, %v3608, %v3495
        %v3625 = vsel %vm1804, %v3610, %v1655
        %v3626 = vsel %vm1804, %v3612, %v1657
        %v3627 = vsel %vm1804, %v3614, %v1659
        %v3628 = vsel %vm1804, %v3616, %v1661
        %v3629 = vsel %vm1804, %v3618, %v1663
        %v3630 = vsel %vm1804, %v3620, %v1665
        %v3631 = vsel %vm1804, %v3622, %v1667
        %v3632 = vsel %vm1804, %v3624, %v1669
        %v3634 = vsel %vm1821, %v3625, %v3506
        %v3636 = vsel %vm1821, %v3626, %v3508
        %v3638 = vsel %vm1821, %v3627, %v3510
        %v3640 = vsel %vm1821, %v3628, %v3512
        %v3642 = vsel %vm1821, %v3629, %v3514
        %v3644 = vsel %vm1821, %v3630, %v3516
        %v3646 = vsel %vm1821, %v3631, %v3518
        %v3648 = vsel %vm1821, %v3632, %v3520
        %v3650 = vsel %vm1838, %v3634, %v3531
        %v3652 = vsel %vm1838, %v3636, %v3533
        %v3654 = vsel %vm1838, %v3638, %v3535
        %v3656 = vsel %vm1838, %v3640, %v3537
        %v3658 = vsel %vm1838, %v3642, %v3539
        %v3660 = vsel %vm1838, %v3644, %v3541
        %v3662 = vsel %vm1838, %v3646, %v3543
        %v3664 = vsel %vm1838, %v3648, %v3545
        %v3665 = vsel %vm1855, %v3650, %v1716
        %v3666 = vsel %vm1855, %v3652, %v1718
        %v3667 = vsel %vm1855, %v3654, %v1720
        %v3668 = vsel %vm1855, %v3656, %v1722
        %v3669 = vsel %vm1855, %v3658, %v1724
        %v3670 = vsel %vm1855, %v3660, %v1726
        %v3671 = vsel %vm1855, %v3662, %v2737
        %v3673 = vsel %vm1855, %v3664, %v3550
        %v3675 = vsel %vm1182, %v3665, %v3561
        %v3677 = vsel %vm1182, %v3666, %v3563
        %v3679 = vsel %vm1182, %v3667, %v3565
        %v3681 = vsel %vm1182, %v3668, %v3567
        %v3683 = vsel %vm1182, %v3669, %v3569
        %v3685 = vsel %vm1182, %v3670, %v3571
        %v3687 = vsel %vm1182, %v3671, %v3573
        %v3689 = vsel %vm1182, %v3673, %v3575
        %v3690 = vld [vmem:[%s12] sm:$0xf]
        %v3691 = vld [vmem:[%s12 + $0x4] sm:$0xf]
        %v3692 = vld [vmem:[%s12 + $0x8] sm:$0xf]
        %v3693 = vld [vmem:[%s12 + $0xc] sm:$0xf]
        %v3694 = vld [vmem:[%s12 + $0x10] sm:$0x3]
        %v3700 = vunpack.c.l.b16 %v3690
        %v3701 = vunpack.c.l.b16 %v3691
        %v3702 = vunpack.c.l.b16 %v3692
        %v3703 = vunpack.c.l.b16 %v3693
        %v3704 = vunpack.c.l.b16 %v3694
        %v3705 = vpack.c.b16 %v3701, %v3700
        %v3706 = vpack.c.b16 %v3703, %v3702
        %v3707 = vpack.c.b16 %v3704, %v3704
        %v3710 = vsel %vm1908, %v3675, 0
        %v3712 = vsel %vm1908, %v3677, 0
        %v3714 = vsel %vm1908, %v3679, 0
        %v3716 = vsel %vm1908, %v3681, 0
        %v3718 = vsel %vm1908, %v3683, 0
        %v3720 = vsel %vm1908, %v3685, 0
        %v3722 = vsel %vm1908, %v3687, 0
        %v3724 = vsel %vm1908, %v3689, 0
        %v3727 = vsel %vm995, %v3707, 0
        %3729 = vmatprep.subr.bf16.mxu0 0
        %3730 = vmatpush1.bf16.msra.mxu0 0
        %3731 = vmatprep.subr.bf16.mxu0 0
        %3732 = vmatpush1.bf16.msra.mxu0 0
        %3733 = vmatprep.subr.bf16.mxu0 0
        %3734 = vmatpush1.bf16.msra.mxu0 0
        %3735 = vmatprep.subr.bf16.mxu0 0
        %3736 = vmatpush1.bf16.msra.mxu0 0
        %3737 = vmatprep.subr.bf16.mxu0 0
        %3738 = vmatpush1.bf16.msra.mxu0 0
        %3739 = vmatprep.subr.bf16.mxu0 0
        %3740 = vmatpush1.bf16.msra.mxu0 %v3727
        %3741 = vmatprep.subr.bf16.mxu0 0
        %3742 = vmatpush1.bf16.msra.mxu0 %v3706
        %3743 = vmatprep.subr.bf16.mxu0 0
        %3744 = vmatpush1.bf16.msra.mxu0 %v3705
        %3745 = vmatprep.subr.bf16.mxu0 0
        %3746 = vmatpush2.bf16.msra.mxu0 0
        %3747 = vmatprep.subr.bf16.mxu0 0
        %3748 = vmatpush2.bf16.msra.mxu0 0
        %3749 = vmatprep.subr.bf16.mxu0 0
        %3750 = vmatpush2.bf16.msra.mxu0 0
        %3751 = vmatprep.subr.bf16.mxu0 0
        %3752 = vmatpush2.bf16.msra.mxu0 0
        %3753 = vmatprep.subr.bf16.mxu0 0
        %3754 = vmatpush2.bf16.msra.mxu0 0
        %3755 = vmatprep.subr.bf16.mxu0 0
        %3756 = vmatpush2.bf16.msra.mxu0 0
        %3757 = vmatprep.subr.bf16.mxu0 0
        %3758 = vmatpush2.bf16.msra.mxu0 0
        %3759 = vmatprep.subr.bf16.mxu0 0
        %3760 = vmatpush2.bf16.msra.mxu0 0
        %3761 = vmatprep.mubr.bf16.mxu0 0
        %3762 = vmatmul.mubr.bf16.gmra.mxu0 %v3710
        %v3763 = vpop.f32.mrf.mxu0
        %v3764 = vadd.f32 0.0, %v3763
        %v3765 = vpop.f32.mrf.mxu0
        %v3766 = vpop.f32.mrf.mxu0
        %v3767 = vadd.f32 0.0, %v3766
        %v3768 = vpop.f32.mrf.mxu0
        %3769 = vmatprep.mubr.bf16.mxu0 0
        %3770 = vmatmul.mubr.bf16.gmra.mxu0 %v3712
        %v3771 = vpop.f32.mrf.mxu0
        %v3772 = vadd.f32 0.0, %v3771
        %v3773 = vpop.f32.mrf.mxu0
        %v3774 = vpop.f32.mrf.mxu0
        %v3775 = vadd.f32 0.0, %v3774
        %v3776 = vpop.f32.mrf.mxu0
        %3777 = vmatprep.mubr.bf16.mxu0 0
        %3778 = vmatmul.mubr.bf16.gmra.mxu0 %v3714
        %v3779 = vpop.f32.mrf.mxu0
        %v3780 = vadd.f32 0.0, %v3779
        %v3781 = vpop.f32.mrf.mxu0
        %v3782 = vpop.f32.mrf.mxu0
        %v3783 = vadd.f32 0.0, %v3782
        %v3784 = vpop.f32.mrf.mxu0
        %3785 = vmatprep.mubr.bf16.mxu0 0
        %3786 = vmatmul.mubr.bf16.gmra.mxu0 %v3716
        %v3787 = vpop.f32.mrf.mxu0
        %v3788 = vadd.f32 0.0, %v3787
        %v3789 = vpop.f32.mrf.mxu0
        %v3790 = vpop.f32.mrf.mxu0
        %v3791 = vadd.f32 0.0, %v3790
        %v3792 = vpop.f32.mrf.mxu0
        %3793 = vmatprep.mubr.bf16.mxu0 0
        %3794 = vmatmul.mubr.bf16.gmra.mxu0 %v3718
        %v3795 = vpop.f32.mrf.mxu0
        %v3796 = vadd.f32 0.0, %v3795
        %v3797 = vpop.f32.mrf.mxu0
        %v3798 = vpop.f32.mrf.mxu0
        %v3799 = vadd.f32 0.0, %v3798
        %v3800 = vpop.f32.mrf.mxu0
        %3801 = vmatprep.mubr.bf16.mxu0 0
        %3802 = vmatmul.mubr.bf16.gmra.mxu0 %v3720
        %v3803 = vpop.f32.mrf.mxu0
        %v3804 = vadd.f32 0.0, %v3803
        %v3805 = vpop.f32.mrf.mxu0
        %v3806 = vpop.f32.mrf.mxu0
        %v3807 = vadd.f32 0.0, %v3806
        %v3808 = vpop.f32.mrf.mxu0
        %3809 = vmatprep.mubr.bf16.mxu0 0
        %3810 = vmatmul.mubr.bf16.gmra.mxu0 %v3722
        %v3811 = vpop.f32.mrf.mxu0
        %v3812 = vadd.f32 0.0, %v3811
        %v3813 = vpop.f32.mrf.mxu0
        %v3814 = vpop.f32.mrf.mxu0
        %v3815 = vadd.f32 0.0, %v3814
        %v3816 = vpop.f32.mrf.mxu0
        %3817 = vmatprep.mubr.bf16.mxu0 0
        %3818 = vmatmul.mubr.bf16.gmra.mxu0 %v3724
        %v3819 = vpop.f32.mrf.mxu0
        %v3820 = vadd.f32 0.0, %v3819
        %v3821 = vpop.f32.mrf.mxu0
        %v3822 = vpop.f32.mrf.mxu0
        %v3823 = vadd.f32 0.0, %v3822
        %v3824 = vpop.f32.mrf.mxu0
        %3825 = vdwg.mxu0
        %v3826 = vld [vmem:[%s13] sm:$0x1]
        %v3828 = vlaneseq
        %v3829 = vshrl.u32 %v3828, 7
        %v3830 = vsub.s32 0, %v3829
        %v3831 = vrot.slane %v3826, %v3830
        %v3833 = vmul.f32 %v3764, %v3831
        %v3834 = vmul.f32 %v3767, %v3831
        %v3835 = vmul.f32 %v3772, %v3831
        %v3836 = vmul.f32 %v3775, %v3831
        %v3837 = vmul.f32 %v3780, %v3831
        %v3838 = vmul.f32 %v3783, %v3831
        %v3839 = vmul.f32 %v3788, %v3831
        %v3840 = vmul.f32 %v3791, %v3831
        %v3841 = vmul.f32 %v3796, %v3831
        %v3842 = vmul.f32 %v3799, %v3831
        %v3843 = vmul.f32 %v3804, %v3831
        %v3844 = vmul.f32 %v3807, %v3831
        %v3845 = vmul.f32 %v3812, %v3831
        %v3846 = vmul.f32 %v3815, %v3831
        %v3847 = vmul.f32 %v3820, %v3831
        %v3848 = vmul.f32 %v3823, %v3831
        %v3849 = vld [vmem:[%s14] sm:$0x1]
        %v3851 = vlaneseq
        %v3852 = vshrl.u32 %v3851, 7
        %v3853 = vsub.s32 0, %v3852
        %v3854 = vrot.slane %v3849, %v3853
        %v3856 = vadd.f32 %v3833, %v3854
        %v3857 = vadd.f32 %v3834, %v3854
        %v3858 = vadd.f32 %v3835, %v3854
        %v3859 = vadd.f32 %v3836, %v3854
        %v3860 = vadd.f32 %v3837, %v3854
        %v3861 = vadd.f32 %v3838, %v3854
        %v3862 = vadd.f32 %v3839, %v3854
        %v3863 = vadd.f32 %v3840, %v3854
        %v3864 = vadd.f32 %v3841, %v3854
        %v3865 = vadd.f32 %v3842, %v3854
        %v3866 = vadd.f32 %v3843, %v3854
        %v3867 = vadd.f32 %v3844, %v3854
        %v3868 = vadd.f32 %v3845, %v3854
        %v3869 = vadd.f32 %v3846, %v3854
        %v3870 = vadd.f32 %v3847, %v3854
        %v3871 = vadd.f32 %v3848, %v3854
        %v3872 = vmax.f32 %v3856, 0.0
        %v3873 = vmax.f32 %v3857, 0.0
        %v3874 = vmax.f32 %v3858, 0.0
        %v3875 = vmax.f32 %v3859, 0.0
        %v3876 = vmax.f32 %v3860, 0.0
        %v3877 = vmax.f32 %v3861, 0.0
        %v3878 = vmax.f32 %v3862, 0.0
        %v3879 = vmax.f32 %v3863, 0.0
        %v3880 = vmax.f32 %v3864, 0.0
        %v3881 = vmax.f32 %v3865, 0.0
        %v3882 = vmax.f32 %v3866, 0.0
        %v3883 = vmax.f32 %v3867, 0.0
        %v3884 = vmax.f32 %v3868, 0.0
        %v3885 = vmax.f32 %v3869, 0.0
        %v3886 = vmax.f32 %v3870, 0.0
        %v3887 = vmax.f32 %v3871, 0.0
        %v3888 = vpack.c.bf16 %v3873, %v3872
        %v3889 = vpack.c.bf16 %v3875, %v3874
        %v3890 = vpack.c.bf16 %v3877, %v3876
        %v3891 = vpack.c.bf16 %v3879, %v3878
        %v3892 = vpack.c.bf16 %v3881, %v3880
        %v3893 = vpack.c.bf16 %v3883, %v3882
        %v3894 = vpack.c.bf16 %v3885, %v3884
        %v3895 = vpack.c.bf16 %v3887, %v3886
        %v3896 = vld [vmem:[%s15 + $0x30] sm:$0xf]
        %v3897 = vld [vmem:[%s15 + $0x34] sm:$0xf]
        %v3898 = vld [vmem:[%s15 + $0x38] sm:$0xf]
        %v3899 = vld [vmem:[%s15 + $0x3c] sm:$0xf]
        %v3904 = vunpack.c.l.b16 %v3896
        %v3905 = vunpack.c.l.b16 %v3897
        %v3906 = vunpack.c.l.b16 %v3898
        %v3907 = vunpack.c.l.b16 %v3899
        %v3908 = vpack.c.b16 %v3905, %v3904
        %v3909 = vpack.c.b16 %v3907, %v3906
        %v3913 = vsel %vm1182, %v3888, 0
        %v3916 = vsel %vm1182, %v3889, 0
        %v3919 = vsel %vm1182, %v3890, 0
        %v3922 = vsel %vm1182, %v3891, 0
        %v3925 = vsel %vm1182, %v3892, 0
        %v3928 = vsel %vm1182, %v3893, 0
        %v3931 = vsel %vm1182, %v3894, 0
        %v3934 = vsel %vm1182, %v3895, 0
        %3936 = vmatprep.subr.bf16.mxu0 0
        %3937 = vmatpush1.bf16.msra.mxu0 0
        %3938 = vmatprep.subr.bf16.mxu0 0
        %3939 = vmatpush1.bf16.msra.mxu0 0
        %3940 = vmatprep.subr.bf16.mxu0 0
        %3941 = vmatpush1.bf16.msra.mxu0 0
        %3942 = vmatprep.subr.bf16.mxu0 0
        %3943 = vmatpush1.bf16.msra.mxu0 0
        %3944 = vmatprep.subr.bf16.mxu0 0
        %3945 = vmatpush1.bf16.msra.mxu0 0
        %3946 = vmatprep.subr.bf16.mxu0 0
        %3947 = vmatpush1.bf16.msra.mxu0 0
        %3948 = vmatprep.subr.bf16.mxu0 0
        %3949 = vmatpush1.bf16.msra.mxu0 %v3909
        %3950 = vmatprep.subr.bf16.mxu0 0
        %3951 = vmatpush1.bf16.msra.mxu0 %v3908
        %3952 = vmatprep.subr.bf16.mxu0 0
        %3953 = vmatpush2.bf16.msra.mxu0 0
        %3954 = vmatprep.subr.bf16.mxu0 0
        %3955 = vmatpush2.bf16.msra.mxu0 0
        %3956 = vmatprep.subr.bf16.mxu0 0
        %3957 = vmatpush2.bf16.msra.mxu0 0
        %3958 = vmatprep.subr.bf16.mxu0 0
        %3959 = vmatpush2.bf16.msra.mxu0 0
        %3960 = vmatprep.subr.bf16.mxu0 0
        %3961 = vmatpush2.bf16.msra.mxu0 0
        %3962 = vmatprep.subr.bf16.mxu0 0
        %3963 = vmatpush2.bf16.msra.mxu0 0
        %3964 = vmatprep.subr.bf16.mxu0 0
        %3965 = vmatpush2.bf16.msra.mxu0 0
        %3966 = vmatprep.subr.bf16.mxu0 0
        %3967 = vmatpush2.bf16.msra.mxu0 0
        %3968 = vmatprep.mubr.bf16.mxu0 0
        %3969 = vmatmul.mubr.bf16.gmra.mxu0 %v3913
        %v3970 = vpop.f32.mrf.mxu0
        %v3971 = vadd.f32 0.0, %v3970
        %v3972 = vpop.f32.mrf.mxu0
        %v3973 = vpop.f32.mrf.mxu0
        %v3974 = vadd.f32 0.0, %v3973
        %v3975 = vpop.f32.mrf.mxu0
        %3976 = vmatprep.mubr.bf16.mxu0 0
        %3977 = vmatmul.mubr.bf16.gmra.mxu0 %v3916
        %v3978 = vpop.f32.mrf.mxu0
        %v3979 = vadd.f32 0.0, %v3978
        %v3980 = vpop.f32.mrf.mxu0
        %v3981 = vpop.f32.mrf.mxu0
        %v3982 = vadd.f32 0.0, %v3981
        %v3983 = vpop.f32.mrf.mxu0
        %3984 = vmatprep.mubr.bf16.mxu0 0
        %3985 = vmatmul.mubr.bf16.gmra.mxu0 %v3919
        %v3986 = vpop.f32.mrf.mxu0
        %v3987 = vadd.f32 0.0, %v3986
        %v3988 = vpop.f32.mrf.mxu0
        %v3989 = vpop.f32.mrf.mxu0
        %v3990 = vadd.f32 0.0, %v3989
        %v3991 = vpop.f32.mrf.mxu0
        %3992 = vmatprep.mubr.bf16.mxu0 0
        %3993 = vmatmul.mubr.bf16.gmra.mxu0 %v3922
        %v3994 = vpop.f32.mrf.mxu0
        %v3995 = vadd.f32 0.0, %v3994
        %v3996 = vpop.f32.mrf.mxu0
        %v3997 = vpop.f32.mrf.mxu0
        %v3998 = vadd.f32 0.0, %v3997
        %v3999 = vpop.f32.mrf.mxu0
        %4000 = vmatprep.mubr.bf16.mxu0 0
        %4001 = vmatmul.mubr.bf16.gmra.mxu0 %v3925
        %v4002 = vpop.f32.mrf.mxu0
        %v4003 = vadd.f32 0.0, %v4002
        %v4004 = vpop.f32.mrf.mxu0
        %v4005 = vpop.f32.mrf.mxu0
        %v4006 = vadd.f32 0.0, %v4005
        %v4007 = vpop.f32.mrf.mxu0
        %4008 = vmatprep.mubr.bf16.mxu0 0
        %4009 = vmatmul.mubr.bf16.gmra.mxu0 %v3928
        %v4010 = vpop.f32.mrf.mxu0
        %v4011 = vadd.f32 0.0, %v4010
        %v4012 = vpop.f32.mrf.mxu0
        %v4013 = vpop.f32.mrf.mxu0
        %v4014 = vadd.f32 0.0, %v4013
        %v4015 = vpop.f32.mrf.mxu0
        %4016 = vmatprep.mubr.bf16.mxu0 0
        %4017 = vmatmul.mubr.bf16.gmra.mxu0 %v3931
        %v4018 = vpop.f32.mrf.mxu0
        %v4019 = vadd.f32 0.0, %v4018
        %v4020 = vpop.f32.mrf.mxu0
        %v4021 = vpop.f32.mrf.mxu0
        %v4022 = vadd.f32 0.0, %v4021
        %v4023 = vpop.f32.mrf.mxu0
        %4024 = vmatprep.mubr.bf16.mxu0 0
        %4025 = vmatmul.mubr.bf16.gmra.mxu0 %v3934
        %v4026 = vpop.f32.mrf.mxu0
        %v4027 = vadd.f32 0.0, %v4026
        %v4028 = vpop.f32.mrf.mxu0
        %v4029 = vpop.f32.mrf.mxu0
        %v4030 = vadd.f32 0.0, %v4029
        %v4031 = vpop.f32.mrf.mxu0
        %4032 = vdwg.mxu0
        %v4033 = vadd.f32 %v3217, %v3971
        %v4034 = vadd.f32 %v3218, %v3974
        %v4035 = vadd.f32 %v3219, %v3979
        %v4036 = vadd.f32 %v3220, %v3982
        %v4037 = vadd.f32 %v3221, %v3987
        %v4038 = vadd.f32 %v3222, %v3990
        %v4039 = vadd.f32 %v3223, %v3995
        %v4040 = vadd.f32 %v3224, %v3998
        %v4041 = vadd.f32 %v3225, %v4003
        %v4042 = vadd.f32 %v3226, %v4006
        %v4043 = vadd.f32 %v3227, %v4011
        %v4044 = vadd.f32 %v3228, %v4014
        %v4045 = vadd.f32 %v3229, %v4019
        %v4046 = vadd.f32 %v3230, %v4022
        %v4047 = vadd.f32 %v3231, %v4027
        %v4048 = vadd.f32 %v3232, %v4030
        %v4049 = vld [vmem:[%s16] sm:$0x1]
        %v4051 = vlaneseq
        %v4052 = vshrl.u32 %v4051, 7
        %v4053 = vsub.s32 0, %v4052
        %v4054 = vrot.slane %v4049, %v4053
        %v4056 = vmul.f32 %v4033, %v4054
        %v4057 = vmul.f32 %v4034, %v4054
        %v4058 = vmul.f32 %v4035, %v4054
        %v4059 = vmul.f32 %v4036, %v4054
        %v4060 = vmul.f32 %v4037, %v4054
        %v4061 = vmul.f32 %v4038, %v4054
        %v4062 = vmul.f32 %v4039, %v4054
        %v4063 = vmul.f32 %v4040, %v4054
        %v4064 = vmul.f32 %v4041, %v4054
        %v4065 = vmul.f32 %v4042, %v4054
        %v4066 = vmul.f32 %v4043, %v4054
        %v4067 = vmul.f32 %v4044, %v4054
        %v4068 = vmul.f32 %v4045, %v4054
        %v4069 = vmul.f32 %v4046, %v4054
        %v4070 = vmul.f32 %v4047, %v4054
        %v4071 = vmul.f32 %v4048, %v4054
        %v4072 = vld [vmem:[%s17] sm:$0x1]
        %v4074 = vlaneseq
        %v4075 = vshrl.u32 %v4074, 7
        %v4076 = vsub.s32 0, %v4075
        %v4077 = vrot.slane %v4072, %v4076
        %v4079 = vadd.f32 %v4056, %v4077
        %v4080 = vadd.f32 %v4057, %v4077
        %v4081 = vadd.f32 %v4058, %v4077
        %v4082 = vadd.f32 %v4059, %v4077
        %v4083 = vadd.f32 %v4060, %v4077
        %v4084 = vadd.f32 %v4061, %v4077
        %v4085 = vadd.f32 %v4062, %v4077
        %v4086 = vadd.f32 %v4063, %v4077
        %v4087 = vadd.f32 %v4064, %v4077
        %v4088 = vadd.f32 %v4065, %v4077
        %v4089 = vadd.f32 %v4066, %v4077
        %v4090 = vadd.f32 %v4067, %v4077
        %v4091 = vadd.f32 %v4068, %v4077
        %v4092 = vadd.f32 %v4069, %v4077
        %v4093 = vadd.f32 %v4070, %v4077
        %v4094 = vadd.f32 %v4071, %v4077
        %v4095 = vmax.f32 %v4079, 0.0
        %v4096 = vmax.f32 %v4080, 0.0
        %v4097 = vmax.f32 %v4081, 0.0
        %v4098 = vmax.f32 %v4082, 0.0
        %v4099 = vmax.f32 %v4083, 0.0
        %v4100 = vmax.f32 %v4084, 0.0
        %v4101 = vmax.f32 %v4085, 0.0
        %v4102 = vmax.f32 %v4086, 0.0
        %v4103 = vmax.f32 %v4087, 0.0
        %v4104 = vmax.f32 %v4088, 0.0
        %v4105 = vmax.f32 %v4089, 0.0
        %v4106 = vmax.f32 %v4090, 0.0
        %v4107 = vmax.f32 %v4091, 0.0
        %v4108 = vmax.f32 %v4092, 0.0
        %v4109 = vmax.f32 %v4093, 0.0
        %v4110 = vmax.f32 %v4094, 0.0
        %4111 = vst.msk [vmem:[%s639] sm:$0xff] %vm1182, %v4095
        %4112 = vst.msk [vmem:[%s639 + $0x8] sm:$0xff] %vm1182, %v4096
        %4113 = vst.msk [vmem:[%s639 + $0x10] sm:$0xff] %vm1182, %v4097
        %4114 = vst.msk [vmem:[%s639 + $0x18] sm:$0xff] %vm1182, %v4098
        %4115 = vst.msk [vmem:[%s639 + $0x20] sm:$0xff] %vm1182, %v4099
        %4116 = vst.msk [vmem:[%s639 + $0x28] sm:$0xff] %vm1182, %v4100
        %4117 = vst.msk [vmem:[%s639 + $0x30] sm:$0xff] %vm1182, %v4101
        %4118 = vst.msk [vmem:[%s639 + $0x38] sm:$0xff] %vm1182, %v4102
        %4119 = vst.msk [vmem:[%s639 + $0x40] sm:$0xff] %vm1182, %v4103
        %4120 = vst.msk [vmem:[%s639 + $0x48] sm:$0xff] %vm1182, %v4104
        %4121 = vst.msk [vmem:[%s639 + $0x50] sm:$0xff] %vm1182, %v4105
        %4122 = vst.msk [vmem:[%s639 + $0x58] sm:$0xff] %vm1182, %v4106
        %4123 = vst.msk [vmem:[%s639 + $0x60] sm:$0xff] %vm1182, %v4107
        %4124 = vst.msk [vmem:[%s639 + $0x68] sm:$0xff] %vm1182, %v4108
        %4125 = vst.msk [vmem:[%s639 + $0x70] sm:$0xff] %vm1182, %v4109
        %4126 = vst.msk [vmem:[%s639 + $0x78] sm:$0xff] %vm1182, %v4110
        %s4127 = sand.u32 %s453, 1
        %s4128 = scalar_lea.sflag [#allocation3], %s4127
        %s4129 = sand.u32 %s453, 1
        %s4130 = smul.addr %s4129, 128
        %s4131 = scalar_lea.vmem [#allocation2], %s4130
        // Predicated region
        $region93: #{_lambda_.3} parent=91 // pred_check
          %p4132 = pneg %p463
        $region94: #{_lambda_.3} parent=91 // pred_check_branch
          %4134 = sbr.rel (%p4132) target = $region96
        $region95: #{_lambda_.3} parent=91 // pred_region
          %s4135 = smul.u32 8, %s37
          %s4137 = ssub.s32 2048, 2048
          %4138 = vsyncadd %s4128, %s4137
          %s4139 = smul.addr %s4135, 2
          %s4140 = smul.addr %s36, 32
          %s4141 = sadd.s32 %s4139, %s4140
          %s4142 = smul.addr %s4141, 128
          %s4143 = scalar_lea.hbm %s18, %s4142
          %s4144 = sshll.u32 %s4131, 4
          %s4145 = int_to_ptr.vmem [resolvable:$true] %s4144
          %4150 = dma.vmem_to_hbm [thread:$0]  %s4145, 2048, %s4143, %s4128, 128, 128, 8
        $region96: #{_lambda_.3} parent=91 // pred_fallthru
          _
      $region92: #{_lambda_.3} parent=5 // pred_fallthru
        _
      %p4151 = scmp.le.s32.totalorder 2, %s27
      // Predicated region
      $region97: #{_lambda_.3} parent=5 // pred_check
        %p4152 = pneg %p4151
      $region98: #{_lambda_.3} parent=5 // pred_check_branch
        %4154 = sbr.rel (%p4152) target = $region100
      $region99: #{_lambda_.3} parent=5 // pred_region
        %s4155 = ssub.s32 %s27, 2
        // Predicated region
        $region101: #{_lambda_.3} parent=99 // pred_check
          %p4156 = pneg %p469
        $region102: #{_lambda_.3} parent=99 // pred_check_branch
          %4158 = sbr.rel (%p4156) target = $region104
        $region103: #{_lambda_.3} parent=99 // pred_region
          %s4159 = sand.u32 %s454, 1
          %s4160 = scalar_lea.sflag [#allocation3], %s4159
          %s4161 = sand.u32 %s454, 1
          %s4162 = smul.addr %s4161, 128
          %s4163 = scalar_lea.vmem [#allocation2], %s4162
          %4164 = dma.done %s4160, 2048
        $region104: #{_lambda_.3} parent=99 // pred_fallthru
          _
      $region100: #{_lambda_.3} parent=5 // pred_fallthru
        _
    $region6: #{_lambda_.3} parent=1 // loop_footer
      %s31 = sadd.s32 1, %s27
    $region7: #{_lambda_.3} parent=1 // loop_footer_branch
      %26 = sbr.rel target = $region3
    $region8: #{_lambda_.3} parent=1 // loop_exit
      _
    %4165 = vsyncpa [#allocation3], 1
    %s4166 = scalar_lea.sflag [#allocation3], 1
    %4167 = vsyncpa %s4166, 1

</llo_original>
